<compile_context>
chip_gen: v6e
topology: v6e:2x2x1
jax: 0.10.0
libtpu: 0.0.40
codegen_flags: <defaults>
</compile_context>

<pallas_src>
import functools
import math

import jax
import jax.numpy as jnp
from jax.experimental import pallas as pl
from jax.experimental.pallas import tpu as pltpu

LANES = 128  # native lane width; real channels live in the low lanes


# ----------------------------- kernel helpers ------------------------------

def _shift_w(x, dx, B, H, W):
    """x[b, h, w+dx, :] with zero padding at the W border (|dx| <= 1)."""
    if dx == 0:
        return x
    zcol = jnp.zeros((B, H, 1, LANES), jnp.float32)
    if dx > 0:
        return jnp.concatenate([x[:, :, 1:, :], zcol], axis=2)
    return jnp.concatenate([zcol, x[:, :, :W - 1, :]], axis=2)


def _shift_h(x, dy, B, H, W):
    """x[b, h+dy, w, :] with zero padding at the H border (|dy| <= 1)."""
    if dy == 0:
        return x
    zrow = jnp.zeros((B, 1, W, LANES), jnp.float32)
    if dy > 0:
        return jnp.concatenate([x[:, 1:, :, :], zrow], axis=1)
    return jnp.concatenate([zrow, x[:, :H - 1, :, :]], axis=1)


def _conv3x3_relu(x4, w_ref, b_ref, cin, B, H, W):
    """SAME 3x3 conv + bias + ReLU as ONE lane-packed K=128 matmul.

    x4:    (B, H, W, LANES) value; real channels in lanes [0, cin), zeros above.
    w_ref: (LANES, LANES) ref; row t*cin + c, col o holds w[tap t, c, o].
    b_ref: (1, LANES) ref; zeros above the real output channels.
    returns (B*H*W, LANES) value, rows ordered (b, h, w).
    """
    M = B * H * W
    # Three W-shifted variants, then cheap major-axis H shifts per tap.
    xw = {dx: _shift_w(x4, dx, B, H, W) for dx in (-1, 0, 1)}

    packed = None
    for dy in (-1, 0, 1):
        for dx in (-1, 0, 1):
            t = (dy + 1) * 3 + (dx + 1)              # tap index 0..8
            chunk = _shift_h(xw[dx], dy, B, H, W).reshape(M, LANES)
            if t:
                # place this tap's channels at lanes [t*cin, t*cin + cin);
                # wrapped lanes are zeros, windows are disjoint (9*cin <= 128).
                chunk = pltpu.roll(chunk, shift=t * cin, axis=1)
            packed = chunk if packed is None else packed + chunk

    y = jnp.dot(packed, w_ref[...], preferred_element_type=jnp.float32)
    return jnp.maximum(y + b_ref[...], 0.0)          # (M, LANES)


def _maxpool2x2(y, scr_ref, B, H, W):
    """2x2 / stride-2 max pool. y: (B*H*W, LANES), rows ordered (b, h, w)."""
    Ho, Wo = H // 2, W // 2
    # H pairing: pure major-axis reshape + slices, stays in registers.
    y5 = y.reshape(B, Ho, 2, W, LANES)
    hmax = jnp.maximum(y5[:, :, 0, :, :], y5[:, :, 1, :, :])   # (B, Ho, W, L)
    # W pairing: stride-2 compaction along the sublane dim via a small scratch.
    m = B * Ho * W
    scr_ref[pl.ds(0, m), :] = hmax.reshape(m, LANES)
    even = scr_ref[pl.ds(0, m // 2, stride=2), :]               # w = 2q
    odd = scr_ref[pl.ds(1, m // 2, stride=2), :]                # w = 2q + 1
    return jnp.maximum(even, odd)                   # (B*Ho*Wo, L), rows (b,p,q)


# ----------------------------- fused kernel --------------------------------

def _vgg_kernel(x_ref, w1_ref, b1_ref, w2_ref, b2_ref, o_ref, scr_ref, *,
                alpha, c1, c2):
    B, H, W, cin = x_ref.shape

    # widen the narrow input to 128 lanes (lanes [cin, 128) must be zero).
    x4 = jnp.concatenate(
        [x_ref[...], jnp.zeros((B, H, W, LANES - cin), jnp.float32)], axis=-1)

    # block 1: conv(cin -> c1) + ReLU + maxpool
    y1 = _conv3x3_relu(x4, w1_ref, b1_ref, cin, B, H, W)
    p1 = _maxpool2x2(y1, scr_ref, B, H, W)          # (B*Ho*Wo, L)
    Ho, Wo = H // 2, W // 2

    # block 2: conv(c1 -> c2) + ReLU + maxpool (padded output lanes stay 0)
    x2 = p1.reshape(B, Ho, Wo, LANES)
    y2 = _conv3x3_relu(x2, w2_ref, b2_ref, c1, B, Ho, Wo)
    p2 = _maxpool2x2(y2, scr_ref, B, Ho, Wo)        # (B*Ho2*Wo2, L)
    Ho2, Wo2 = Ho // 2, Wo // 2

    # head: global mean -> alpha*tanh -> softmax over the batch dimension
    p4 = p2.reshape(B, Ho2 * Wo2, LANES)
    s = jnp.sum(p4, axis=2)                         # padded lanes add 0
    s = jnp.sum(s, axis=1, keepdims=True)           # (B, 1)
    mean = s * (1.0 / float(Ho2 * Wo2 * c2))        # mean over REAL elements
    z = alpha * jnp.tanh(mean)                      # (B, 1)
    z = z - jnp.max(z, axis=0, keepdims=True)       # softmax over dim 0
    e = jnp.exp(z)
    o_ref[...] = e / jnp.sum(e, axis=0, keepdims=True)


# ----------------------------- wrapper --------------------------------------

def _pack_conv(w, b):
    """(3,3,Cin,Cout) HWIO weights -> dense (128,128); bias -> (1,128)."""
    kh, kw, cin, cout = w.shape
    assert kh == 3 and kw == 3 and 9 * cin <= LANES and cout <= LANES
    wp = jnp.zeros((LANES, LANES), jnp.float32)
    wp = wp.at[:9 * cin, :cout].set(
        w.astype(jnp.float32).reshape(9 * cin, cout))       # row t*cin + c
    bp = jnp.zeros((1, LANES), jnp.float32).at[0, :cout].set(
        b.astype(jnp.float32))
    return wp, bp


def pack_params(params):
    """One-time host-side packing; keep the result and reuse across calls."""
    w1p, b1p = _pack_conv(params["w1"], params["b1"])
    w2p, b2p = _pack_conv(params["w2"], params["b2"])
    return {"w1": w1p, "b1": b1p, "w2": w2p, "b2": b2p}


@functools.partial(jax.jit, static_argnames=("alpha", "c1", "c2"))
def vgg_forward(x_nchw, w1p, b1p, w2p, b2p, *, alpha, c1, c2):
    assert alpha > 0
    x = jnp.transpose(x_nchw, (0, 2, 3, 1)).astype(jnp.float32)   # NCHW -> NHWC
    B, H, W, Cin = x.shape
    assert H % 4 == 0 and W % 4 == 0, "two 2x2 max pools need H, W % 4 == 0"
    assert 9 * Cin <= LANES and 9 * c1 <= LANES and c2 <= LANES
    Ho = H // 2

    kern = functools.partial(_vgg_kernel, alpha=float(alpha), c1=c1, c2=c2)
    return pl.pallas_call(
        kern,
        out_shape=jax.ShapeDtypeStruct((B, 1), jnp.float32),
        grid=(1,),
        in_specs=[
            pl.BlockSpec((B, H, W, Cin), lambda i: (0, 0, 0, 0)),  # 8 KiB input
            pl.BlockSpec((LANES, LANES), lambda i: (0, 0)),        # packed w1
            pl.BlockSpec((1, LANES), lambda i: (0, 0)),            # packed b1
            pl.BlockSpec((LANES, LANES), lambda i: (0, 0)),        # packed w2
            pl.BlockSpec((1, LANES), lambda i: (0, 0)),            # packed b2
        ],
        out_specs=pl.BlockSpec((B, 1), lambda i: (0, 0)),
        scratch_shapes=[
            pltpu.VMEM((B * Ho * W, LANES), jnp.float32),  # shared pool staging
        ],
        compiler_params=pltpu.CompilerParams(
            dimension_semantics=("arbitrary",),
            vmem_limit_bytes=32 * 1024 * 1024),
    )(x, w1p, b1p, w2p, b2p)


# ----------------------------- pure-JAX reference ---------------------------

def vgg_reference(x_nchw, params, alpha):
    x = jnp.transpose(x_nchw, (0, 2, 3, 1)).astype(jnp.float32)

    def block(x, w, b):
        y = jax.lax.conv_general_dilated(
            x, w, (1, 1), "SAME",
            dimension_numbers=("NHWC", "HWIO", "NHWC"),
            precision=jax.lax.Precision.HIGHEST) + b
        y = jnp.maximum(y, 0.0)
        B, H, W, C = y.shape
        return y.reshape(B, H // 2, 2, W // 2, 2, C).max(axis=(2, 4))

    y = block(x, params["w1"], params["b1"])
    y = block(y, params["w2"], params["b2"])
    m = y.mean(axis=(1, 2, 3))
    t = alpha * jnp.tanh(m)
    return jax.nn.softmax(t, axis=0)[:, None]


# ----------------------------- main ------------------------------------------

if __name__ == "__main__":
    key = jax.random.PRNGKey(0)
    kx, k1, k2 = jax.random.split(key, 3)

    B, Cin, Hin, Win = 2, 4, 16, 16
    C1, C2 = 8, 16
    alpha = 1.5

    # Deterministic Kaiming-normal (fan_out, relu) conv weights, zero biases.
    w1 = jax.random.normal(k1, (3, 3, Cin, C1), jnp.float32) * math.sqrt(2.0 / (C1 * 9))
    b1 = jnp.zeros((C1,), jnp.float32)
    w2 = jax.random.normal(k2, (3, 3, C1, C2), jnp.float32) * math.sqrt(2.0 / (C2 * 9))
    b2 = jnp.zeros((C2,), jnp.float32)
    params = {"w1": w1, "b1": b1, "w2": w2, "b2": b2}

    x = jax.random.normal(kx, (B, Cin, Hin, Win), jnp.float32)

    packed = pack_params(params)   # one-time weight packing, outside the call path
    out = jax.block_until_ready(
        vgg_forward(x, packed["w1"], packed["b1"], packed["w2"], packed["b2"],
                    alpha=alpha, c1=C1, c2=C2))
    ref = vgg_reference(x, params, alpha)

    assert out.shape == (B, 1), out.shape
    if bool(jnp.allclose(out, ref, rtol=1e-3, atol=1e-4)):
        print("KERNEL_OK")
    else:
        print("MISMATCH", out, ref)
</pallas_src>

<mosaic_0001>
module attributes {stable_mosaic.version = 11 : i64} {
  func.func @_vgg_kernel(%arg0: i32, %arg1: memref<2x16x16x4xf32, #tpu.memory_space<vmem>>, %arg2: memref<128x128xf32, #tpu.memory_space<vmem>>, %arg3: memref<1x128xf32, #tpu.memory_space<vmem>>, %arg4: memref<128x128xf32, #tpu.memory_space<vmem>>, %arg5: memref<1x128xf32, #tpu.memory_space<vmem>>, %arg6: memref<2x1xf32, #tpu.memory_space<vmem>>, %arg7: memref<256x128xf32, #tpu.memory_space<vmem>>) attributes {dimension_semantics = [#tpu.dimension_semantics<arbitrary>], iteration_bounds = array<i64: 1>, scalar_prefetch = 0 : i64, scratch_operands = 1 : i64, tpu.core_type = #tpu.core_type<tc>, window_params = [{pipeline_mode = #tpu.pipeline_mode<synchronous>, transform_indices = @transform_0, window_bounds = array<i64: 2, 16, 16, 4>}, {pipeline_mode = #tpu.pipeline_mode<synchronous>, transform_indices = @transform_1, window_bounds = array<i64: 128, 128>}, {pipeline_mode = #tpu.pipeline_mode<synchronous>, transform_indices = @transform_2, window_bounds = array<i64: 1, 128>}, {pipeline_mode = #tpu.pipeline_mode<synchronous>, transform_indices = @transform_3, window_bounds = array<i64: 128, 128>}, {pipeline_mode = #tpu.pipeline_mode<synchronous>, transform_indices = @transform_4, window_bounds = array<i64: 1, 128>}, {pipeline_mode = #tpu.pipeline_mode<synchronous>, transform_indices = @transform_5, window_bounds = array<i64: 2, 1>}]} {
    %c0 = arith.constant 0 : index
    %c0_0 = arith.constant 0 : index
    %c0_1 = arith.constant 0 : index
    %c0_2 = arith.constant 0 : index
    %0 = vector.load %arg1[%c0, %c0_0, %c0_1, %c0_2] : memref<2x16x16x4xf32, #tpu.memory_space<vmem>>, vector<2x16x16x4xf32>
    %cst = arith.constant 0.000000e+00 : f32
    %1 = vector.broadcast %cst : f32 to vector<2x16x16x124xf32>
    %2 = tpu.concatenate %0, %1 in 3 : vector<2x16x16x4xf32>, vector<2x16x16x124xf32> -> vector<2x16x16x128xf32>
    %cst_3 = arith.constant 0.000000e+00 : f32
    %3 = vector.broadcast %cst_3 : f32 to vector<2x16x1x128xf32>
    %4 = vector.extract_strided_slice %2 {offsets = [0, 0, 0, 0], sizes = [2, 16, 15, 128], strides = [1, 1, 1, 1]} : vector<2x16x16x128xf32> to vector<2x16x15x128xf32>
    %5 = tpu.concatenate %3, %4 in 2 : vector<2x16x1x128xf32>, vector<2x16x15x128xf32> -> vector<2x16x16x128xf32>
    %cst_4 = arith.constant 0.000000e+00 : f32
    %6 = vector.broadcast %cst_4 : f32 to vector<2x16x1x128xf32>
    %7 = vector.extract_strided_slice %2 {offsets = [0, 0, 1, 0], sizes = [2, 16, 15, 128], strides = [1, 1, 1, 1]} : vector<2x16x16x128xf32> to vector<2x16x15x128xf32>
    %8 = tpu.concatenate %7, %6 in 2 : vector<2x16x15x128xf32>, vector<2x16x1x128xf32> -> vector<2x16x16x128xf32>
    %cst_5 = arith.constant 0.000000e+00 : f32
    %9 = vector.broadcast %cst_5 : f32 to vector<2x1x16x128xf32>
    %10 = vector.extract_strided_slice %5 {offsets = [0, 0, 0, 0], sizes = [2, 15, 16, 128], strides = [1, 1, 1, 1]} : vector<2x16x16x128xf32> to vector<2x15x16x128xf32>
    %11 = tpu.concatenate %9, %10 in 1 : vector<2x1x16x128xf32>, vector<2x15x16x128xf32> -> vector<2x16x16x128xf32>
    %12 = vector.shape_cast %11 : vector<2x16x16x128xf32> to vector<512x128xf32>
    %cst_6 = arith.constant 0.000000e+00 : f32
    %13 = vector.broadcast %cst_6 : f32 to vector<2x1x16x128xf32>
    %14 = vector.extract_strided_slice %2 {offsets = [0, 0, 0, 0], sizes = [2, 15, 16, 128], strides = [1, 1, 1, 1]} : vector<2x16x16x128xf32> to vector<2x15x16x128xf32>
    %15 = tpu.concatenate %13, %14 in 1 : vector<2x1x16x128xf32>, vector<2x15x16x128xf32> -> vector<2x16x16x128xf32>
    %16 = vector.shape_cast %15 : vector<2x16x16x128xf32> to vector<512x128xf32>
    %c4_i32 = arith.constant 4 : i32
    %17 = tpu.dynamic_rotate %16 by %c4_i32 dim 1 : vector<512x128xf32>, i32 -> vector<512x128xf32>
    %18 = arith.addf %12, %17 : vector<512x128xf32>
    %cst_7 = arith.constant 0.000000e+00 : f32
    %19 = vector.broadcast %cst_7 : f32 to vector<2x1x16x128xf32>
    %20 = vector.extract_strided_slice %8 {offsets = [0, 0, 0, 0], sizes = [2, 15, 16, 128], strides = [1, 1, 1, 1]} : vector<2x16x16x128xf32> to vector<2x15x16x128xf32>
    %21 = tpu.concatenate %19, %20 in 1 : vector<2x1x16x128xf32>, vector<2x15x16x128xf32> -> vector<2x16x16x128xf32>
    %22 = vector.shape_cast %21 : vector<2x16x16x128xf32> to vector<512x128xf32>
    %c8_i32 = arith.constant 8 : i32
    %23 = tpu.dynamic_rotate %22 by %c8_i32 dim 1 : vector<512x128xf32>, i32 -> vector<512x128xf32>
    %24 = arith.addf %18, %23 : vector<512x128xf32>
    %25 = vector.shape_cast %5 : vector<2x16x16x128xf32> to vector<512x128xf32>
    %c12_i32 = arith.constant 12 : i32
    %26 = tpu.dynamic_rotate %25 by %c12_i32 dim 1 : vector<512x128xf32>, i32 -> vector<512x128xf32>
    %27 = arith.addf %24, %26 : vector<512x128xf32>
    %28 = vector.shape_cast %2 : vector<2x16x16x128xf32> to vector<512x128xf32>
    %c16_i32 = arith.constant 16 : i32
    %29 = tpu.dynamic_rotate %28 by %c16_i32 dim 1 : vector<512x128xf32>, i32 -> vector<512x128xf32>
    %30 = arith.addf %27, %29 : vector<512x128xf32>
    %31 = vector.shape_cast %8 : vector<2x16x16x128xf32> to vector<512x128xf32>
    %c20_i32 = arith.constant 20 : i32
    %32 = tpu.dynamic_rotate %31 by %c20_i32 dim 1 : vector<512x128xf32>, i32 -> vector<512x128xf32>
    %33 = arith.addf %30, %32 : vector<512x128xf32>
    %cst_8 = arith.constant 0.000000e+00 : f32
    %34 = vector.broadcast %cst_8 : f32 to vector<2x1x16x128xf32>
    %35 = vector.extract_strided_slice %5 {offsets = [0, 1, 0, 0], sizes = [2, 15, 16, 128], strides = [1, 1, 1, 1]} : vector<2x16x16x128xf32> to vector<2x15x16x128xf32>
    %36 = tpu.concatenate %35, %34 in 1 : vector<2x15x16x128xf32>, vector<2x1x16x128xf32> -> vector<2x16x16x128xf32>
    %37 = vector.shape_cast %36 : vector<2x16x16x128xf32> to vector<512x128xf32>
    %c24_i32 = arith.constant 24 : i32
    %38 = tpu.dynamic_rotate %37 by %c24_i32 dim 1 : vector<512x128xf32>, i32 -> vector<512x128xf32>
    %39 = arith.addf %33, %38 : vector<512x128xf32>
    %cst_9 = arith.constant 0.000000e+00 : f32
    %40 = vector.broadcast %cst_9 : f32 to vector<2x1x16x128xf32>
    %41 = vector.extract_strided_slice %2 {offsets = [0, 1, 0, 0], sizes = [2, 15, 16, 128], strides = [1, 1, 1, 1]} : vector<2x16x16x128xf32> to vector<2x15x16x128xf32>
    %42 = tpu.concatenate %41, %40 in 1 : vector<2x15x16x128xf32>, vector<2x1x16x128xf32> -> vector<2x16x16x128xf32>
    %43 = vector.shape_cast %42 : vector<2x16x16x128xf32> to vector<512x128xf32>
    %c28_i32 = arith.constant 28 : i32
    %44 = tpu.dynamic_rotate %43 by %c28_i32 dim 1 : vector<512x128xf32>, i32 -> vector<512x128xf32>
    %45 = arith.addf %39, %44 : vector<512x128xf32>
    %cst_10 = arith.constant 0.000000e+00 : f32
    %46 = vector.broadcast %cst_10 : f32 to vector<2x1x16x128xf32>
    %47 = vector.extract_strided_slice %8 {offsets = [0, 1, 0, 0], sizes = [2, 15, 16, 128], strides = [1, 1, 1, 1]} : vector<2x16x16x128xf32> to vector<2x15x16x128xf32>
    %48 = tpu.concatenate %47, %46 in 1 : vector<2x15x16x128xf32>, vector<2x1x16x128xf32> -> vector<2x16x16x128xf32>
    %49 = vector.shape_cast %48 : vector<2x16x16x128xf32> to vector<512x128xf32>
    %c32_i32 = arith.constant 32 : i32
    %50 = tpu.dynamic_rotate %49 by %c32_i32 dim 1 : vector<512x128xf32>, i32 -> vector<512x128xf32>
    %51 = arith.addf %45, %50 : vector<512x128xf32>
    %c0_11 = arith.constant 0 : index
    %c0_12 = arith.constant 0 : index
    %52 = vector.load %arg2[%c0_11, %c0_12] : memref<128x128xf32, #tpu.memory_space<vmem>>, vector<128x128xf32>
    %cst_13 = arith.constant dense<0.000000e+00> : vector<512x128xf32>
    %53 = tpu.matmul %51, %52, %cst_13 {dimension_numbers = #tpu.dot_dimension_numbers<[1], [0], [0], [1], [0, 0, 1, 1], [], []>} : vector<512x128xf32>, vector<128x128xf32>, vector<512x128xf32> -> vector<512x128xf32>
    %c0_14 = arith.constant 0 : index
    %c0_15 = arith.constant 0 : index
    %54 = vector.load %arg3[%c0_14, %c0_15] : memref<1x128xf32, #tpu.memory_space<vmem>>, vector<1x128xf32>
    %55 = vector.broadcast %54 : vector<1x128xf32> to vector<512x128xf32>
    %56 = arith.addf %53, %55 : vector<512x128xf32>
    %cst_16 = arith.constant 0.000000e+00 : f32
    %57 = vector.broadcast %cst_16 : f32 to vector<512x128xf32>
    %58 = arith.maximumf %56, %57 : vector<512x128xf32>
    %59 = vector.shape_cast %58 : vector<512x128xf32> to vector<2x8x2x16x128xf32>
    %60 = vector.extract_strided_slice %59 {offsets = [0, 0, 0, 0, 0], sizes = [2, 8, 1, 16, 128], strides = [1, 1, 1, 1, 1]} : vector<2x8x2x16x128xf32> to vector<2x8x1x16x128xf32>
    %61 = vector.shape_cast %60 : vector<2x8x1x16x128xf32> to vector<2x8x16x128xf32>
    %62 = vector.extract_strided_slice %59 {offsets = [0, 0, 1, 0, 0], sizes = [2, 8, 1, 16, 128], strides = [1, 1, 1, 1, 1]} : vector<2x8x2x16x128xf32> to vector<2x8x1x16x128xf32>
    %63 = vector.shape_cast %62 : vector<2x8x1x16x128xf32> to vector<2x8x16x128xf32>
    %64 = arith.maximumf %61, %63 : vector<2x8x16x128xf32>
    %65 = vector.shape_cast %64 : vector<2x8x16x128xf32> to vector<256x128xf32>
    %c0_17 = arith.constant 0 : index
    %c0_18 = arith.constant 0 : index
    %66 = vector.load %arg7[%c0_17, %c0_18] : memref<256x128xf32, #tpu.memory_space<vmem>>, vector<256x128xf32>
    tpu.vector_store %arg7[%c0_17, %c0_18], %65 {strides = array<i32>} : memref<256x128xf32, #tpu.memory_space<vmem>>, vector<256x128xf32>,
    %c0_19 = arith.constant 0 : index
    %c0_20 = arith.constant 0 : index
    %67 = tpu.strided_load %arg7[%c0_19, %c0_20] {strides = array<i32: 2, 1>} : memref<256x128xf32, #tpu.memory_space<vmem>>, vector<128x128xf32>
    %c1 = arith.constant 1 : index
    %c0_21 = arith.constant 0 : index
    %68 = tpu.strided_load %arg7[%c1, %c0_21] {strides = array<i32: 2, 1>} : memref<256x128xf32, #tpu.memory_space<vmem>>, vector<128x128xf32>
    %69 = arith.maximumf %67, %68 : vector<128x128xf32>
    %70 = vector.shape_cast %69 : vector<128x128xf32> to vector<2x8x8x128xf32>
    %cst_22 = arith.constant 0.000000e+00 : f32
    %71 = vector.broadcast %cst_22 : f32 to vector<2x8x1x128xf32>
    %72 = vector.extract_strided_slice %70 {offsets = [0, 0, 0, 0], sizes = [2, 8, 7, 128], strides = [1, 1, 1, 1]} : vector<2x8x8x128xf32> to vector<2x8x7x128xf32>
    %73 = tpu.concatenate %71, %72 in 2 : vector<2x8x1x128xf32>, vector<2x8x7x128xf32> -> vector<2x8x8x128xf32>
    %cst_23 = arith.constant 0.000000e+00 : f32
    %74 = vector.broadcast %cst_23 : f32 to vector<2x8x1x128xf32>
    %75 = vector.extract_strided_slice %70 {offsets = [0, 0, 1, 0], sizes = [2, 8, 7, 128], strides = [1, 1, 1, 1]} : vector<2x8x8x128xf32> to vector<2x8x7x128xf32>
    %76 = tpu.concatenate %75, %74 in 2 : vector<2x8x7x128xf32>, vector<2x8x1x128xf32> -> vector<2x8x8x128xf32>
    %cst_24 = arith.constant 0.000000e+00 : f32
    %77 = vector.broadcast %cst_24 : f32 to vector<2x1x8x128xf32>
    %78 = vector.extract_strided_slice %73 {offsets = [0, 0, 0, 0], sizes = [2, 7, 8, 128], strides = [1, 1, 1, 1]} : vector<2x8x8x128xf32> to vector<2x7x8x128xf32>
    %79 = tpu.concatenate %77, %78 in 1 : vector<2x1x8x128xf32>, vector<2x7x8x128xf32> -> vector<2x8x8x128xf32>
    %80 = vector.shape_cast %79 : vector<2x8x8x128xf32> to vector<128x128xf32>
    %cst_25 = arith.constant 0.000000e+00 : f32
    %81 = vector.broadcast %cst_25 : f32 to vector<2x1x8x128xf32>
    %82 = vector.extract_strided_slice %70 {offsets = [0, 0, 0, 0], sizes = [2, 7, 8, 128], strides = [1, 1, 1, 1]} : vector<2x8x8x128xf32> to vector<2x7x8x128xf32>
    %83 = tpu.concatenate %81, %82 in 1 : vector<2x1x8x128xf32>, vector<2x7x8x128xf32> -> vector<2x8x8x128xf32>
    %84 = vector.shape_cast %83 : vector<2x8x8x128xf32> to vector<128x128xf32>
    %c8_i32_26 = arith.constant 8 : i32
    %85 = tpu.dynamic_rotate %84 by %c8_i32_26 dim 1 : vector<128x128xf32>, i32 -> vector<128x128xf32>
    %86 = arith.addf %80, %85 : vector<128x128xf32>
    %cst_27 = arith.constant 0.000000e+00 : f32
    %87 = vector.broadcast %cst_27 : f32 to vector<2x1x8x128xf32>
    %88 = vector.extract_strided_slice %76 {offsets = [0, 0, 0, 0], sizes = [2, 7, 8, 128], strides = [1, 1, 1, 1]} : vector<2x8x8x128xf32> to vector<2x7x8x128xf32>
    %89 = tpu.concatenate %87, %88 in 1 : vector<2x1x8x128xf32>, vector<2x7x8x128xf32> -> vector<2x8x8x128xf32>
    %90 = vector.shape_cast %89 : vector<2x8x8x128xf32> to vector<128x128xf32>
    %c16_i32_28 = arith.constant 16 : i32
    %91 = tpu.dynamic_rotate %90 by %c16_i32_28 dim 1 : vector<128x128xf32>, i32 -> vector<128x128xf32>
    %92 = arith.addf %86, %91 : vector<128x128xf32>
    %93 = vector.shape_cast %73 : vector<2x8x8x128xf32> to vector<128x128xf32>
    %c24_i32_29 = arith.constant 24 : i32
    %94 = tpu.dynamic_rotate %93 by %c24_i32_29 dim 1 : vector<128x128xf32>, i32 -> vector<128x128xf32>
    %95 = arith.addf %92, %94 : vector<128x128xf32>
    %96 = vector.shape_cast %70 : vector<2x8x8x128xf32> to vector<128x128xf32>
    %c32_i32_30 = arith.constant 32 : i32
    %97 = tpu.dynamic_rotate %96 by %c32_i32_30 dim 1 : vector<128x128xf32>, i32 -> vector<128x128xf32>
    %98 = arith.addf %95, %97 : vector<128x128xf32>
    %99 = vector.shape_cast %76 : vector<2x8x8x128xf32> to vector<128x128xf32>
    %c40_i32 = arith.constant 40 : i32
    %100 = tpu.dynamic_rotate %99 by %c40_i32 dim 1 : vector<128x128xf32>, i32 -> vector<128x128xf32>
    %101 = arith.addf %98, %100 : vector<128x128xf32>
    %cst_31 = arith.constant 0.000000e+00 : f32
    %102 = vector.broadcast %cst_31 : f32 to vector<2x1x8x128xf32>
    %103 = vector.extract_strided_slice %73 {offsets = [0, 1, 0, 0], sizes = [2, 7, 8, 128], strides = [1, 1, 1, 1]} : vector<2x8x8x128xf32> to vector<2x7x8x128xf32>
    %104 = tpu.concatenate %103, %102 in 1 : vector<2x7x8x128xf32>, vector<2x1x8x128xf32> -> vector<2x8x8x128xf32>
    %105 = vector.shape_cast %104 : vector<2x8x8x128xf32> to vector<128x128xf32>
    %c48_i32 = arith.constant 48 : i32
    %106 = tpu.dynamic_rotate %105 by %c48_i32 dim 1 : vector<128x128xf32>, i32 -> vector<128x128xf32>
    %107 = arith.addf %101, %106 : vector<128x128xf32>
    %cst_32 = arith.constant 0.000000e+00 : f32
    %108 = vector.broadcast %cst_32 : f32 to vector<2x1x8x128xf32>
    %109 = vector.extract_strided_slice %70 {offsets = [0, 1, 0, 0], sizes = [2, 7, 8, 128], strides = [1, 1, 1, 1]} : vector<2x8x8x128xf32> to vector<2x7x8x128xf32>
    %110 = tpu.concatenate %109, %108 in 1 : vector<2x7x8x128xf32>, vector<2x1x8x128xf32> -> vector<2x8x8x128xf32>
    %111 = vector.shape_cast %110 : vector<2x8x8x128xf32> to vector<128x128xf32>
    %c56_i32 = arith.constant 56 : i32
    %112 = tpu.dynamic_rotate %111 by %c56_i32 dim 1 : vector<128x128xf32>, i32 -> vector<128x128xf32>
    %113 = arith.addf %107, %112 : vector<128x128xf32>
    %cst_33 = arith.constant 0.000000e+00 : f32
    %114 = vector.broadcast %cst_33 : f32 to vector<2x1x8x128xf32>
    %115 = vector.extract_strided_slice %76 {offsets = [0, 1, 0, 0], sizes = [2, 7, 8, 128], strides = [1, 1, 1, 1]} : vector<2x8x8x128xf32> to vector<2x7x8x128xf32>
    %116 = tpu.concatenate %115, %114 in 1 : vector<2x7x8x128xf32>, vector<2x1x8x128xf32> -> vector<2x8x8x128xf32>
    %117 = vector.shape_cast %116 : vector<2x8x8x128xf32> to vector<128x128xf32>
    %c64_i32 = arith.constant 64 : i32
    %118 = tpu.dynamic_rotate %117 by %c64_i32 dim 1 : vector<128x128xf32>, i32 -> vector<128x128xf32>
    %119 = arith.addf %113, %118 : vector<128x128xf32>
    %c0_34 = arith.constant 0 : index
    %c0_35 = arith.constant 0 : index
    %120 = vector.load %arg4[%c0_34, %c0_35] : memref<128x128xf32, #tpu.memory_space<vmem>>, vector<128x128xf32>
    %cst_36 = arith.constant dense<0.000000e+00> : vector<128x128xf32>
    %121 = tpu.matmul %119, %120, %cst_36 {dimension_numbers = #tpu.dot_dimension_numbers<[1], [0], [0], [1], [0, 0, 1, 1], [], []>} : vector<128x128xf32>, vector<128x128xf32>, vector<128x128xf32> -> vector<128x128xf32>
    %c0_37 = arith.constant 0 : index
    %c0_38 = arith.constant 0 : index
    %122 = vector.load %arg5[%c0_37, %c0_38] : memref<1x128xf32, #tpu.memory_space<vmem>>, vector<1x128xf32>
    %123 = vector.broadcast %122 : vector<1x128xf32> to vector<128x128xf32>
    %124 = arith.addf %121, %123 : vector<128x128xf32>
    %cst_39 = arith.constant 0.000000e+00 : f32
    %125 = vector.broadcast %cst_39 : f32 to vector<128x128xf32>
    %126 = arith.maximumf %124, %125 : vector<128x128xf32>
    %127 = vector.shape_cast %126 : vector<128x128xf32> to vector<2x4x2x8x128xf32>
    %128 = vector.extract_strided_slice %127 {offsets = [0, 0, 0, 0, 0], sizes = [2, 4, 1, 8, 128], strides = [1, 1, 1, 1, 1]} : vector<2x4x2x8x128xf32> to vector<2x4x1x8x128xf32>
    %129 = vector.shape_cast %128 : vector<2x4x1x8x128xf32> to vector<2x4x8x128xf32>
    %130 = vector.extract_strided_slice %127 {offsets = [0, 0, 1, 0, 0], sizes = [2, 4, 1, 8, 128], strides = [1, 1, 1, 1, 1]} : vector<2x4x2x8x128xf32> to vector<2x4x1x8x128xf32>
    %131 = vector.shape_cast %130 : vector<2x4x1x8x128xf32> to vector<2x4x8x128xf32>
    %132 = arith.maximumf %129, %131 : vector<2x4x8x128xf32>
    %133 = vector.shape_cast %132 : vector<2x4x8x128xf32> to vector<64x128xf32>
    %c0_40 = arith.constant 0 : index
    %c0_41 = arith.constant 0 : index
    %134 = vector.load %arg7[%c0_40, %c0_41] : memref<256x128xf32, #tpu.memory_space<vmem>>, vector<64x128xf32>
    tpu.vector_store %arg7[%c0_40, %c0_41], %133 {strides = array<i32>} : memref<256x128xf32, #tpu.memory_space<vmem>>, vector<64x128xf32>,
    %c0_42 = arith.constant 0 : index
    %c0_43 = arith.constant 0 : index
    %135 = tpu.strided_load %arg7[%c0_42, %c0_43] {strides = array<i32: 2, 1>} : memref<256x128xf32, #tpu.memory_space<vmem>>, vector<32x128xf32>
    %c1_44 = arith.constant 1 : index
    %c0_45 = arith.constant 0 : index
    %136 = tpu.strided_load %arg7[%c1_44, %c0_45] {strides = array<i32: 2, 1>} : memref<256x128xf32, #tpu.memory_space<vmem>>, vector<32x128xf32>
    %137 = arith.maximumf %135, %136 : vector<32x128xf32>
    %138 = vector.shape_cast %137 : vector<32x128xf32> to vector<2x16x128xf32>
    %cst_46 = arith.constant dense<0.000000e+00> : vector<2x16xf32>
    %139 = vector.multi_reduction <add>, %138, %cst_46 [2] : vector<2x16x128xf32> to vector<2x16xf32>
    %cst_47 = arith.constant dense<0.000000e+00> : vector<2xf32>
    %140 = vector.multi_reduction <add>, %139, %cst_47 [1] : vector<2x16xf32> to vector<2xf32>
    %141 = vector.shape_cast %140 : vector<2xf32> to vector<2x1xf32>
    %cst_48 = arith.constant 3.906250e-03 : f32
    %142 = vector.broadcast %cst_48 : f32 to vector<2x1xf32>
    %143 = arith.mulf %141, %142 : vector<2x1xf32>
    %144 = math.tanh %143 : vector<2x1xf32>
    %cst_49 = arith.constant 1.500000e+00 : f32
    %145 = vector.broadcast %cst_49 : f32 to vector<2x1xf32>
    %146 = arith.mulf %145, %144 : vector<2x1xf32>
    %cst_50 = arith.constant dense<0xFF800000> : vector<1xf32>
    %147 = vector.multi_reduction <maximumf>, %146, %cst_50 [0] : vector<2x1xf32> to vector<1xf32>
    %148 = vector.shape_cast %147 : vector<1xf32> to vector<1x1xf32>
    %149 = vector.broadcast %148 : vector<1x1xf32> to vector<2x1xf32>
    %150 = arith.subf %146, %149 : vector<2x1xf32>
    %151 = math.exp %150 : vector<2x1xf32>
    %cst_51 = arith.constant dense<0.000000e+00> : vector<1xf32>
    %152 = vector.multi_reduction <add>, %151, %cst_51 [0] : vector<2x1xf32> to vector<1xf32>
    %153 = vector.shape_cast %152 : vector<1xf32> to vector<1x1xf32>
    %154 = vector.broadcast %153 : vector<1x1xf32> to vector<2x1xf32>
    %155 = arith.divf %151, %154 : vector<2x1xf32>
    %c0_52 = arith.constant 0 : index
    %c0_53 = arith.constant 0 : index
    %156 = vector.load %arg6[%c0_52, %c0_53] : memref<2x1xf32, #tpu.memory_space<vmem>>, vector<2x1xf32>
    tpu.vector_store %arg6[%c0_52, %c0_53], %155 {strides = array<i32>} : memref<2x1xf32, #tpu.memory_space<vmem>>, vector<2x1xf32>,
    return
  }
  func.func @transform_0(%arg0: i32) -> (i32, i32, i32, i32) {
    %c0_i32 = arith.constant 0 : i32
    %c0_i32_0 = arith.constant 0 : i32
    %c0_i32_1 = arith.constant 0 : i32
    %c0_i32_2 = arith.constant 0 : i32
    %c0_i32_3 = arith.constant 0 : i32
    return %c0_i32, %c0_i32_0, %c0_i32_1, %c0_i32_2 : i32, i32, i32, i32
  }
  func.func @transform_1(%arg0: i32) -> (i32, i32) {
    %c0_i32 = arith.constant 0 : i32
    %c0_i32_0 = arith.constant 0 : i32
    %c0_i32_1 = arith.constant 0 : i32
    return %c0_i32, %c0_i32_0 : i32, i32
  }
  func.func @transform_2(%arg0: i32) -> (i32, i32) {
    %c0_i32 = arith.constant 0 : i32
    %c0_i32_0 = arith.constant 0 : i32
    %c0_i32_1 = arith.constant 0 : i32
    return %c0_i32, %c0_i32_0 : i32, i32
  }
  func.func @transform_3(%arg0: i32) -> (i32, i32) {
    %c0_i32 = arith.constant 0 : i32
    %c0_i32_0 = arith.constant 0 : i32
    %c0_i32_1 = arith.constant 0 : i32
    return %c0_i32, %c0_i32_0 : i32, i32
  }
  func.func @transform_4(%arg0: i32) -> (i32, i32) {
    %c0_i32 = arith.constant 0 : i32
    %c0_i32_0 = arith.constant 0 : i32
    %c0_i32_1 = arith.constant 0 : i32
    return %c0_i32, %c0_i32_0 : i32, i32
  }
  func.func @transform_5(%arg0: i32) -> (i32, i32) {
    %c0_i32 = arith.constant 0 : i32
    %c0_i32_0 = arith.constant 0 : i32
    %c0_i32_1 = arith.constant 0 : i32
    return %c0_i32, %c0_i32_0 : i32, i32
  }
}

</mosaic_0001>

<llo_original>
// kernel: vgg_forward.1
$region0: #{vgg_forward.1}
  #allocation0 [shape = 'u32[]', space=smem, size = 0x4, offset = 0x4, fixed_abs, tag = 'smem constant byte address 0x4 - core index']
  #allocation1 [shape = 'u32[144,128]{1,0:T(1,128)}', space=vmem, size = 0x12000, scoped, tag = 'internal scratch']
  #allocation2 [shape = 'f32[256,128]{1,0:T(8,128)}', space=vmem, size = 0x20000, scoped, tag = 'scratch operand']
  %s0 = inlined_call_operand.vmem [shape: f32[2,16,16,4], index: 0, kind: input, shape index: {}]
  %s1 = inlined_call_operand.vmem [shape: f32[128,128], index: 1, kind: input, shape index: {}]
  %s2 = inlined_call_operand.vmem [shape: f32[1,128], index: 2, kind: input, shape index: {}]
  %s3 = inlined_call_operand.vmem [shape: f32[128,128], index: 3, kind: input, shape index: {}]
  %s4 = inlined_call_operand.vmem [shape: f32[1,128], index: 4, kind: input, shape index: {}]
  %s5 = inlined_call_operand.vmem [shape: f32[2,1], index: 5, kind: output, shape index: {}]
  %s6 = sld [smem:[#allocation0]]
  $region30: #{vgg_forward.1} parent=0
    _
  %s8 = ssub.s32 1, %s6
  %s9 = scalar_select 0, %s8, %s6
  // Predicated region
  $region2: #{vgg_forward.1} parent=0 // pred_check
    _
  $region3: #{vgg_forward.1} parent=0 // pred_check_branch
    %11 = sbr.rel (0) target = $region5
  $region4: #{vgg_forward.1} parent=0 // pred_region
    _
  $region5: #{vgg_forward.1} parent=0 // pred_fallthru
    _
  // Predicated region
  $region6: #{vgg_forward.1} parent=0 // pred_check
    _
  $region7: #{vgg_forward.1} parent=0 // pred_check_branch
    %13 = sbr.rel (0) target = $region9
  $region8: #{vgg_forward.1} parent=0 // pred_region
    _
  $region9: #{vgg_forward.1} parent=0 // pred_fallthru
    _
  // Predicated region
  $region10: #{vgg_forward.1} parent=0 // pred_check
    _
  $region11: #{vgg_forward.1} parent=0 // pred_check_branch
    %15 = sbr.rel (0) target = $region13
  $region12: #{vgg_forward.1} parent=0 // pred_region
    _
  $region13: #{vgg_forward.1} parent=0 // pred_fallthru
    _
  // Predicated region
  $region14: #{vgg_forward.1} parent=0 // pred_check
    _
  $region15: #{vgg_forward.1} parent=0 // pred_check_branch
    %17 = sbr.rel (0) target = $region17
  $region16: #{vgg_forward.1} parent=0 // pred_region
    _
  $region17: #{vgg_forward.1} parent=0 // pred_fallthru
    _
  // Predicated region
  $region18: #{vgg_forward.1} parent=0 // pred_check
    _
  $region19: #{vgg_forward.1} parent=0 // pred_check_branch
    %19 = sbr.rel (0) target = $region21
  $region20: #{vgg_forward.1} parent=0 // pred_region
    _
  $region21: #{vgg_forward.1} parent=0 // pred_fallthru
    _
  %v20 = vld [vmem:[%s0] sm:$0xff]
  %v21 = vld [vmem:[%s0 + $0x8] sm:$0xff]
  %v22 = vld [vmem:[%s0 + $0x10] sm:$0xff]
  %v23 = vld [vmem:[%s0 + $0x18] sm:$0xff]
  %v24 = vld [vmem:[%s0 + $0x20] sm:$0xff]
  %v25 = vld [vmem:[%s0 + $0x28] sm:$0xff]
  %v26 = vld [vmem:[%s0 + $0x30] sm:$0xff]
  %v27 = vld [vmem:[%s0 + $0x38] sm:$0xff]
  %v28 = vld [vmem:[%s0 + $0x40] sm:$0xff]
  %v29 = vld [vmem:[%s0 + $0x48] sm:$0xff]
  %v30 = vld [vmem:[%s0 + $0x50] sm:$0xff]
  %v31 = vld [vmem:[%s0 + $0x58] sm:$0xff]
  %v32 = vld [vmem:[%s0 + $0x60] sm:$0xff]
  %v33 = vld [vmem:[%s0 + $0x68] sm:$0xff]
  %v34 = vld [vmem:[%s0 + $0x70] sm:$0xff]
  %v35 = vld [vmem:[%s0 + $0x78] sm:$0xff]
  %v36 = vld [vmem:[%s0 + $0x80] sm:$0xff]
  %v37 = vld [vmem:[%s0 + $0x88] sm:$0xff]
  %v38 = vld [vmem:[%s0 + $0x90] sm:$0xff]
  %v39 = vld [vmem:[%s0 + $0x98] sm:$0xff]
  %v40 = vld [vmem:[%s0 + $0xa0] sm:$0xff]
  %v41 = vld [vmem:[%s0 + $0xa8] sm:$0xff]
  %v42 = vld [vmem:[%s0 + $0xb0] sm:$0xff]
  %v43 = vld [vmem:[%s0 + $0xb8] sm:$0xff]
  %v44 = vld [vmem:[%s0 + $0xc0] sm:$0xff]
  %v45 = vld [vmem:[%s0 + $0xc8] sm:$0xff]
  %v46 = vld [vmem:[%s0 + $0xd0] sm:$0xff]
  %v47 = vld [vmem:[%s0 + $0xd8] sm:$0xff]
  %v48 = vld [vmem:[%s0 + $0xe0] sm:$0xff]
  %v49 = vld [vmem:[%s0 + $0xe8] sm:$0xff]
  %v50 = vld [vmem:[%s0 + $0xf0] sm:$0xff]
  %v51 = vld [vmem:[%s0 + $0xf8] sm:$0xff]
  %v52 = vld [vmem:[%s0 + $0x100] sm:$0xff]
  %v53 = vld [vmem:[%s0 + $0x108] sm:$0xff]
  %v54 = vld [vmem:[%s0 + $0x110] sm:$0xff]
  %v55 = vld [vmem:[%s0 + $0x118] sm:$0xff]
  %v56 = vld [vmem:[%s0 + $0x120] sm:$0xff]
  %v57 = vld [vmem:[%s0 + $0x128] sm:$0xff]
  %v58 = vld [vmem:[%s0 + $0x130] sm:$0xff]
  %v59 = vld [vmem:[%s0 + $0x138] sm:$0xff]
  %v60 = vld [vmem:[%s0 + $0x140] sm:$0xff]
  %v61 = vld [vmem:[%s0 + $0x148] sm:$0xff]
  %v62 = vld [vmem:[%s0 + $0x150] sm:$0xff]
  %v63 = vld [vmem:[%s0 + $0x158] sm:$0xff]
  %v64 = vld [vmem:[%s0 + $0x160] sm:$0xff]
  %v65 = vld [vmem:[%s0 + $0x168] sm:$0xff]
  %v66 = vld [vmem:[%s0 + $0x170] sm:$0xff]
  %v67 = vld [vmem:[%s0 + $0x178] sm:$0xff]
  %v68 = vld [vmem:[%s0 + $0x180] sm:$0xff]
  %v69 = vld [vmem:[%s0 + $0x188] sm:$0xff]
  %v70 = vld [vmem:[%s0 + $0x190] sm:$0xff]
  %v71 = vld [vmem:[%s0 + $0x198] sm:$0xff]
  %v72 = vld [vmem:[%s0 + $0x1a0] sm:$0xff]
  %v73 = vld [vmem:[%s0 + $0x1a8] sm:$0xff]
  %v74 = vld [vmem:[%s0 + $0x1b0] sm:$0xff]
  %v75 = vld [vmem:[%s0 + $0x1b8] sm:$0xff]
  %v76 = vld [vmem:[%s0 + $0x1c0] sm:$0xff]
  %v77 = vld [vmem:[%s0 + $0x1c8] sm:$0xff]
  %v78 = vld [vmem:[%s0 + $0x1d0] sm:$0xff]
  %v79 = vld [vmem:[%s0 + $0x1d8] sm:$0xff]
  %v80 = vld [vmem:[%s0 + $0x1e0] sm:$0xff]
  %v81 = vld [vmem:[%s0 + $0x1e8] sm:$0xff]
  %v82 = vld [vmem:[%s0 + $0x1f0] sm:$0xff]
  %v83 = vld [vmem:[%s0 + $0x1f8] sm:$0xff]
  %vm84 = vcmask 31744
  %v85 = vsel %vm84, %v20, 0.0
  %v86 = vsel %vm84, %v21, 0.0
  %v87 = vsel %vm84, %v22, 0.0
  %v88 = vsel %vm84, %v23, 0.0
  %v89 = vsel %vm84, %v24, 0.0
  %v90 = vsel %vm84, %v25, 0.0
  %v91 = vsel %vm84, %v26, 0.0
  %v92 = vsel %vm84, %v27, 0.0
  %v93 = vsel %vm84, %v28, 0.0
  %v94 = vsel %vm84, %v29, 0.0
  %v95 = vsel %vm84, %v30, 0.0
  %v96 = vsel %vm84, %v31, 0.0
  %v97 = vsel %vm84, %v32, 0.0
  %v98 = vsel %vm84, %v33, 0.0
  %v99 = vsel %vm84, %v34, 0.0
  %v100 = vsel %vm84, %v35, 0.0
  %v101 = vsel %vm84, %v36, 0.0
  %v102 = vsel %vm84, %v37, 0.0
  %v103 = vsel %vm84, %v38, 0.0
  %v104 = vsel %vm84, %v39, 0.0
  %v105 = vsel %vm84, %v40, 0.0
  %v106 = vsel %vm84, %v41, 0.0
  %v107 = vsel %vm84, %v42, 0.0
  %v108 = vsel %vm84, %v43, 0.0
  %v109 = vsel %vm84, %v44, 0.0
  %v110 = vsel %vm84, %v45, 0.0
  %v111 = vsel %vm84, %v46, 0.0
  %v112 = vsel %vm84, %v47, 0.0
  %v113 = vsel %vm84, %v48, 0.0
  %v114 = vsel %vm84, %v49, 0.0
  %v115 = vsel %vm84, %v50, 0.0
  %v116 = vsel %vm84, %v51, 0.0
  %v117 = vsel %vm84, %v52, 0.0
  %v118 = vsel %vm84, %v53, 0.0
  %v119 = vsel %vm84, %v54, 0.0
  %v120 = vsel %vm84, %v55, 0.0
  %v121 = vsel %vm84, %v56, 0.0
  %v122 = vsel %vm84, %v57, 0.0
  %v123 = vsel %vm84, %v58, 0.0
  %v124 = vsel %vm84, %v59, 0.0
  %v125 = vsel %vm84, %v60, 0.0
  %v126 = vsel %vm84, %v61, 0.0
  %v127 = vsel %vm84, %v62, 0.0
  %v128 = vsel %vm84, %v63, 0.0
  %v129 = vsel %vm84, %v64, 0.0
  %v130 = vsel %vm84, %v65, 0.0
  %v131 = vsel %vm84, %v66, 0.0
  %v132 = vsel %vm84, %v67, 0.0
  %v133 = vsel %vm84, %v68, 0.0
  %v134 = vsel %vm84, %v69, 0.0
  %v135 = vsel %vm84, %v70, 0.0
  %v136 = vsel %vm84, %v71, 0.0
  %v137 = vsel %vm84, %v72, 0.0
  %v138 = vsel %vm84, %v73, 0.0
  %v139 = vsel %vm84, %v74, 0.0
  %v140 = vsel %vm84, %v75, 0.0
  %v141 = vsel %vm84, %v76, 0.0
  %v142 = vsel %vm84, %v77, 0.0
  %v143 = vsel %vm84, %v78, 0.0
  %v144 = vsel %vm84, %v79, 0.0
  %v145 = vsel %vm84, %v80, 0.0
  %v146 = vsel %vm84, %v81, 0.0
  %v147 = vsel %vm84, %v82, 0.0
  %v148 = vsel %vm84, %v83, 0.0
  %vm213 = vcmask 1040384
  %v214 = vrot.slane %v85, 7
  %v215 = vrot.slane %v86, 7
  %v216 = vsel %vm213, %v214, %v215
  %v217 = vrot.slane %v87, 7
  %v218 = vrot.slane %v88, 7
  %v219 = vsel %vm213, %v217, %v218
  %v220 = vrot.slane %v89, 7
  %v221 = vrot.slane %v90, 7
  %v222 = vsel %vm213, %v220, %v221
  %v223 = vrot.slane %v91, 7
  %v224 = vrot.slane %v92, 7
  %v225 = vsel %vm213, %v223, %v224
  %v226 = vrot.slane %v93, 7
  %v227 = vrot.slane %v94, 7
  %v228 = vsel %vm213, %v226, %v227
  %v229 = vrot.slane %v95, 7
  %v230 = vrot.slane %v96, 7
  %v231 = vsel %vm213, %v229, %v230
  %v232 = vrot.slane %v97, 7
  %v233 = vrot.slane %v98, 7
  %v234 = vsel %vm213, %v232, %v233
  %v235 = vrot.slane %v99, 7
  %v236 = vrot.slane %v100, 7
  %v237 = vsel %vm213, %v235, %v236
  %v238 = vrot.slane %v101, 7
  %v239 = vrot.slane %v102, 7
  %v240 = vsel %vm213, %v238, %v239
  %v241 = vrot.slane %v103, 7
  %v242 = vrot.slane %v104, 7
  %v243 = vsel %vm213, %v241, %v242
  %v244 = vrot.slane %v105, 7
  %v245 = vrot.slane %v106, 7
  %v246 = vsel %vm213, %v244, %v245
  %v247 = vrot.slane %v107, 7
  %v248 = vrot.slane %v108, 7
  %v249 = vsel %vm213, %v247, %v248
  %v250 = vrot.slane %v109, 7
  %v251 = vrot.slane %v110, 7
  %v252 = vsel %vm213, %v250, %v251
  %v253 = vrot.slane %v111, 7
  %v254 = vrot.slane %v112, 7
  %v255 = vsel %vm213, %v253, %v254
  %v256 = vrot.slane %v113, 7
  %v257 = vrot.slane %v114, 7
  %v258 = vsel %vm213, %v256, %v257
  %v259 = vrot.slane %v115, 7
  %v260 = vrot.slane %v116, 7
  %v261 = vsel %vm213, %v259, %v260
  %v262 = vrot.slane %v117, 7
  %v263 = vrot.slane %v118, 7
  %v264 = vsel %vm213, %v262, %v263
  %v265 = vrot.slane %v119, 7
  %v266 = vrot.slane %v120, 7
  %v267 = vsel %vm213, %v265, %v266
  %v268 = vrot.slane %v121, 7
  %v269 = vrot.slane %v122, 7
  %v270 = vsel %vm213, %v268, %v269
  %v271 = vrot.slane %v123, 7
  %v272 = vrot.slane %v124, 7
  %v273 = vsel %vm213, %v271, %v272
  %v274 = vrot.slane %v125, 7
  %v275 = vrot.slane %v126, 7
  %v276 = vsel %vm213, %v274, %v275
  %v277 = vrot.slane %v127, 7
  %v278 = vrot.slane %v128, 7
  %v279 = vsel %vm213, %v277, %v278
  %v280 = vrot.slane %v129, 7
  %v281 = vrot.slane %v130, 7
  %v282 = vsel %vm213, %v280, %v281
  %v283 = vrot.slane %v131, 7
  %v284 = vrot.slane %v132, 7
  %v285 = vsel %vm213, %v283, %v284
  %v286 = vrot.slane %v133, 7
  %v287 = vrot.slane %v134, 7
  %v288 = vsel %vm213, %v286, %v287
  %v289 = vrot.slane %v135, 7
  %v290 = vrot.slane %v136, 7
  %v291 = vsel %vm213, %v289, %v290
  %v292 = vrot.slane %v137, 7
  %v293 = vrot.slane %v138, 7
  %v294 = vsel %vm213, %v292, %v293
  %v295 = vrot.slane %v139, 7
  %v296 = vrot.slane %v140, 7
  %v297 = vsel %vm213, %v295, %v296
  %v298 = vrot.slane %v141, 7
  %v299 = vrot.slane %v142, 7
  %v300 = vsel %vm213, %v298, %v299
  %v301 = vrot.slane %v143, 7
  %v302 = vrot.slane %v144, 7
  %v303 = vsel %vm213, %v301, %v302
  %v304 = vrot.slane %v145, 7
  %v305 = vrot.slane %v146, 7
  %v306 = vsel %vm213, %v304, %v305
  %v307 = vrot.slane %v147, 7
  %v308 = vrot.slane %v148, 7
  %v309 = vsel %vm213, %v307, %v308
  %v374 = vsel %vm213, 0.0, %v214
  %v375 = vsel %vm213, 0.0, %v217
  %v376 = vsel %vm213, 0.0, %v220
  %v377 = vsel %vm213, 0.0, %v223
  %v378 = vsel %vm213, 0.0, %v226
  %v379 = vsel %vm213, 0.0, %v229
  %v380 = vsel %vm213, 0.0, %v232
  %v381 = vsel %vm213, 0.0, %v235
  %v382 = vsel %vm213, 0.0, %v238
  %v383 = vsel %vm213, 0.0, %v241
  %v384 = vsel %vm213, 0.0, %v244
  %v385 = vsel %vm213, 0.0, %v247
  %v386 = vsel %vm213, 0.0, %v250
  %v387 = vsel %vm213, 0.0, %v253
  %v388 = vsel %vm213, 0.0, %v256
  %v389 = vsel %vm213, 0.0, %v259
  %v390 = vsel %vm213, 0.0, %v262
  %v391 = vsel %vm213, 0.0, %v265
  %v392 = vsel %vm213, 0.0, %v268
  %v393 = vsel %vm213, 0.0, %v271
  %v394 = vsel %vm213, 0.0, %v274
  %v395 = vsel %vm213, 0.0, %v277
  %v396 = vsel %vm213, 0.0, %v280
  %v397 = vsel %vm213, 0.0, %v283
  %v398 = vsel %vm213, 0.0, %v286
  %v399 = vsel %vm213, 0.0, %v289
  %v400 = vsel %vm213, 0.0, %v292
  %v401 = vsel %vm213, 0.0, %v295
  %v402 = vsel %vm213, 0.0, %v298
  %v403 = vsel %vm213, 0.0, %v301
  %v404 = vsel %vm213, 0.0, %v304
  %v405 = vsel %vm213, 0.0, %v307
  %vm406 = vcmask 1046528
  %v407 = vrot.slane %v85, 1
  %v408 = vrot.slane %v86, 1
  %v409 = vsel %vm406, %v407, %v408
  %v410 = vrot.slane %v87, 1
  %v411 = vrot.slane %v88, 1
  %v412 = vsel %vm406, %v410, %v411
  %v413 = vrot.slane %v89, 1
  %v414 = vrot.slane %v90, 1
  %v415 = vsel %vm406, %v413, %v414
  %v416 = vrot.slane %v91, 1
  %v417 = vrot.slane %v92, 1
  %v418 = vsel %vm406, %v416, %v417
  %v419 = vrot.slane %v93, 1
  %v420 = vrot.slane %v94, 1
  %v421 = vsel %vm406, %v419, %v420
  %v422 = vrot.slane %v95, 1
  %v423 = vrot.slane %v96, 1
  %v424 = vsel %vm406, %v422, %v423
  %v425 = vrot.slane %v97, 1
  %v426 = vrot.slane %v98, 1
  %v427 = vsel %vm406, %v425, %v426
  %v428 = vrot.slane %v99, 1
  %v429 = vrot.slane %v100, 1
  %v430 = vsel %vm406, %v428, %v429
  %v431 = vrot.slane %v101, 1
  %v432 = vrot.slane %v102, 1
  %v433 = vsel %vm406, %v431, %v432
  %v434 = vrot.slane %v103, 1
  %v435 = vrot.slane %v104, 1
  %v436 = vsel %vm406, %v434, %v435
  %v437 = vrot.slane %v105, 1
  %v438 = vrot.slane %v106, 1
  %v439 = vsel %vm406, %v437, %v438
  %v440 = vrot.slane %v107, 1
  %v441 = vrot.slane %v108, 1
  %v442 = vsel %vm406, %v440, %v441
  %v443 = vrot.slane %v109, 1
  %v444 = vrot.slane %v110, 1
  %v445 = vsel %vm406, %v443, %v444
  %v446 = vrot.slane %v111, 1
  %v447 = vrot.slane %v112, 1
  %v448 = vsel %vm406, %v446, %v447
  %v449 = vrot.slane %v113, 1
  %v450 = vrot.slane %v114, 1
  %v451 = vsel %vm406, %v449, %v450
  %v452 = vrot.slane %v115, 1
  %v453 = vrot.slane %v116, 1
  %v454 = vsel %vm406, %v452, %v453
  %v455 = vrot.slane %v117, 1
  %v456 = vrot.slane %v118, 1
  %v457 = vsel %vm406, %v455, %v456
  %v458 = vrot.slane %v119, 1
  %v459 = vrot.slane %v120, 1
  %v460 = vsel %vm406, %v458, %v459
  %v461 = vrot.slane %v121, 1
  %v462 = vrot.slane %v122, 1
  %v463 = vsel %vm406, %v461, %v462
  %v464 = vrot.slane %v123, 1
  %v465 = vrot.slane %v124, 1
  %v466 = vsel %vm406, %v464, %v465
  %v467 = vrot.slane %v125, 1
  %v468 = vrot.slane %v126, 1
  %v469 = vsel %vm406, %v467, %v468
  %v470 = vrot.slane %v127, 1
  %v471 = vrot.slane %v128, 1
  %v472 = vsel %vm406, %v470, %v471
  %v473 = vrot.slane %v129, 1
  %v474 = vrot.slane %v130, 1
  %v475 = vsel %vm406, %v473, %v474
  %v476 = vrot.slane %v131, 1
  %v477 = vrot.slane %v132, 1
  %v478 = vsel %vm406, %v476, %v477
  %v479 = vrot.slane %v133, 1
  %v480 = vrot.slane %v134, 1
  %v481 = vsel %vm406, %v479, %v480
  %v482 = vrot.slane %v135, 1
  %v483 = vrot.slane %v136, 1
  %v484 = vsel %vm406, %v482, %v483
  %v485 = vrot.slane %v137, 1
  %v486 = vrot.slane %v138, 1
  %v487 = vsel %vm406, %v485, %v486
  %v488 = vrot.slane %v139, 1
  %v489 = vrot.slane %v140, 1
  %v490 = vsel %vm406, %v488, %v489
  %v491 = vrot.slane %v141, 1
  %v492 = vrot.slane %v142, 1
  %v493 = vsel %vm406, %v491, %v492
  %v494 = vrot.slane %v143, 1
  %v495 = vrot.slane %v144, 1
  %v496 = vsel %vm406, %v494, %v495
  %v497 = vrot.slane %v145, 1
  %v498 = vrot.slane %v146, 1
  %v499 = vsel %vm406, %v497, %v498
  %v500 = vrot.slane %v147, 1
  %v501 = vrot.slane %v148, 1
  %v502 = vsel %vm406, %v500, %v501
  %v567 = vsel %vm406, %v408, 0.0
  %v568 = vsel %vm406, %v411, 0.0
  %v569 = vsel %vm406, %v414, 0.0
  %v570 = vsel %vm406, %v417, 0.0
  %v571 = vsel %vm406, %v420, 0.0
  %v572 = vsel %vm406, %v423, 0.0
  %v573 = vsel %vm406, %v426, 0.0
  %v574 = vsel %vm406, %v429, 0.0
  %v575 = vsel %vm406, %v432, 0.0
  %v576 = vsel %vm406, %v435, 0.0
  %v577 = vsel %vm406, %v438, 0.0
  %v578 = vsel %vm406, %v441, 0.0
  %v579 = vsel %vm406, %v444, 0.0
  %v580 = vsel %vm406, %v447, 0.0
  %v581 = vsel %vm406, %v450, 0.0
  %v582 = vsel %vm406, %v453, 0.0
  %v583 = vsel %vm406, %v456, 0.0
  %v584 = vsel %vm406, %v459, 0.0
  %v585 = vsel %vm406, %v462, 0.0
  %v586 = vsel %vm406, %v465, 0.0
  %v587 = vsel %vm406, %v468, 0.0
  %v588 = vsel %vm406, %v471, 0.0
  %v589 = vsel %vm406, %v474, 0.0
  %v590 = vsel %vm406, %v477, 0.0
  %v591 = vsel %vm406, %v480, 0.0
  %v592 = vsel %vm406, %v483, 0.0
  %v593 = vsel %vm406, %v486, 0.0
  %v594 = vsel %vm406, %v489, 0.0
  %v595 = vsel %vm406, %v492, 0.0
  %v596 = vsel %vm406, %v495, 0.0
  %v597 = vsel %vm406, %v498, 0.0
  %v598 = vsel %vm406, %v501, 0.0
  %599 = vrot.lane.b32.xlu0 0.0, 4
  %v600 = vpop.permute.xlu0 %599
  %601 = vrot.lane.b32.xlu0 %v85, 4
  %v602 = vpop.permute.xlu0 %601
  %603 = vrot.lane.b32.xlu0 %v86, 4
  %v604 = vpop.permute.xlu0 %603
  %605 = vrot.lane.b32.xlu0 %v87, 4
  %v606 = vpop.permute.xlu0 %605
  %607 = vrot.lane.b32.xlu0 %v88, 4
  %v608 = vpop.permute.xlu0 %607
  %609 = vrot.lane.b32.xlu0 %v89, 4
  %v610 = vpop.permute.xlu0 %609
  %611 = vrot.lane.b32.xlu0 %v90, 4
  %v612 = vpop.permute.xlu0 %611
  %613 = vrot.lane.b32.xlu0 %v91, 4
  %v614 = vpop.permute.xlu0 %613
  %615 = vrot.lane.b32.xlu0 %v92, 4
  %v616 = vpop.permute.xlu0 %615
  %617 = vrot.lane.b32.xlu0 %v93, 4
  %v618 = vpop.permute.xlu0 %617
  %619 = vrot.lane.b32.xlu0 %v94, 4
  %v620 = vpop.permute.xlu0 %619
  %621 = vrot.lane.b32.xlu0 %v95, 4
  %v622 = vpop.permute.xlu0 %621
  %623 = vrot.lane.b32.xlu0 %v96, 4
  %v624 = vpop.permute.xlu0 %623
  %625 = vrot.lane.b32.xlu0 %v97, 4
  %v626 = vpop.permute.xlu0 %625
  %627 = vrot.lane.b32.xlu0 %v98, 4
  %v628 = vpop.permute.xlu0 %627
  %629 = vrot.lane.b32.xlu0 %v99, 4
  %v630 = vpop.permute.xlu0 %629
  %631 = vrot.lane.b32.xlu0 %v100, 4
  %v632 = vpop.permute.xlu0 %631
  %633 = vrot.lane.b32.xlu0 %v101, 4
  %v634 = vpop.permute.xlu0 %633
  %635 = vrot.lane.b32.xlu0 %v102, 4
  %v636 = vpop.permute.xlu0 %635
  %637 = vrot.lane.b32.xlu0 %v103, 4
  %v638 = vpop.permute.xlu0 %637
  %639 = vrot.lane.b32.xlu0 %v104, 4
  %v640 = vpop.permute.xlu0 %639
  %641 = vrot.lane.b32.xlu0 %v105, 4
  %v642 = vpop.permute.xlu0 %641
  %643 = vrot.lane.b32.xlu0 %v106, 4
  %v644 = vpop.permute.xlu0 %643
  %645 = vrot.lane.b32.xlu0 %v107, 4
  %v646 = vpop.permute.xlu0 %645
  %647 = vrot.lane.b32.xlu0 %v108, 4
  %v648 = vpop.permute.xlu0 %647
  %649 = vrot.lane.b32.xlu0 %v109, 4
  %v650 = vpop.permute.xlu0 %649
  %651 = vrot.lane.b32.xlu0 %v110, 4
  %v652 = vpop.permute.xlu0 %651
  %653 = vrot.lane.b32.xlu0 %v111, 4
  %v654 = vpop.permute.xlu0 %653
  %655 = vrot.lane.b32.xlu0 %v112, 4
  %v656 = vpop.permute.xlu0 %655
  %657 = vrot.lane.b32.xlu0 %v113, 4
  %v658 = vpop.permute.xlu0 %657
  %659 = vrot.lane.b32.xlu0 %v114, 4
  %v660 = vpop.permute.xlu0 %659
  %661 = vrot.lane.b32.xlu0 %v117, 4
  %v662 = vpop.permute.xlu0 %661
  %663 = vrot.lane.b32.xlu0 %v118, 4
  %v664 = vpop.permute.xlu0 %663
  %665 = vrot.lane.b32.xlu0 %v119, 4
  %v666 = vpop.permute.xlu0 %665
  %667 = vrot.lane.b32.xlu0 %v120, 4
  %v668 = vpop.permute.xlu0 %667
  %669 = vrot.lane.b32.xlu0 %v121, 4
  %v670 = vpop.permute.xlu0 %669
  %671 = vrot.lane.b32.xlu0 %v122, 4
  %v672 = vpop.permute.xlu0 %671
  %673 = vrot.lane.b32.xlu0 %v123, 4
  %v674 = vpop.permute.xlu0 %673
  %675 = vrot.lane.b32.xlu0 %v124, 4
  %v676 = vpop.permute.xlu0 %675
  %677 = vrot.lane.b32.xlu0 %v125, 4
  %v678 = vpop.permute.xlu0 %677
  %679 = vrot.lane.b32.xlu0 %v126, 4
  %v680 = vpop.permute.xlu0 %679
  %681 = vrot.lane.b32.xlu0 %v127, 4
  %v682 = vpop.permute.xlu0 %681
  %683 = vrot.lane.b32.xlu0 %v128, 4
  %v684 = vpop.permute.xlu0 %683
  %685 = vrot.lane.b32.xlu0 %v129, 4
  %v686 = vpop.permute.xlu0 %685
  %687 = vrot.lane.b32.xlu0 %v130, 4
  %v688 = vpop.permute.xlu0 %687
  %689 = vrot.lane.b32.xlu0 %v131, 4
  %v690 = vpop.permute.xlu0 %689
  %691 = vrot.lane.b32.xlu0 %v132, 4
  %v692 = vpop.permute.xlu0 %691
  %693 = vrot.lane.b32.xlu0 %v133, 4
  %v694 = vpop.permute.xlu0 %693
  %695 = vrot.lane.b32.xlu0 %v134, 4
  %v696 = vpop.permute.xlu0 %695
  %697 = vrot.lane.b32.xlu0 %v135, 4
  %v698 = vpop.permute.xlu0 %697
  %699 = vrot.lane.b32.xlu0 %v136, 4
  %v700 = vpop.permute.xlu0 %699
  %701 = vrot.lane.b32.xlu0 %v137, 4
  %v702 = vpop.permute.xlu0 %701
  %703 = vrot.lane.b32.xlu0 %v138, 4
  %v704 = vpop.permute.xlu0 %703
  %705 = vrot.lane.b32.xlu0 %v139, 4
  %v706 = vpop.permute.xlu0 %705
  %707 = vrot.lane.b32.xlu0 %v140, 4
  %v708 = vpop.permute.xlu0 %707
  %709 = vrot.lane.b32.xlu0 %v141, 4
  %v710 = vpop.permute.xlu0 %709
  %711 = vrot.lane.b32.xlu0 %v142, 4
  %v712 = vpop.permute.xlu0 %711
  %713 = vrot.lane.b32.xlu0 %v143, 4
  %v714 = vpop.permute.xlu0 %713
  %715 = vrot.lane.b32.xlu0 %v144, 4
  %v716 = vpop.permute.xlu0 %715
  %717 = vrot.lane.b32.xlu0 %v145, 4
  %v718 = vpop.permute.xlu0 %717
  %719 = vrot.lane.b32.xlu0 %v146, 4
  %v720 = vpop.permute.xlu0 %719
  %v721 = vadd.f32 %v600, 0.0
  %v722 = vadd.f32 %v374, %v602
  %v723 = vadd.f32 %v216, %v604
  %v724 = vadd.f32 %v375, %v606
  %v725 = vadd.f32 %v219, %v608
  %v726 = vadd.f32 %v376, %v610
  %v727 = vadd.f32 %v222, %v612
  %v728 = vadd.f32 %v377, %v614
  %v729 = vadd.f32 %v225, %v616
  %v730 = vadd.f32 %v378, %v618
  %v731 = vadd.f32 %v228, %v620
  %v732 = vadd.f32 %v379, %v622
  %v733 = vadd.f32 %v231, %v624
  %v734 = vadd.f32 %v380, %v626
  %v735 = vadd.f32 %v234, %v628
  %v736 = vadd.f32 %v381, %v630
  %v737 = vadd.f32 %v237, %v632
  %v738 = vadd.f32 %v382, %v634
  %v739 = vadd.f32 %v240, %v636
  %v740 = vadd.f32 %v383, %v638
  %v741 = vadd.f32 %v243, %v640
  %v742 = vadd.f32 %v384, %v642
  %v743 = vadd.f32 %v246, %v644
  %v744 = vadd.f32 %v385, %v646
  %v745 = vadd.f32 %v249, %v648
  %v746 = vadd.f32 %v386, %v650
  %v747 = vadd.f32 %v252, %v652
  %v748 = vadd.f32 %v387, %v654
  %v749 = vadd.f32 %v255, %v656
  %v750 = vadd.f32 %v388, %v658
  %v751 = vadd.f32 %v258, %v660
  %v752 = vadd.f32 %v390, %v662
  %v753 = vadd.f32 %v264, %v664
  %v754 = vadd.f32 %v391, %v666
  %v755 = vadd.f32 %v267, %v668
  %v756 = vadd.f32 %v392, %v670
  %v757 = vadd.f32 %v270, %v672
  %v758 = vadd.f32 %v393, %v674
  %v759 = vadd.f32 %v273, %v676
  %v760 = vadd.f32 %v394, %v678
  %v761 = vadd.f32 %v276, %v680
  %v762 = vadd.f32 %v395, %v682
  %v763 = vadd.f32 %v279, %v684
  %v764 = vadd.f32 %v396, %v686
  %v765 = vadd.f32 %v282, %v688
  %v766 = vadd.f32 %v397, %v690
  %v767 = vadd.f32 %v285, %v692
  %v768 = vadd.f32 %v398, %v694
  %v769 = vadd.f32 %v288, %v696
  %v770 = vadd.f32 %v399, %v698
  %v771 = vadd.f32 %v291, %v700
  %v772 = vadd.f32 %v400, %v702
  %v773 = vadd.f32 %v294, %v704
  %v774 = vadd.f32 %v401, %v706
  %v775 = vadd.f32 %v297, %v708
  %v776 = vadd.f32 %v402, %v710
  %v777 = vadd.f32 %v300, %v712
  %v778 = vadd.f32 %v403, %v714
  %v779 = vadd.f32 %v303, %v716
  %v780 = vadd.f32 %v404, %v718
  %v781 = vadd.f32 %v306, %v720
  %782 = vrot.lane.b32.xlu0 0.0, 8
  %v783 = vpop.permute.xlu0 %782
  %784 = vrot.lane.b32.xlu0 %v409, 8
  %v785 = vpop.permute.xlu0 %784
  %786 = vrot.lane.b32.xlu0 %v567, 8
  %v787 = vpop.permute.xlu0 %786
  %788 = vrot.lane.b32.xlu0 %v412, 8
  %v789 = vpop.permute.xlu0 %788
  %790 = vrot.lane.b32.xlu0 %v568, 8
  %v791 = vpop.permute.xlu0 %790
  %792 = vrot.lane.b32.xlu0 %v415, 8
  %v793 = vpop.permute.xlu0 %792
  %794 = vrot.lane.b32.xlu0 %v569, 8
  %v795 = vpop.permute.xlu0 %794
  %796 = vrot.lane.b32.xlu0 %v418, 8
  %v797 = vpop.permute.xlu0 %796
  %798 = vrot.lane.b32.xlu0 %v570, 8
  %v799 = vpop.permute.xlu0 %798
  %800 = vrot.lane.b32.xlu0 %v421, 8
  %v801 = vpop.permute.xlu0 %800
  %802 = vrot.lane.b32.xlu0 %v571, 8
  %v803 = vpop.permute.xlu0 %802
  %804 = vrot.lane.b32.xlu0 %v424, 8
  %v805 = vpop.permute.xlu0 %804
  %806 = vrot.lane.b32.xlu0 %v572, 8
  %v807 = vpop.permute.xlu0 %806
  %808 = vrot.lane.b32.xlu0 %v427, 8
  %v809 = vpop.permute.xlu0 %808
  %810 = vrot.lane.b32.xlu0 %v573, 8
  %v811 = vpop.permute.xlu0 %810
  %812 = vrot.lane.b32.xlu0 %v430, 8
  %v813 = vpop.permute.xlu0 %812
  %814 = vrot.lane.b32.xlu0 %v574, 8
  %v815 = vpop.permute.xlu0 %814
  %816 = vrot.lane.b32.xlu0 %v433, 8
  %v817 = vpop.permute.xlu0 %816
  %818 = vrot.lane.b32.xlu0 %v575, 8
  %v819 = vpop.permute.xlu0 %818
  %820 = vrot.lane.b32.xlu0 %v436, 8
  %v821 = vpop.permute.xlu0 %820
  %822 = vrot.lane.b32.xlu0 %v576, 8
  %v823 = vpop.permute.xlu0 %822
  %824 = vrot.lane.b32.xlu0 %v439, 8
  %v825 = vpop.permute.xlu0 %824
  %826 = vrot.lane.b32.xlu0 %v577, 8
  %v827 = vpop.permute.xlu0 %826
  %828 = vrot.lane.b32.xlu0 %v442, 8
  %v829 = vpop.permute.xlu0 %828
  %830 = vrot.lane.b32.xlu0 %v578, 8
  %v831 = vpop.permute.xlu0 %830
  %832 = vrot.lane.b32.xlu0 %v445, 8
  %v833 = vpop.permute.xlu0 %832
  %834 = vrot.lane.b32.xlu0 %v579, 8
  %v835 = vpop.permute.xlu0 %834
  %836 = vrot.lane.b32.xlu0 %v448, 8
  %v837 = vpop.permute.xlu0 %836
  %838 = vrot.lane.b32.xlu0 %v580, 8
  %v839 = vpop.permute.xlu0 %838
  %840 = vrot.lane.b32.xlu0 %v451, 8
  %v841 = vpop.permute.xlu0 %840
  %842 = vrot.lane.b32.xlu0 %v581, 8
  %v843 = vpop.permute.xlu0 %842
  %844 = vrot.lane.b32.xlu0 %v457, 8
  %v845 = vpop.permute.xlu0 %844
  %846 = vrot.lane.b32.xlu0 %v583, 8
  %v847 = vpop.permute.xlu0 %846
  %848 = vrot.lane.b32.xlu0 %v460, 8
  %v849 = vpop.permute.xlu0 %848
  %850 = vrot.lane.b32.xlu0 %v584, 8
  %v851 = vpop.permute.xlu0 %850
  %852 = vrot.lane.b32.xlu0 %v463, 8
  %v853 = vpop.permute.xlu0 %852
  %854 = vrot.lane.b32.xlu0 %v585, 8
  %v855 = vpop.permute.xlu0 %854
  %856 = vrot.lane.b32.xlu0 %v466, 8
  %v857 = vpop.permute.xlu0 %856
  %858 = vrot.lane.b32.xlu0 %v586, 8
  %v859 = vpop.permute.xlu0 %858
  %860 = vrot.lane.b32.xlu0 %v469, 8
  %v861 = vpop.permute.xlu0 %860
  %862 = vrot.lane.b32.xlu0 %v587, 8
  %v863 = vpop.permute.xlu0 %862
  %864 = vrot.lane.b32.xlu0 %v472, 8
  %v865 = vpop.permute.xlu0 %864
  %866 = vrot.lane.b32.xlu0 %v588, 8
  %v867 = vpop.permute.xlu0 %866
  %868 = vrot.lane.b32.xlu0 %v475, 8
  %v869 = vpop.permute.xlu0 %868
  %870 = vrot.lane.b32.xlu0 %v589, 8
  %v871 = vpop.permute.xlu0 %870
  %872 = vrot.lane.b32.xlu0 %v478, 8
  %v873 = vpop.permute.xlu0 %872
  %874 = vrot.lane.b32.xlu0 %v590, 8
  %v875 = vpop.permute.xlu0 %874
  %876 = vrot.lane.b32.xlu0 %v481, 8
  %v877 = vpop.permute.xlu0 %876
  %878 = vrot.lane.b32.xlu0 %v591, 8
  %v879 = vpop.permute.xlu0 %878
  %880 = vrot.lane.b32.xlu0 %v484, 8
  %v881 = vpop.permute.xlu0 %880
  %882 = vrot.lane.b32.xlu0 %v592, 8
  %v883 = vpop.permute.xlu0 %882
  %884 = vrot.lane.b32.xlu0 %v487, 8
  %v885 = vpop.permute.xlu0 %884
  %886 = vrot.lane.b32.xlu0 %v593, 8
  %v887 = vpop.permute.xlu0 %886
  %888 = vrot.lane.b32.xlu0 %v490, 8
  %v889 = vpop.permute.xlu0 %888
  %890 = vrot.lane.b32.xlu0 %v594, 8
  %v891 = vpop.permute.xlu0 %890
  %892 = vrot.lane.b32.xlu0 %v493, 8
  %v893 = vpop.permute.xlu0 %892
  %894 = vrot.lane.b32.xlu0 %v595, 8
  %v895 = vpop.permute.xlu0 %894
  %896 = vrot.lane.b32.xlu0 %v496, 8
  %v897 = vpop.permute.xlu0 %896
  %898 = vrot.lane.b32.xlu0 %v596, 8
  %v899 = vpop.permute.xlu0 %898
  %900 = vrot.lane.b32.xlu0 %v499, 8
  %v901 = vpop.permute.xlu0 %900
  %902 = vrot.lane.b32.xlu0 %v597, 8
  %v903 = vpop.permute.xlu0 %902
  %v904 = vadd.f32 %v721, %v783
  %v905 = vadd.f32 %v722, %v785
  %v906 = vadd.f32 %v723, %v787
  %v907 = vadd.f32 %v724, %v789
  %v908 = vadd.f32 %v725, %v791
  %v909 = vadd.f32 %v726, %v793
  %v910 = vadd.f32 %v727, %v795
  %v911 = vadd.f32 %v728, %v797
  %v912 = vadd.f32 %v729, %v799
  %v913 = vadd.f32 %v730, %v801
  %v914 = vadd.f32 %v731, %v803
  %v915 = vadd.f32 %v732, %v805
  %v916 = vadd.f32 %v733, %v807
  %v917 = vadd.f32 %v734, %v809
  %v918 = vadd.f32 %v735, %v811
  %v919 = vadd.f32 %v736, %v813
  %v920 = vadd.f32 %v737, %v815
  %v921 = vadd.f32 %v738, %v817
  %v922 = vadd.f32 %v739, %v819
  %v923 = vadd.f32 %v740, %v821
  %v924 = vadd.f32 %v741, %v823
  %v925 = vadd.f32 %v742, %v825
  %v926 = vadd.f32 %v743, %v827
  %v927 = vadd.f32 %v744, %v829
  %v928 = vadd.f32 %v745, %v831
  %v929 = vadd.f32 %v746, %v833
  %v930 = vadd.f32 %v747, %v835
  %v931 = vadd.f32 %v748, %v837
  %v932 = vadd.f32 %v749, %v839
  %v933 = vadd.f32 %v750, %v841
  %v934 = vadd.f32 %v751, %v843
  %v935 = vadd.f32 %v752, %v845
  %v936 = vadd.f32 %v753, %v847
  %v937 = vadd.f32 %v754, %v849
  %v938 = vadd.f32 %v755, %v851
  %v939 = vadd.f32 %v756, %v853
  %v940 = vadd.f32 %v757, %v855
  %v941 = vadd.f32 %v758, %v857
  %v942 = vadd.f32 %v759, %v859
  %v943 = vadd.f32 %v760, %v861
  %v944 = vadd.f32 %v761, %v863
  %v945 = vadd.f32 %v762, %v865
  %v946 = vadd.f32 %v763, %v867
  %v947 = vadd.f32 %v764, %v869
  %v948 = vadd.f32 %v765, %v871
  %v949 = vadd.f32 %v766, %v873
  %v950 = vadd.f32 %v767, %v875
  %v951 = vadd.f32 %v768, %v877
  %v952 = vadd.f32 %v769, %v879
  %v953 = vadd.f32 %v770, %v881
  %v954 = vadd.f32 %v771, %v883
  %v955 = vadd.f32 %v772, %v885
  %v956 = vadd.f32 %v773, %v887
  %v957 = vadd.f32 %v774, %v889
  %v958 = vadd.f32 %v775, %v891
  %v959 = vadd.f32 %v776, %v893
  %v960 = vadd.f32 %v777, %v895
  %v961 = vadd.f32 %v778, %v897
  %v962 = vadd.f32 %v779, %v899
  %v963 = vadd.f32 %v780, %v901
  %v964 = vadd.f32 %v781, %v903
  %965 = vrot.lane.b32.xlu0 %v374, 12
  %v966 = vpop.permute.xlu0 %965
  %967 = vrot.lane.b32.xlu0 %v216, 12
  %v968 = vpop.permute.xlu0 %967
  %969 = vrot.lane.b32.xlu0 %v375, 12
  %v970 = vpop.permute.xlu0 %969
  %971 = vrot.lane.b32.xlu0 %v219, 12
  %v972 = vpop.permute.xlu0 %971
  %973 = vrot.lane.b32.xlu0 %v376, 12
  %v974 = vpop.permute.xlu0 %973
  %975 = vrot.lane.b32.xlu0 %v222, 12
  %v976 = vpop.permute.xlu0 %975
  %977 = vrot.lane.b32.xlu0 %v377, 12
  %v978 = vpop.permute.xlu0 %977
  %979 = vrot.lane.b32.xlu0 %v225, 12
  %v980 = vpop.permute.xlu0 %979
  %981 = vrot.lane.b32.xlu0 %v378, 12
  %v982 = vpop.permute.xlu0 %981
  %983 = vrot.lane.b32.xlu0 %v228, 12
  %v984 = vpop.permute.xlu0 %983
  %985 = vrot.lane.b32.xlu0 %v379, 12
  %v986 = vpop.permute.xlu0 %985
  %987 = vrot.lane.b32.xlu0 %v231, 12
  %v988 = vpop.permute.xlu0 %987
  %989 = vrot.lane.b32.xlu0 %v380, 12
  %v990 = vpop.permute.xlu0 %989
  %991 = vrot.lane.b32.xlu0 %v234, 12
  %v992 = vpop.permute.xlu0 %991
  %993 = vrot.lane.b32.xlu0 %v381, 12
  %v994 = vpop.permute.xlu0 %993
  %995 = vrot.lane.b32.xlu0 %v237, 12
  %v996 = vpop.permute.xlu0 %995
  %997 = vrot.lane.b32.xlu0 %v382, 12
  %v998 = vpop.permute.xlu0 %997
  %999 = vrot.lane.b32.xlu0 %v240, 12
  %v1000 = vpop.permute.xlu0 %999
  %1001 = vrot.lane.b32.xlu0 %v383, 12
  %v1002 = vpop.permute.xlu0 %1001
  %1003 = vrot.lane.b32.xlu0 %v243, 12
  %v1004 = vpop.permute.xlu0 %1003
  %1005 = vrot.lane.b32.xlu0 %v384, 12
  %v1006 = vpop.permute.xlu0 %1005
  %1007 = vrot.lane.b32.xlu0 %v246, 12
  %v1008 = vpop.permute.xlu0 %1007
  %1009 = vrot.lane.b32.xlu0 %v385, 12
  %v1010 = vpop.permute.xlu0 %1009
  %1011 = vrot.lane.b32.xlu0 %v249, 12
  %v1012 = vpop.permute.xlu0 %1011
  %1013 = vrot.lane.b32.xlu0 %v386, 12
  %v1014 = vpop.permute.xlu0 %1013
  %1015 = vrot.lane.b32.xlu0 %v252, 12
  %v1016 = vpop.permute.xlu0 %1015
  %1017 = vrot.lane.b32.xlu0 %v387, 12
  %v1018 = vpop.permute.xlu0 %1017
  %1019 = vrot.lane.b32.xlu0 %v255, 12
  %v1020 = vpop.permute.xlu0 %1019
  %1021 = vrot.lane.b32.xlu0 %v388, 12
  %v1022 = vpop.permute.xlu0 %1021
  %1023 = vrot.lane.b32.xlu0 %v258, 12
  %v1024 = vpop.permute.xlu0 %1023
  %1025 = vrot.lane.b32.xlu0 %v389, 12
  %v1026 = vpop.permute.xlu0 %1025
  %1027 = vrot.lane.b32.xlu0 %v261, 12
  %v1028 = vpop.permute.xlu0 %1027
  %1029 = vrot.lane.b32.xlu0 %v390, 12
  %v1030 = vpop.permute.xlu0 %1029
  %1031 = vrot.lane.b32.xlu0 %v264, 12
  %v1032 = vpop.permute.xlu0 %1031
  %1033 = vrot.lane.b32.xlu0 %v391, 12
  %v1034 = vpop.permute.xlu0 %1033
  %1035 = vrot.lane.b32.xlu0 %v267, 12
  %v1036 = vpop.permute.xlu0 %1035
  %1037 = vrot.lane.b32.xlu0 %v392, 12
  %v1038 = vpop.permute.xlu0 %1037
  %1039 = vrot.lane.b32.xlu0 %v270, 12
  %v1040 = vpop.permute.xlu0 %1039
  %1041 = vrot.lane.b32.xlu0 %v393, 12
  %v1042 = vpop.permute.xlu0 %1041
  %1043 = vrot.lane.b32.xlu0 %v273, 12
  %v1044 = vpop.permute.xlu0 %1043
  %1045 = vrot.lane.b32.xlu0 %v394, 12
  %v1046 = vpop.permute.xlu0 %1045
  %1047 = vrot.lane.b32.xlu0 %v276, 12
  %v1048 = vpop.permute.xlu0 %1047
  %1049 = vrot.lane.b32.xlu0 %v395, 12
  %v1050 = vpop.permute.xlu0 %1049
  %1051 = vrot.lane.b32.xlu0 %v279, 12
  %v1052 = vpop.permute.xlu0 %1051
  %1053 = vrot.lane.b32.xlu0 %v396, 12
  %v1054 = vpop.permute.xlu0 %1053
  %1055 = vrot.lane.b32.xlu0 %v282, 12
  %v1056 = vpop.permute.xlu0 %1055
  %1057 = vrot.lane.b32.xlu0 %v397, 12
  %v1058 = vpop.permute.xlu0 %1057
  %1059 = vrot.lane.b32.xlu0 %v285, 12
  %v1060 = vpop.permute.xlu0 %1059
  %1061 = vrot.lane.b32.xlu0 %v398, 12
  %v1062 = vpop.permute.xlu0 %1061
  %1063 = vrot.lane.b32.xlu0 %v288, 12
  %v1064 = vpop.permute.xlu0 %1063
  %1065 = vrot.lane.b32.xlu0 %v399, 12
  %v1066 = vpop.permute.xlu0 %1065
  %1067 = vrot.lane.b32.xlu0 %v291, 12
  %v1068 = vpop.permute.xlu0 %1067
  %1069 = vrot.lane.b32.xlu0 %v400, 12
  %v1070 = vpop.permute.xlu0 %1069
  %1071 = vrot.lane.b32.xlu0 %v294, 12
  %v1072 = vpop.permute.xlu0 %1071
  %1073 = vrot.lane.b32.xlu0 %v401, 12
  %v1074 = vpop.permute.xlu0 %1073
  %1075 = vrot.lane.b32.xlu0 %v297, 12
  %v1076 = vpop.permute.xlu0 %1075
  %1077 = vrot.lane.b32.xlu0 %v402, 12
  %v1078 = vpop.permute.xlu0 %1077
  %1079 = vrot.lane.b32.xlu0 %v300, 12
  %v1080 = vpop.permute.xlu0 %1079
  %1081 = vrot.lane.b32.xlu0 %v403, 12
  %v1082 = vpop.permute.xlu0 %1081
  %1083 = vrot.lane.b32.xlu0 %v303, 12
  %v1084 = vpop.permute.xlu0 %1083
  %1085 = vrot.lane.b32.xlu0 %v404, 12
  %v1086 = vpop.permute.xlu0 %1085
  %1087 = vrot.lane.b32.xlu0 %v306, 12
  %v1088 = vpop.permute.xlu0 %1087
  %1089 = vrot.lane.b32.xlu0 %v405, 12
  %v1090 = vpop.permute.xlu0 %1089
  %1091 = vrot.lane.b32.xlu0 %v309, 12
  %v1092 = vpop.permute.xlu0 %1091
  %v1093 = vadd.f32 %v904, %v966
  %v1094 = vadd.f32 %v904, %v968
  %v1095 = vadd.f32 %v905, %v970
  %v1096 = vadd.f32 %v906, %v972
  %v1097 = vadd.f32 %v907, %v974
  %v1098 = vadd.f32 %v908, %v976
  %v1099 = vadd.f32 %v909, %v978
  %v1100 = vadd.f32 %v910, %v980
  %v1101 = vadd.f32 %v911, %v982
  %v1102 = vadd.f32 %v912, %v984
  %v1103 = vadd.f32 %v913, %v986
  %v1104 = vadd.f32 %v914, %v988
  %v1105 = vadd.f32 %v915, %v990
  %v1106 = vadd.f32 %v916, %v992
  %v1107 = vadd.f32 %v917, %v994
  %v1108 = vadd.f32 %v918, %v996
  %v1109 = vadd.f32 %v919, %v998
  %v1110 = vadd.f32 %v920, %v1000
  %v1111 = vadd.f32 %v921, %v1002
  %v1112 = vadd.f32 %v922, %v1004
  %v1113 = vadd.f32 %v923, %v1006
  %v1114 = vadd.f32 %v924, %v1008
  %v1115 = vadd.f32 %v925, %v1010
  %v1116 = vadd.f32 %v926, %v1012
  %v1117 = vadd.f32 %v927, %v1014
  %v1118 = vadd.f32 %v928, %v1016
  %v1119 = vadd.f32 %v929, %v1018
  %v1120 = vadd.f32 %v930, %v1020
  %v1121 = vadd.f32 %v931, %v1022
  %v1122 = vadd.f32 %v932, %v1024
  %v1123 = vadd.f32 %v933, %v1026
  %v1124 = vadd.f32 %v934, %v1028
  %v1125 = vadd.f32 %v904, %v1030
  %v1126 = vadd.f32 %v904, %v1032
  %v1127 = vadd.f32 %v935, %v1034
  %v1128 = vadd.f32 %v936, %v1036
  %v1129 = vadd.f32 %v937, %v1038
  %v1130 = vadd.f32 %v938, %v1040
  %v1131 = vadd.f32 %v939, %v1042
  %v1132 = vadd.f32 %v940, %v1044
  %v1133 = vadd.f32 %v941, %v1046
  %v1134 = vadd.f32 %v942, %v1048
  %v1135 = vadd.f32 %v943, %v1050
  %v1136 = vadd.f32 %v944, %v1052
  %v1137 = vadd.f32 %v945, %v1054
  %v1138 = vadd.f32 %v946, %v1056
  %v1139 = vadd.f32 %v947, %v1058
  %v1140 = vadd.f32 %v948, %v1060
  %v1141 = vadd.f32 %v949, %v1062
  %v1142 = vadd.f32 %v950, %v1064
  %v1143 = vadd.f32 %v951, %v1066
  %v1144 = vadd.f32 %v952, %v1068
  %v1145 = vadd.f32 %v953, %v1070
  %v1146 = vadd.f32 %v954, %v1072
  %v1147 = vadd.f32 %v955, %v1074
  %v1148 = vadd.f32 %v956, %v1076
  %v1149 = vadd.f32 %v957, %v1078
  %v1150 = vadd.f32 %v958, %v1080
  %v1151 = vadd.f32 %v959, %v1082
  %v1152 = vadd.f32 %v960, %v1084
  %v1153 = vadd.f32 %v961, %v1086
  %v1154 = vadd.f32 %v962, %v1088
  %v1155 = vadd.f32 %v963, %v1090
  %v1156 = vadd.f32 %v964, %v1092
  %1157 = vrot.lane.b32.xlu0 %v85, 16
  %v1158 = vpop.permute.xlu0 %1157
  %1159 = vrot.lane.b32.xlu0 %v86, 16
  %v1160 = vpop.permute.xlu0 %1159
  %1161 = vrot.lane.b32.xlu0 %v87, 16
  %v1162 = vpop.permute.xlu0 %1161
  %1163 = vrot.lane.b32.xlu0 %v88, 16
  %v1164 = vpop.permute.xlu0 %1163
  %1165 = vrot.lane.b32.xlu0 %v89, 16
  %v1166 = vpop.permute.xlu0 %1165
  %1167 = vrot.lane.b32.xlu0 %v90, 16
  %v1168 = vpop.permute.xlu0 %1167
  %1169 = vrot.lane.b32.xlu0 %v91, 16
  %v1170 = vpop.permute.xlu0 %1169
  %1171 = vrot.lane.b32.xlu0 %v92, 16
  %v1172 = vpop.permute.xlu0 %1171
  %1173 = vrot.lane.b32.xlu0 %v93, 16
  %v1174 = vpop.permute.xlu0 %1173
  %1175 = vrot.lane.b32.xlu0 %v94, 16
  %v1176 = vpop.permute.xlu0 %1175
  %1177 = vrot.lane.b32.xlu0 %v95, 16
  %v1178 = vpop.permute.xlu0 %1177
  %1179 = vrot.lane.b32.xlu0 %v96, 16
  %v1180 = vpop.permute.xlu0 %1179
  %1181 = vrot.lane.b32.xlu0 %v97, 16
  %v1182 = vpop.permute.xlu0 %1181
  %1183 = vrot.lane.b32.xlu0 %v98, 16
  %v1184 = vpop.permute.xlu0 %1183
  %1185 = vrot.lane.b32.xlu0 %v99, 16
  %v1186 = vpop.permute.xlu0 %1185
  %1187 = vrot.lane.b32.xlu0 %v100, 16
  %v1188 = vpop.permute.xlu0 %1187
  %1189 = vrot.lane.b32.xlu0 %v101, 16
  %v1190 = vpop.permute.xlu0 %1189
  %1191 = vrot.lane.b32.xlu0 %v102, 16
  %v1192 = vpop.permute.xlu0 %1191
  %1193 = vrot.lane.b32.xlu0 %v103, 16
  %v1194 = vpop.permute.xlu0 %1193
  %1195 = vrot.lane.b32.xlu0 %v104, 16
  %v1196 = vpop.permute.xlu0 %1195
  %1197 = vrot.lane.b32.xlu0 %v105, 16
  %v1198 = vpop.permute.xlu0 %1197
  %1199 = vrot.lane.b32.xlu0 %v106, 16
  %v1200 = vpop.permute.xlu0 %1199
  %1201 = vrot.lane.b32.xlu0 %v107, 16
  %v1202 = vpop.permute.xlu0 %1201
  %1203 = vrot.lane.b32.xlu0 %v108, 16
  %v1204 = vpop.permute.xlu0 %1203
  %1205 = vrot.lane.b32.xlu0 %v109, 16
  %v1206 = vpop.permute.xlu0 %1205
  %1207 = vrot.lane.b32.xlu0 %v110, 16
  %v1208 = vpop.permute.xlu0 %1207
  %1209 = vrot.lane.b32.xlu0 %v111, 16
  %v1210 = vpop.permute.xlu0 %1209
  %1211 = vrot.lane.b32.xlu0 %v112, 16
  %v1212 = vpop.permute.xlu0 %1211
  %1213 = vrot.lane.b32.xlu0 %v113, 16
  %v1214 = vpop.permute.xlu0 %1213
  %1215 = vrot.lane.b32.xlu0 %v114, 16
  %v1216 = vpop.permute.xlu0 %1215
  %1217 = vrot.lane.b32.xlu0 %v115, 16
  %v1218 = vpop.permute.xlu0 %1217
  %1219 = vrot.lane.b32.xlu0 %v116, 16
  %v1220 = vpop.permute.xlu0 %1219
  %1221 = vrot.lane.b32.xlu0 %v117, 16
  %v1222 = vpop.permute.xlu0 %1221
  %1223 = vrot.lane.b32.xlu0 %v118, 16
  %v1224 = vpop.permute.xlu0 %1223
  %1225 = vrot.lane.b32.xlu0 %v119, 16
  %v1226 = vpop.permute.xlu0 %1225
  %1227 = vrot.lane.b32.xlu0 %v120, 16
  %v1228 = vpop.permute.xlu0 %1227
  %1229 = vrot.lane.b32.xlu0 %v121, 16
  %v1230 = vpop.permute.xlu0 %1229
  %1231 = vrot.lane.b32.xlu0 %v122, 16
  %v1232 = vpop.permute.xlu0 %1231
  %1233 = vrot.lane.b32.xlu0 %v123, 16
  %v1234 = vpop.permute.xlu0 %1233
  %1235 = vrot.lane.b32.xlu0 %v124, 16
  %v1236 = vpop.permute.xlu0 %1235
  %1237 = vrot.lane.b32.xlu0 %v125, 16
  %v1238 = vpop.permute.xlu0 %1237
  %1239 = vrot.lane.b32.xlu0 %v126, 16
  %v1240 = vpop.permute.xlu0 %1239
  %1241 = vrot.lane.b32.xlu0 %v127, 16
  %v1242 = vpop.permute.xlu0 %1241
  %1243 = vrot.lane.b32.xlu0 %v128, 16
  %v1244 = vpop.permute.xlu0 %1243
  %1245 = vrot.lane.b32.xlu0 %v129, 16
  %v1246 = vpop.permute.xlu0 %1245
  %1247 = vrot.lane.b32.xlu0 %v130, 16
  %v1248 = vpop.permute.xlu0 %1247
  %1249 = vrot.lane.b32.xlu0 %v131, 16
  %v1250 = vpop.permute.xlu0 %1249
  %1251 = vrot.lane.b32.xlu0 %v132, 16
  %v1252 = vpop.permute.xlu0 %1251
  %1253 = vrot.lane.b32.xlu0 %v133, 16
  %v1254 = vpop.permute.xlu0 %1253
  %1255 = vrot.lane.b32.xlu0 %v134, 16
  %v1256 = vpop.permute.xlu0 %1255
  %1257 = vrot.lane.b32.xlu0 %v135, 16
  %v1258 = vpop.permute.xlu0 %1257
  %1259 = vrot.lane.b32.xlu0 %v136, 16
  %v1260 = vpop.permute.xlu0 %1259
  %1261 = vrot.lane.b32.xlu0 %v137, 16
  %v1262 = vpop.permute.xlu0 %1261
  %1263 = vrot.lane.b32.xlu0 %v138, 16
  %v1264 = vpop.permute.xlu0 %1263
  %1265 = vrot.lane.b32.xlu0 %v139, 16
  %v1266 = vpop.permute.xlu0 %1265
  %1267 = vrot.lane.b32.xlu0 %v140, 16
  %v1268 = vpop.permute.xlu0 %1267
  %1269 = vrot.lane.b32.xlu0 %v141, 16
  %v1270 = vpop.permute.xlu0 %1269
  %1271 = vrot.lane.b32.xlu0 %v142, 16
  %v1272 = vpop.permute.xlu0 %1271
  %1273 = vrot.lane.b32.xlu0 %v143, 16
  %v1274 = vpop.permute.xlu0 %1273
  %1275 = vrot.lane.b32.xlu0 %v144, 16
  %v1276 = vpop.permute.xlu0 %1275
  %1277 = vrot.lane.b32.xlu0 %v145, 16
  %v1278 = vpop.permute.xlu0 %1277
  %1279 = vrot.lane.b32.xlu0 %v146, 16
  %v1280 = vpop.permute.xlu0 %1279
  %1281 = vrot.lane.b32.xlu0 %v147, 16
  %v1282 = vpop.permute.xlu0 %1281
  %1283 = vrot.lane.b32.xlu0 %v148, 16
  %v1284 = vpop.permute.xlu0 %1283
  %v1285 = vadd.f32 %v1093, %v1158
  %v1286 = vadd.f32 %v1094, %v1160
  %v1287 = vadd.f32 %v1095, %v1162
  %v1288 = vadd.f32 %v1096, %v1164
  %v1289 = vadd.f32 %v1097, %v1166
  %v1290 = vadd.f32 %v1098, %v1168
  %v1291 = vadd.f32 %v1099, %v1170
  %v1292 = vadd.f32 %v1100, %v1172
  %v1293 = vadd.f32 %v1101, %v1174
  %v1294 = vadd.f32 %v1102, %v1176
  %v1295 = vadd.f32 %v1103, %v1178
  %v1296 = vadd.f32 %v1104, %v1180
  %v1297 = vadd.f32 %v1105, %v1182
  %v1298 = vadd.f32 %v1106, %v1184
  %v1299 = vadd.f32 %v1107, %v1186
  %v1300 = vadd.f32 %v1108, %v1188
  %v1301 = vadd.f32 %v1109, %v1190
  %v1302 = vadd.f32 %v1110, %v1192
  %v1303 = vadd.f32 %v1111, %v1194
  %v1304 = vadd.f32 %v1112, %v1196
  %v1305 = vadd.f32 %v1113, %v1198
  %v1306 = vadd.f32 %v1114, %v1200
  %v1307 = vadd.f32 %v1115, %v1202
  %v1308 = vadd.f32 %v1116, %v1204
  %v1309 = vadd.f32 %v1117, %v1206
  %v1310 = vadd.f32 %v1118, %v1208
  %v1311 = vadd.f32 %v1119, %v1210
  %v1312 = vadd.f32 %v1120, %v1212
  %v1313 = vadd.f32 %v1121, %v1214
  %v1314 = vadd.f32 %v1122, %v1216
  %v1315 = vadd.f32 %v1123, %v1218
  %v1316 = vadd.f32 %v1124, %v1220
  %v1317 = vadd.f32 %v1125, %v1222
  %v1318 = vadd.f32 %v1126, %v1224
  %v1319 = vadd.f32 %v1127, %v1226
  %v1320 = vadd.f32 %v1128, %v1228
  %v1321 = vadd.f32 %v1129, %v1230
  %v1322 = vadd.f32 %v1130, %v1232
  %v1323 = vadd.f32 %v1131, %v1234
  %v1324 = vadd.f32 %v1132, %v1236
  %v1325 = vadd.f32 %v1133, %v1238
  %v1326 = vadd.f32 %v1134, %v1240
  %v1327 = vadd.f32 %v1135, %v1242
  %v1328 = vadd.f32 %v1136, %v1244
  %v1329 = vadd.f32 %v1137, %v1246
  %v1330 = vadd.f32 %v1138, %v1248
  %v1331 = vadd.f32 %v1139, %v1250
  %v1332 = vadd.f32 %v1140, %v1252
  %v1333 = vadd.f32 %v1141, %v1254
  %v1334 = vadd.f32 %v1142, %v1256
  %v1335 = vadd.f32 %v1143, %v1258
  %v1336 = vadd.f32 %v1144, %v1260
  %v1337 = vadd.f32 %v1145, %v1262
  %v1338 = vadd.f32 %v1146, %v1264
  %v1339 = vadd.f32 %v1147, %v1266
  %v1340 = vadd.f32 %v1148, %v1268
  %v1341 = vadd.f32 %v1149, %v1270
  %v1342 = vadd.f32 %v1150, %v1272
  %v1343 = vadd.f32 %v1151, %v1274
  %v1344 = vadd.f32 %v1152, %v1276
  %v1345 = vadd.f32 %v1153, %v1278
  %v1346 = vadd.f32 %v1154, %v1280
  %v1347 = vadd.f32 %v1155, %v1282
  %v1348 = vadd.f32 %v1156, %v1284
  %1349 = vrot.lane.b32.xlu0 %v409, 20
  %v1350 = vpop.permute.xlu0 %1349
  %1351 = vrot.lane.b32.xlu0 %v567, 20
  %v1352 = vpop.permute.xlu0 %1351
  %1353 = vrot.lane.b32.xlu0 %v412, 20
  %v1354 = vpop.permute.xlu0 %1353
  %1355 = vrot.lane.b32.xlu0 %v568, 20
  %v1356 = vpop.permute.xlu0 %1355
  %1357 = vrot.lane.b32.xlu0 %v415, 20
  %v1358 = vpop.permute.xlu0 %1357
  %1359 = vrot.lane.b32.xlu0 %v569, 20
  %v1360 = vpop.permute.xlu0 %1359
  %1361 = vrot.lane.b32.xlu0 %v418, 20
  %v1362 = vpop.permute.xlu0 %1361
  %1363 = vrot.lane.b32.xlu0 %v570, 20
  %v1364 = vpop.permute.xlu0 %1363
  %1365 = vrot.lane.b32.xlu0 %v421, 20
  %v1366 = vpop.permute.xlu0 %1365
  %1367 = vrot.lane.b32.xlu0 %v571, 20
  %v1368 = vpop.permute.xlu0 %1367
  %1369 = vrot.lane.b32.xlu0 %v424, 20
  %v1370 = vpop.permute.xlu0 %1369
  %1371 = vrot.lane.b32.xlu0 %v572, 20
  %v1372 = vpop.permute.xlu0 %1371
  %1373 = vrot.lane.b32.xlu0 %v427, 20
  %v1374 = vpop.permute.xlu0 %1373
  %1375 = vrot.lane.b32.xlu0 %v573, 20
  %v1376 = vpop.permute.xlu0 %1375
  %1377 = vrot.lane.b32.xlu0 %v430, 20
  %v1378 = vpop.permute.xlu0 %1377
  %1379 = vrot.lane.b32.xlu0 %v574, 20
  %v1380 = vpop.permute.xlu0 %1379
  %1381 = vrot.lane.b32.xlu0 %v433, 20
  %v1382 = vpop.permute.xlu0 %1381
  %1383 = vrot.lane.b32.xlu0 %v575, 20
  %v1384 = vpop.permute.xlu0 %1383
  %1385 = vrot.lane.b32.xlu0 %v436, 20
  %v1386 = vpop.permute.xlu0 %1385
  %1387 = vrot.lane.b32.xlu0 %v576, 20
  %v1388 = vpop.permute.xlu0 %1387
  %1389 = vrot.lane.b32.xlu0 %v439, 20
  %v1390 = vpop.permute.xlu0 %1389
  %1391 = vrot.lane.b32.xlu0 %v577, 20
  %v1392 = vpop.permute.xlu0 %1391
  %1393 = vrot.lane.b32.xlu0 %v442, 20
  %v1394 = vpop.permute.xlu0 %1393
  %1395 = vrot.lane.b32.xlu0 %v578, 20
  %v1396 = vpop.permute.xlu0 %1395
  %1397 = vrot.lane.b32.xlu0 %v445, 20
  %v1398 = vpop.permute.xlu0 %1397
  %1399 = vrot.lane.b32.xlu0 %v579, 20
  %v1400 = vpop.permute.xlu0 %1399
  %1401 = vrot.lane.b32.xlu0 %v448, 20
  %v1402 = vpop.permute.xlu0 %1401
  %1403 = vrot.lane.b32.xlu0 %v580, 20
  %v1404 = vpop.permute.xlu0 %1403
  %1405 = vrot.lane.b32.xlu0 %v451, 20
  %v1406 = vpop.permute.xlu0 %1405
  %1407 = vrot.lane.b32.xlu0 %v581, 20
  %v1408 = vpop.permute.xlu0 %1407
  %1409 = vrot.lane.b32.xlu0 %v454, 20
  %v1410 = vpop.permute.xlu0 %1409
  %1411 = vrot.lane.b32.xlu0 %v582, 20
  %v1412 = vpop.permute.xlu0 %1411
  %1413 = vrot.lane.b32.xlu0 %v457, 20
  %v1414 = vpop.permute.xlu0 %1413
  %1415 = vrot.lane.b32.xlu0 %v583, 20
  %v1416 = vpop.permute.xlu0 %1415
  %1417 = vrot.lane.b32.xlu0 %v460, 20
  %v1418 = vpop.permute.xlu0 %1417
  %1419 = vrot.lane.b32.xlu0 %v584, 20
  %v1420 = vpop.permute.xlu0 %1419
  %1421 = vrot.lane.b32.xlu0 %v463, 20
  %v1422 = vpop.permute.xlu0 %1421
  %1423 = vrot.lane.b32.xlu0 %v585, 20
  %v1424 = vpop.permute.xlu0 %1423
  %1425 = vrot.lane.b32.xlu0 %v466, 20
  %v1426 = vpop.permute.xlu0 %1425
  %1427 = vrot.lane.b32.xlu0 %v586, 20
  %v1428 = vpop.permute.xlu0 %1427
  %1429 = vrot.lane.b32.xlu0 %v469, 20
  %v1430 = vpop.permute.xlu0 %1429
  %1431 = vrot.lane.b32.xlu0 %v587, 20
  %v1432 = vpop.permute.xlu0 %1431
  %1433 = vrot.lane.b32.xlu0 %v472, 20
  %v1434 = vpop.permute.xlu0 %1433
  %1435 = vrot.lane.b32.xlu0 %v588, 20
  %v1436 = vpop.permute.xlu0 %1435
  %1437 = vrot.lane.b32.xlu0 %v475, 20
  %v1438 = vpop.permute.xlu0 %1437
  %1439 = vrot.lane.b32.xlu0 %v589, 20
  %v1440 = vpop.permute.xlu0 %1439
  %1441 = vrot.lane.b32.xlu0 %v478, 20
  %v1442 = vpop.permute.xlu0 %1441
  %1443 = vrot.lane.b32.xlu0 %v590, 20
  %v1444 = vpop.permute.xlu0 %1443
  %1445 = vrot.lane.b32.xlu0 %v481, 20
  %v1446 = vpop.permute.xlu0 %1445
  %1447 = vrot.lane.b32.xlu0 %v591, 20
  %v1448 = vpop.permute.xlu0 %1447
  %1449 = vrot.lane.b32.xlu0 %v484, 20
  %v1450 = vpop.permute.xlu0 %1449
  %1451 = vrot.lane.b32.xlu0 %v592, 20
  %v1452 = vpop.permute.xlu0 %1451
  %1453 = vrot.lane.b32.xlu0 %v487, 20
  %v1454 = vpop.permute.xlu0 %1453
  %1455 = vrot.lane.b32.xlu0 %v593, 20
  %v1456 = vpop.permute.xlu0 %1455
  %1457 = vrot.lane.b32.xlu0 %v490, 20
  %v1458 = vpop.permute.xlu0 %1457
  %1459 = vrot.lane.b32.xlu0 %v594, 20
  %v1460 = vpop.permute.xlu0 %1459
  %1461 = vrot.lane.b32.xlu0 %v493, 20
  %v1462 = vpop.permute.xlu0 %1461
  %1463 = vrot.lane.b32.xlu0 %v595, 20
  %v1464 = vpop.permute.xlu0 %1463
  %1465 = vrot.lane.b32.xlu0 %v496, 20
  %v1466 = vpop.permute.xlu0 %1465
  %1467 = vrot.lane.b32.xlu0 %v596, 20
  %v1468 = vpop.permute.xlu0 %1467
  %1469 = vrot.lane.b32.xlu0 %v499, 20
  %v1470 = vpop.permute.xlu0 %1469
  %1471 = vrot.lane.b32.xlu0 %v597, 20
  %v1472 = vpop.permute.xlu0 %1471
  %1473 = vrot.lane.b32.xlu0 %v502, 20
  %v1474 = vpop.permute.xlu0 %1473
  %1475 = vrot.lane.b32.xlu0 %v598, 20
  %v1476 = vpop.permute.xlu0 %1475
  %v1477 = vadd.f32 %v1285, %v1350
  %v1478 = vadd.f32 %v1286, %v1352
  %v1479 = vadd.f32 %v1287, %v1354
  %v1480 = vadd.f32 %v1288, %v1356
  %v1481 = vadd.f32 %v1289, %v1358
  %v1482 = vadd.f32 %v1290, %v1360
  %v1483 = vadd.f32 %v1291, %v1362
  %v1484 = vadd.f32 %v1292, %v1364
  %v1485 = vadd.f32 %v1293, %v1366
  %v1486 = vadd.f32 %v1294, %v1368
  %v1487 = vadd.f32 %v1295, %v1370
  %v1488 = vadd.f32 %v1296, %v1372
  %v1489 = vadd.f32 %v1297, %v1374
  %v1490 = vadd.f32 %v1298, %v1376
  %v1491 = vadd.f32 %v1299, %v1378
  %v1492 = vadd.f32 %v1300, %v1380
  %v1493 = vadd.f32 %v1301, %v1382
  %v1494 = vadd.f32 %v1302, %v1384
  %v1495 = vadd.f32 %v1303, %v1386
  %v1496 = vadd.f32 %v1304, %v1388
  %v1497 = vadd.f32 %v1305, %v1390
  %v1498 = vadd.f32 %v1306, %v1392
  %v1499 = vadd.f32 %v1307, %v1394
  %v1500 = vadd.f32 %v1308, %v1396
  %v1501 = vadd.f32 %v1309, %v1398
  %v1502 = vadd.f32 %v1310, %v1400
  %v1503 = vadd.f32 %v1311, %v1402
  %v1504 = vadd.f32 %v1312, %v1404
  %v1505 = vadd.f32 %v1313, %v1406
  %v1506 = vadd.f32 %v1314, %v1408
  %v1507 = vadd.f32 %v1315, %v1410
  %v1508 = vadd.f32 %v1316, %v1412
  %v1509 = vadd.f32 %v1317, %v1414
  %v1510 = vadd.f32 %v1318, %v1416
  %v1511 = vadd.f32 %v1319, %v1418
  %v1512 = vadd.f32 %v1320, %v1420
  %v1513 = vadd.f32 %v1321, %v1422
  %v1514 = vadd.f32 %v1322, %v1424
  %v1515 = vadd.f32 %v1323, %v1426
  %v1516 = vadd.f32 %v1324, %v1428
  %v1517 = vadd.f32 %v1325, %v1430
  %v1518 = vadd.f32 %v1326, %v1432
  %v1519 = vadd.f32 %v1327, %v1434
  %v1520 = vadd.f32 %v1328, %v1436
  %v1521 = vadd.f32 %v1329, %v1438
  %v1522 = vadd.f32 %v1330, %v1440
  %v1523 = vadd.f32 %v1331, %v1442
  %v1524 = vadd.f32 %v1332, %v1444
  %v1525 = vadd.f32 %v1333, %v1446
  %v1526 = vadd.f32 %v1334, %v1448
  %v1527 = vadd.f32 %v1335, %v1450
  %v1528 = vadd.f32 %v1336, %v1452
  %v1529 = vadd.f32 %v1337, %v1454
  %v1530 = vadd.f32 %v1338, %v1456
  %v1531 = vadd.f32 %v1339, %v1458
  %v1532 = vadd.f32 %v1340, %v1460
  %v1533 = vadd.f32 %v1341, %v1462
  %v1534 = vadd.f32 %v1342, %v1464
  %v1535 = vadd.f32 %v1343, %v1466
  %v1536 = vadd.f32 %v1344, %v1468
  %v1537 = vadd.f32 %v1345, %v1470
  %v1538 = vadd.f32 %v1346, %v1472
  %v1539 = vadd.f32 %v1347, %v1474
  %v1540 = vadd.f32 %v1348, %v1476
  %1541 = vrot.lane.b32.xlu0 %v375, 24
  %v1542 = vpop.permute.xlu0 %1541
  %1543 = vrot.lane.b32.xlu0 %v219, 24
  %v1544 = vpop.permute.xlu0 %1543
  %1545 = vrot.lane.b32.xlu0 %v376, 24
  %v1546 = vpop.permute.xlu0 %1545
  %1547 = vrot.lane.b32.xlu0 %v222, 24
  %v1548 = vpop.permute.xlu0 %1547
  %1549 = vrot.lane.b32.xlu0 %v377, 24
  %v1550 = vpop.permute.xlu0 %1549
  %1551 = vrot.lane.b32.xlu0 %v225, 24
  %v1552 = vpop.permute.xlu0 %1551
  %1553 = vrot.lane.b32.xlu0 %v378, 24
  %v1554 = vpop.permute.xlu0 %1553
  %1555 = vrot.lane.b32.xlu0 %v228, 24
  %v1556 = vpop.permute.xlu0 %1555
  %1557 = vrot.lane.b32.xlu0 %v379, 24
  %v1558 = vpop.permute.xlu0 %1557
  %1559 = vrot.lane.b32.xlu0 %v231, 24
  %v1560 = vpop.permute.xlu0 %1559
  %1561 = vrot.lane.b32.xlu0 %v380, 24
  %v1562 = vpop.permute.xlu0 %1561
  %1563 = vrot.lane.b32.xlu0 %v234, 24
  %v1564 = vpop.permute.xlu0 %1563
  %1565 = vrot.lane.b32.xlu0 %v381, 24
  %v1566 = vpop.permute.xlu0 %1565
  %1567 = vrot.lane.b32.xlu0 %v237, 24
  %v1568 = vpop.permute.xlu0 %1567
  %1569 = vrot.lane.b32.xlu0 %v382, 24
  %v1570 = vpop.permute.xlu0 %1569
  %1571 = vrot.lane.b32.xlu0 %v240, 24
  %v1572 = vpop.permute.xlu0 %1571
  %1573 = vrot.lane.b32.xlu0 %v383, 24
  %v1574 = vpop.permute.xlu0 %1573
  %1575 = vrot.lane.b32.xlu0 %v243, 24
  %v1576 = vpop.permute.xlu0 %1575
  %1577 = vrot.lane.b32.xlu0 %v384, 24
  %v1578 = vpop.permute.xlu0 %1577
  %1579 = vrot.lane.b32.xlu0 %v246, 24
  %v1580 = vpop.permute.xlu0 %1579
  %1581 = vrot.lane.b32.xlu0 %v385, 24
  %v1582 = vpop.permute.xlu0 %1581
  %1583 = vrot.lane.b32.xlu0 %v249, 24
  %v1584 = vpop.permute.xlu0 %1583
  %1585 = vrot.lane.b32.xlu0 %v386, 24
  %v1586 = vpop.permute.xlu0 %1585
  %1587 = vrot.lane.b32.xlu0 %v252, 24
  %v1588 = vpop.permute.xlu0 %1587
  %1589 = vrot.lane.b32.xlu0 %v387, 24
  %v1590 = vpop.permute.xlu0 %1589
  %1591 = vrot.lane.b32.xlu0 %v255, 24
  %v1592 = vpop.permute.xlu0 %1591
  %1593 = vrot.lane.b32.xlu0 %v388, 24
  %v1594 = vpop.permute.xlu0 %1593
  %1595 = vrot.lane.b32.xlu0 %v258, 24
  %v1596 = vpop.permute.xlu0 %1595
  %1597 = vrot.lane.b32.xlu0 %v389, 24
  %v1598 = vpop.permute.xlu0 %1597
  %1599 = vrot.lane.b32.xlu0 %v261, 24
  %v1600 = vpop.permute.xlu0 %1599
  %1601 = vrot.lane.b32.xlu0 0.0, 24
  %v1602 = vpop.permute.xlu0 %1601
  %1603 = vrot.lane.b32.xlu0 %v391, 24
  %v1604 = vpop.permute.xlu0 %1603
  %1605 = vrot.lane.b32.xlu0 %v267, 24
  %v1606 = vpop.permute.xlu0 %1605
  %1607 = vrot.lane.b32.xlu0 %v392, 24
  %v1608 = vpop.permute.xlu0 %1607
  %1609 = vrot.lane.b32.xlu0 %v270, 24
  %v1610 = vpop.permute.xlu0 %1609
  %1611 = vrot.lane.b32.xlu0 %v393, 24
  %v1612 = vpop.permute.xlu0 %1611
  %1613 = vrot.lane.b32.xlu0 %v273, 24
  %v1614 = vpop.permute.xlu0 %1613
  %1615 = vrot.lane.b32.xlu0 %v394, 24
  %v1616 = vpop.permute.xlu0 %1615
  %1617 = vrot.lane.b32.xlu0 %v276, 24
  %v1618 = vpop.permute.xlu0 %1617
  %1619 = vrot.lane.b32.xlu0 %v395, 24
  %v1620 = vpop.permute.xlu0 %1619
  %1621 = vrot.lane.b32.xlu0 %v279, 24
  %v1622 = vpop.permute.xlu0 %1621
  %1623 = vrot.lane.b32.xlu0 %v396, 24
  %v1624 = vpop.permute.xlu0 %1623
  %1625 = vrot.lane.b32.xlu0 %v282, 24
  %v1626 = vpop.permute.xlu0 %1625
  %1627 = vrot.lane.b32.xlu0 %v397, 24
  %v1628 = vpop.permute.xlu0 %1627
  %1629 = vrot.lane.b32.xlu0 %v285, 24
  %v1630 = vpop.permute.xlu0 %1629
  %1631 = vrot.lane.b32.xlu0 %v398, 24
  %v1632 = vpop.permute.xlu0 %1631
  %1633 = vrot.lane.b32.xlu0 %v288, 24
  %v1634 = vpop.permute.xlu0 %1633
  %1635 = vrot.lane.b32.xlu0 %v399, 24
  %v1636 = vpop.permute.xlu0 %1635
  %1637 = vrot.lane.b32.xlu0 %v291, 24
  %v1638 = vpop.permute.xlu0 %1637
  %1639 = vrot.lane.b32.xlu0 %v400, 24
  %v1640 = vpop.permute.xlu0 %1639
  %1641 = vrot.lane.b32.xlu0 %v294, 24
  %v1642 = vpop.permute.xlu0 %1641
  %1643 = vrot.lane.b32.xlu0 %v401, 24
  %v1644 = vpop.permute.xlu0 %1643
  %1645 = vrot.lane.b32.xlu0 %v297, 24
  %v1646 = vpop.permute.xlu0 %1645
  %1647 = vrot.lane.b32.xlu0 %v402, 24
  %v1648 = vpop.permute.xlu0 %1647
  %1649 = vrot.lane.b32.xlu0 %v300, 24
  %v1650 = vpop.permute.xlu0 %1649
  %1651 = vrot.lane.b32.xlu0 %v403, 24
  %v1652 = vpop.permute.xlu0 %1651
  %1653 = vrot.lane.b32.xlu0 %v303, 24
  %v1654 = vpop.permute.xlu0 %1653
  %1655 = vrot.lane.b32.xlu0 %v404, 24
  %v1656 = vpop.permute.xlu0 %1655
  %1657 = vrot.lane.b32.xlu0 %v306, 24
  %v1658 = vpop.permute.xlu0 %1657
  %1659 = vrot.lane.b32.xlu0 %v405, 24
  %v1660 = vpop.permute.xlu0 %1659
  %1661 = vrot.lane.b32.xlu0 %v309, 24
  %v1662 = vpop.permute.xlu0 %1661
  %v1663 = vadd.f32 %v1477, %v1542
  %v1664 = vadd.f32 %v1478, %v1544
  %v1665 = vadd.f32 %v1479, %v1546
  %v1666 = vadd.f32 %v1480, %v1548
  %v1667 = vadd.f32 %v1481, %v1550
  %v1668 = vadd.f32 %v1482, %v1552
  %v1669 = vadd.f32 %v1483, %v1554
  %v1670 = vadd.f32 %v1484, %v1556
  %v1671 = vadd.f32 %v1485, %v1558
  %v1672 = vadd.f32 %v1486, %v1560
  %v1673 = vadd.f32 %v1487, %v1562
  %v1674 = vadd.f32 %v1488, %v1564
  %v1675 = vadd.f32 %v1489, %v1566
  %v1676 = vadd.f32 %v1490, %v1568
  %v1677 = vadd.f32 %v1491, %v1570
  %v1678 = vadd.f32 %v1492, %v1572
  %v1679 = vadd.f32 %v1493, %v1574
  %v1680 = vadd.f32 %v1494, %v1576
  %v1681 = vadd.f32 %v1495, %v1578
  %v1682 = vadd.f32 %v1496, %v1580
  %v1683 = vadd.f32 %v1497, %v1582
  %v1684 = vadd.f32 %v1498, %v1584
  %v1685 = vadd.f32 %v1499, %v1586
  %v1686 = vadd.f32 %v1500, %v1588
  %v1687 = vadd.f32 %v1501, %v1590
  %v1688 = vadd.f32 %v1502, %v1592
  %v1689 = vadd.f32 %v1503, %v1594
  %v1690 = vadd.f32 %v1504, %v1596
  %v1691 = vadd.f32 %v1505, %v1598
  %v1692 = vadd.f32 %v1506, %v1600
  %v1693 = vadd.f32 %v1507, %v1602
  %v1694 = vadd.f32 %v1508, %v1602
  %v1695 = vadd.f32 %v1509, %v1604
  %v1696 = vadd.f32 %v1510, %v1606
  %v1697 = vadd.f32 %v1511, %v1608
  %v1698 = vadd.f32 %v1512, %v1610
  %v1699 = vadd.f32 %v1513, %v1612
  %v1700 = vadd.f32 %v1514, %v1614
  %v1701 = vadd.f32 %v1515, %v1616
  %v1702 = vadd.f32 %v1516, %v1618
  %v1703 = vadd.f32 %v1517, %v1620
  %v1704 = vadd.f32 %v1518, %v1622
  %v1705 = vadd.f32 %v1519, %v1624
  %v1706 = vadd.f32 %v1520, %v1626
  %v1707 = vadd.f32 %v1521, %v1628
  %v1708 = vadd.f32 %v1522, %v1630
  %v1709 = vadd.f32 %v1523, %v1632
  %v1710 = vadd.f32 %v1524, %v1634
  %v1711 = vadd.f32 %v1525, %v1636
  %v1712 = vadd.f32 %v1526, %v1638
  %v1713 = vadd.f32 %v1527, %v1640
  %v1714 = vadd.f32 %v1528, %v1642
  %v1715 = vadd.f32 %v1529, %v1644
  %v1716 = vadd.f32 %v1530, %v1646
  %v1717 = vadd.f32 %v1531, %v1648
  %v1718 = vadd.f32 %v1532, %v1650
  %v1719 = vadd.f32 %v1533, %v1652
  %v1720 = vadd.f32 %v1534, %v1654
  %v1721 = vadd.f32 %v1535, %v1656
  %v1722 = vadd.f32 %v1536, %v1658
  %v1723 = vadd.f32 %v1537, %v1660
  %v1724 = vadd.f32 %v1538, %v1662
  %v1725 = vadd.f32 %v1539, %v1602
  %v1726 = vadd.f32 %v1540, %v1602
  %1727 = vrot.lane.b32.xlu0 %v87, 28
  %v1728 = vpop.permute.xlu0 %1727
  %1729 = vrot.lane.b32.xlu0 %v88, 28
  %v1730 = vpop.permute.xlu0 %1729
  %1731 = vrot.lane.b32.xlu0 %v89, 28
  %v1732 = vpop.permute.xlu0 %1731
  %1733 = vrot.lane.b32.xlu0 %v90, 28
  %v1734 = vpop.permute.xlu0 %1733
  %1735 = vrot.lane.b32.xlu0 %v91, 28
  %v1736 = vpop.permute.xlu0 %1735
  %1737 = vrot.lane.b32.xlu0 %v92, 28
  %v1738 = vpop.permute.xlu0 %1737
  %1739 = vrot.lane.b32.xlu0 %v93, 28
  %v1740 = vpop.permute.xlu0 %1739
  %1741 = vrot.lane.b32.xlu0 %v94, 28
  %v1742 = vpop.permute.xlu0 %1741
  %1743 = vrot.lane.b32.xlu0 %v95, 28
  %v1744 = vpop.permute.xlu0 %1743
  %1745 = vrot.lane.b32.xlu0 %v96, 28
  %v1746 = vpop.permute.xlu0 %1745
  %1747 = vrot.lane.b32.xlu0 %v97, 28
  %v1748 = vpop.permute.xlu0 %1747
  %1749 = vrot.lane.b32.xlu0 %v98, 28
  %v1750 = vpop.permute.xlu0 %1749
  %1751 = vrot.lane.b32.xlu0 %v99, 28
  %v1752 = vpop.permute.xlu0 %1751
  %1753 = vrot.lane.b32.xlu0 %v100, 28
  %v1754 = vpop.permute.xlu0 %1753
  %1755 = vrot.lane.b32.xlu0 %v101, 28
  %v1756 = vpop.permute.xlu0 %1755
  %1757 = vrot.lane.b32.xlu0 %v102, 28
  %v1758 = vpop.permute.xlu0 %1757
  %1759 = vrot.lane.b32.xlu0 %v103, 28
  %v1760 = vpop.permute.xlu0 %1759
  %1761 = vrot.lane.b32.xlu0 %v104, 28
  %v1762 = vpop.permute.xlu0 %1761
  %1763 = vrot.lane.b32.xlu0 %v105, 28
  %v1764 = vpop.permute.xlu0 %1763
  %1765 = vrot.lane.b32.xlu0 %v106, 28
  %v1766 = vpop.permute.xlu0 %1765
  %1767 = vrot.lane.b32.xlu0 %v107, 28
  %v1768 = vpop.permute.xlu0 %1767
  %1769 = vrot.lane.b32.xlu0 %v108, 28
  %v1770 = vpop.permute.xlu0 %1769
  %1771 = vrot.lane.b32.xlu0 %v109, 28
  %v1772 = vpop.permute.xlu0 %1771
  %1773 = vrot.lane.b32.xlu0 %v110, 28
  %v1774 = vpop.permute.xlu0 %1773
  %1775 = vrot.lane.b32.xlu0 %v111, 28
  %v1776 = vpop.permute.xlu0 %1775
  %1777 = vrot.lane.b32.xlu0 %v112, 28
  %v1778 = vpop.permute.xlu0 %1777
  %1779 = vrot.lane.b32.xlu0 %v113, 28
  %v1780 = vpop.permute.xlu0 %1779
  %1781 = vrot.lane.b32.xlu0 %v114, 28
  %v1782 = vpop.permute.xlu0 %1781
  %1783 = vrot.lane.b32.xlu0 %v115, 28
  %v1784 = vpop.permute.xlu0 %1783
  %1785 = vrot.lane.b32.xlu0 %v116, 28
  %v1786 = vpop.permute.xlu0 %1785
  %1787 = vrot.lane.b32.xlu0 0.0, 28
  %v1788 = vpop.permute.xlu0 %1787
  %1789 = vrot.lane.b32.xlu0 %v119, 28
  %v1790 = vpop.permute.xlu0 %1789
  %1791 = vrot.lane.b32.xlu0 %v120, 28
  %v1792 = vpop.permute.xlu0 %1791
  %1793 = vrot.lane.b32.xlu0 %v121, 28
  %v1794 = vpop.permute.xlu0 %1793
  %1795 = vrot.lane.b32.xlu0 %v122, 28
  %v1796 = vpop.permute.xlu0 %1795
  %1797 = vrot.lane.b32.xlu0 %v123, 28
  %v1798 = vpop.permute.xlu0 %1797
  %1799 = vrot.lane.b32.xlu0 %v124, 28
  %v1800 = vpop.permute.xlu0 %1799
  %1801 = vrot.lane.b32.xlu0 %v125, 28
  %v1802 = vpop.permute.xlu0 %1801
  %1803 = vrot.lane.b32.xlu0 %v126, 28
  %v1804 = vpop.permute.xlu0 %1803
  %1805 = vrot.lane.b32.xlu0 %v127, 28
  %v1806 = vpop.permute.xlu0 %1805
  %1807 = vrot.lane.b32.xlu0 %v128, 28
  %v1808 = vpop.permute.xlu0 %1807
  %1809 = vrot.lane.b32.xlu0 %v129, 28
  %v1810 = vpop.permute.xlu0 %1809
  %1811 = vrot.lane.b32.xlu0 %v130, 28
  %v1812 = vpop.permute.xlu0 %1811
  %1813 = vrot.lane.b32.xlu0 %v131, 28
  %v1814 = vpop.permute.xlu0 %1813
  %1815 = vrot.lane.b32.xlu0 %v132, 28
  %v1816 = vpop.permute.xlu0 %1815
  %1817 = vrot.lane.b32.xlu0 %v133, 28
  %v1818 = vpop.permute.xlu0 %1817
  %1819 = vrot.lane.b32.xlu0 %v134, 28
  %v1820 = vpop.permute.xlu0 %1819
  %1821 = vrot.lane.b32.xlu0 %v135, 28
  %v1822 = vpop.permute.xlu0 %1821
  %1823 = vrot.lane.b32.xlu0 %v136, 28
  %v1824 = vpop.permute.xlu0 %1823
  %1825 = vrot.lane.b32.xlu0 %v137, 28
  %v1826 = vpop.permute.xlu0 %1825
  %1827 = vrot.lane.b32.xlu0 %v138, 28
  %v1828 = vpop.permute.xlu0 %1827
  %1829 = vrot.lane.b32.xlu0 %v139, 28
  %v1830 = vpop.permute.xlu0 %1829
  %1831 = vrot.lane.b32.xlu0 %v140, 28
  %v1832 = vpop.permute.xlu0 %1831
  %1833 = vrot.lane.b32.xlu0 %v141, 28
  %v1834 = vpop.permute.xlu0 %1833
  %1835 = vrot.lane.b32.xlu0 %v142, 28
  %v1836 = vpop.permute.xlu0 %1835
  %1837 = vrot.lane.b32.xlu0 %v143, 28
  %v1838 = vpop.permute.xlu0 %1837
  %1839 = vrot.lane.b32.xlu0 %v144, 28
  %v1840 = vpop.permute.xlu0 %1839
  %1841 = vrot.lane.b32.xlu0 %v145, 28
  %v1842 = vpop.permute.xlu0 %1841
  %1843 = vrot.lane.b32.xlu0 %v146, 28
  %v1844 = vpop.permute.xlu0 %1843
  %1845 = vrot.lane.b32.xlu0 %v147, 28
  %v1846 = vpop.permute.xlu0 %1845
  %1847 = vrot.lane.b32.xlu0 %v148, 28
  %v1848 = vpop.permute.xlu0 %1847
  %v1849 = vadd.f32 %v1663, %v1728
  %v1850 = vadd.f32 %v1664, %v1730
  %v1851 = vadd.f32 %v1665, %v1732
  %v1852 = vadd.f32 %v1666, %v1734
  %v1853 = vadd.f32 %v1667, %v1736
  %v1854 = vadd.f32 %v1668, %v1738
  %v1855 = vadd.f32 %v1669, %v1740
  %v1856 = vadd.f32 %v1670, %v1742
  %v1857 = vadd.f32 %v1671, %v1744
  %v1858 = vadd.f32 %v1672, %v1746
  %v1859 = vadd.f32 %v1673, %v1748
  %v1860 = vadd.f32 %v1674, %v1750
  %v1861 = vadd.f32 %v1675, %v1752
  %v1862 = vadd.f32 %v1676, %v1754
  %v1863 = vadd.f32 %v1677, %v1756
  %v1864 = vadd.f32 %v1678, %v1758
  %v1865 = vadd.f32 %v1679, %v1760
  %v1866 = vadd.f32 %v1680, %v1762
  %v1867 = vadd.f32 %v1681, %v1764
  %v1868 = vadd.f32 %v1682, %v1766
  %v1869 = vadd.f32 %v1683, %v1768
  %v1870 = vadd.f32 %v1684, %v1770
  %v1871 = vadd.f32 %v1685, %v1772
  %v1872 = vadd.f32 %v1686, %v1774
  %v1873 = vadd.f32 %v1687, %v1776
  %v1874 = vadd.f32 %v1688, %v1778
  %v1875 = vadd.f32 %v1689, %v1780
  %v1876 = vadd.f32 %v1690, %v1782
  %v1877 = vadd.f32 %v1691, %v1784
  %v1878 = vadd.f32 %v1692, %v1786
  %v1879 = vadd.f32 %v1693, %v1788
  %v1880 = vadd.f32 %v1694, %v1788
  %v1881 = vadd.f32 %v1695, %v1790
  %v1882 = vadd.f32 %v1696, %v1792
  %v1883 = vadd.f32 %v1697, %v1794
  %v1884 = vadd.f32 %v1698, %v1796
  %v1885 = vadd.f32 %v1699, %v1798
  %v1886 = vadd.f32 %v1700, %v1800
  %v1887 = vadd.f32 %v1701, %v1802
  %v1888 = vadd.f32 %v1702, %v1804
  %v1889 = vadd.f32 %v1703, %v1806
  %v1890 = vadd.f32 %v1704, %v1808
  %v1891 = vadd.f32 %v1705, %v1810
  %v1892 = vadd.f32 %v1706, %v1812
  %v1893 = vadd.f32 %v1707, %v1814
  %v1894 = vadd.f32 %v1708, %v1816
  %v1895 = vadd.f32 %v1709, %v1818
  %v1896 = vadd.f32 %v1710, %v1820
  %v1897 = vadd.f32 %v1711, %v1822
  %v1898 = vadd.f32 %v1712, %v1824
  %v1899 = vadd.f32 %v1713, %v1826
  %v1900 = vadd.f32 %v1714, %v1828
  %v1901 = vadd.f32 %v1715, %v1830
  %v1902 = vadd.f32 %v1716, %v1832
  %v1903 = vadd.f32 %v1717, %v1834
  %v1904 = vadd.f32 %v1718, %v1836
  %v1905 = vadd.f32 %v1719, %v1838
  %v1906 = vadd.f32 %v1720, %v1840
  %v1907 = vadd.f32 %v1721, %v1842
  %v1908 = vadd.f32 %v1722, %v1844
  %v1909 = vadd.f32 %v1723, %v1846
  %v1910 = vadd.f32 %v1724, %v1848
  %v1911 = vadd.f32 %v1725, %v1788
  %v1912 = vadd.f32 %v1726, %v1788
  %1913 = vrot.lane.b32.xlu0 %v412, 32
  %v1914 = vpop.permute.xlu0 %1913
  %1915 = vrot.lane.b32.xlu0 %v568, 32
  %v1916 = vpop.permute.xlu0 %1915
  %1917 = vrot.lane.b32.xlu0 %v415, 32
  %v1918 = vpop.permute.xlu0 %1917
  %1919 = vrot.lane.b32.xlu0 %v569, 32
  %v1920 = vpop.permute.xlu0 %1919
  %1921 = vrot.lane.b32.xlu0 %v418, 32
  %v1922 = vpop.permute.xlu0 %1921
  %1923 = vrot.lane.b32.xlu0 %v570, 32
  %v1924 = vpop.permute.xlu0 %1923
  %1925 = vrot.lane.b32.xlu0 %v421, 32
  %v1926 = vpop.permute.xlu0 %1925
  %1927 = vrot.lane.b32.xlu0 %v571, 32
  %v1928 = vpop.permute.xlu0 %1927
  %1929 = vrot.lane.b32.xlu0 %v424, 32
  %v1930 = vpop.permute.xlu0 %1929
  %1931 = vrot.lane.b32.xlu0 %v572, 32
  %v1932 = vpop.permute.xlu0 %1931
  %1933 = vrot.lane.b32.xlu0 %v427, 32
  %v1934 = vpop.permute.xlu0 %1933
  %1935 = vrot.lane.b32.xlu0 %v573, 32
  %v1936 = vpop.permute.xlu0 %1935
  %1937 = vrot.lane.b32.xlu0 %v430, 32
  %v1938 = vpop.permute.xlu0 %1937
  %1939 = vrot.lane.b32.xlu0 %v574, 32
  %v1940 = vpop.permute.xlu0 %1939
  %1941 = vrot.lane.b32.xlu0 %v433, 32
  %v1942 = vpop.permute.xlu0 %1941
  %1943 = vrot.lane.b32.xlu0 %v575, 32
  %v1944 = vpop.permute.xlu0 %1943
  %1945 = vrot.lane.b32.xlu0 %v436, 32
  %v1946 = vpop.permute.xlu0 %1945
  %1947 = vrot.lane.b32.xlu0 %v576, 32
  %v1948 = vpop.permute.xlu0 %1947
  %1949 = vrot.lane.b32.xlu0 %v439, 32
  %v1950 = vpop.permute.xlu0 %1949
  %1951 = vrot.lane.b32.xlu0 %v577, 32
  %v1952 = vpop.permute.xlu0 %1951
  %1953 = vrot.lane.b32.xlu0 %v442, 32
  %v1954 = vpop.permute.xlu0 %1953
  %1955 = vrot.lane.b32.xlu0 %v578, 32
  %v1956 = vpop.permute.xlu0 %1955
  %1957 = vrot.lane.b32.xlu0 %v445, 32
  %v1958 = vpop.permute.xlu0 %1957
  %1959 = vrot.lane.b32.xlu0 %v579, 32
  %v1960 = vpop.permute.xlu0 %1959
  %1961 = vrot.lane.b32.xlu0 %v448, 32
  %v1962 = vpop.permute.xlu0 %1961
  %1963 = vrot.lane.b32.xlu0 %v580, 32
  %v1964 = vpop.permute.xlu0 %1963
  %1965 = vrot.lane.b32.xlu0 %v451, 32
  %v1966 = vpop.permute.xlu0 %1965
  %1967 = vrot.lane.b32.xlu0 %v581, 32
  %v1968 = vpop.permute.xlu0 %1967
  %1969 = vrot.lane.b32.xlu0 %v454, 32
  %v1970 = vpop.permute.xlu0 %1969
  %1971 = vrot.lane.b32.xlu0 %v582, 32
  %v1972 = vpop.permute.xlu0 %1971
  %1973 = vrot.lane.b32.xlu0 0.0, 32
  %v1974 = vpop.permute.xlu0 %1973
  %1975 = vrot.lane.b32.xlu0 %v460, 32
  %v1976 = vpop.permute.xlu0 %1975
  %1977 = vrot.lane.b32.xlu0 %v584, 32
  %v1978 = vpop.permute.xlu0 %1977
  %1979 = vrot.lane.b32.xlu0 %v463, 32
  %v1980 = vpop.permute.xlu0 %1979
  %1981 = vrot.lane.b32.xlu0 %v585, 32
  %v1982 = vpop.permute.xlu0 %1981
  %1983 = vrot.lane.b32.xlu0 %v466, 32
  %v1984 = vpop.permute.xlu0 %1983
  %1985 = vrot.lane.b32.xlu0 %v586, 32
  %v1986 = vpop.permute.xlu0 %1985
  %1987 = vrot.lane.b32.xlu0 %v469, 32
  %v1988 = vpop.permute.xlu0 %1987
  %1989 = vrot.lane.b32.xlu0 %v587, 32
  %v1990 = vpop.permute.xlu0 %1989
  %1991 = vrot.lane.b32.xlu0 %v472, 32
  %v1992 = vpop.permute.xlu0 %1991
  %1993 = vrot.lane.b32.xlu0 %v588, 32
  %v1994 = vpop.permute.xlu0 %1993
  %1995 = vrot.lane.b32.xlu0 %v475, 32
  %v1996 = vpop.permute.xlu0 %1995
  %1997 = vrot.lane.b32.xlu0 %v589, 32
  %v1998 = vpop.permute.xlu0 %1997
  %1999 = vrot.lane.b32.xlu0 %v478, 32
  %v2000 = vpop.permute.xlu0 %1999
  %2001 = vrot.lane.b32.xlu0 %v590, 32
  %v2002 = vpop.permute.xlu0 %2001
  %2003 = vrot.lane.b32.xlu0 %v481, 32
  %v2004 = vpop.permute.xlu0 %2003
  %2005 = vrot.lane.b32.xlu0 %v591, 32
  %v2006 = vpop.permute.xlu0 %2005
  %2007 = vrot.lane.b32.xlu0 %v484, 32
  %v2008 = vpop.permute.xlu0 %2007
  %2009 = vrot.lane.b32.xlu0 %v592, 32
  %v2010 = vpop.permute.xlu0 %2009
  %2011 = vrot.lane.b32.xlu0 %v487, 32
  %v2012 = vpop.permute.xlu0 %2011
  %2013 = vrot.lane.b32.xlu0 %v593, 32
  %v2014 = vpop.permute.xlu0 %2013
  %2015 = vrot.lane.b32.xlu0 %v490, 32
  %v2016 = vpop.permute.xlu0 %2015
  %2017 = vrot.lane.b32.xlu0 %v594, 32
  %v2018 = vpop.permute.xlu0 %2017
  %2019 = vrot.lane.b32.xlu0 %v493, 32
  %v2020 = vpop.permute.xlu0 %2019
  %2021 = vrot.lane.b32.xlu0 %v595, 32
  %v2022 = vpop.permute.xlu0 %2021
  %2023 = vrot.lane.b32.xlu0 %v496, 32
  %v2024 = vpop.permute.xlu0 %2023
  %2025 = vrot.lane.b32.xlu0 %v596, 32
  %v2026 = vpop.permute.xlu0 %2025
  %2027 = vrot.lane.b32.xlu0 %v499, 32
  %v2028 = vpop.permute.xlu0 %2027
  %2029 = vrot.lane.b32.xlu0 %v597, 32
  %v2030 = vpop.permute.xlu0 %2029
  %2031 = vrot.lane.b32.xlu0 %v502, 32
  %v2032 = vpop.permute.xlu0 %2031
  %2033 = vrot.lane.b32.xlu0 %v598, 32
  %v2034 = vpop.permute.xlu0 %2033
  %v2035 = vadd.f32 %v1849, %v1914
  %v2036 = vadd.f32 %v1850, %v1916
  %v2037 = vadd.f32 %v1851, %v1918
  %v2038 = vadd.f32 %v1852, %v1920
  %v2039 = vadd.f32 %v1853, %v1922
  %v2040 = vadd.f32 %v1854, %v1924
  %v2041 = vadd.f32 %v1855, %v1926
  %v2042 = vadd.f32 %v1856, %v1928
  %v2043 = vadd.f32 %v1857, %v1930
  %v2044 = vadd.f32 %v1858, %v1932
  %v2045 = vadd.f32 %v1859, %v1934
  %v2046 = vadd.f32 %v1860, %v1936
  %v2047 = vadd.f32 %v1861, %v1938
  %v2048 = vadd.f32 %v1862, %v1940
  %v2049 = vadd.f32 %v1863, %v1942
  %v2050 = vadd.f32 %v1864, %v1944
  %v2051 = vadd.f32 %v1865, %v1946
  %v2052 = vadd.f32 %v1866, %v1948
  %v2053 = vadd.f32 %v1867, %v1950
  %v2054 = vadd.f32 %v1868, %v1952
  %v2055 = vadd.f32 %v1869, %v1954
  %v2056 = vadd.f32 %v1870, %v1956
  %v2057 = vadd.f32 %v1871, %v1958
  %v2058 = vadd.f32 %v1872, %v1960
  %v2059 = vadd.f32 %v1873, %v1962
  %v2060 = vadd.f32 %v1874, %v1964
  %v2061 = vadd.f32 %v1875, %v1966
  %v2062 = vadd.f32 %v1876, %v1968
  %v2063 = vadd.f32 %v1877, %v1970
  %v2064 = vadd.f32 %v1878, %v1972
  %v2065 = vadd.f32 %v1879, %v1974
  %v2066 = vadd.f32 %v1880, %v1974
  %v2067 = vadd.f32 %v1881, %v1976
  %v2068 = vadd.f32 %v1882, %v1978
  %v2069 = vadd.f32 %v1883, %v1980
  %v2070 = vadd.f32 %v1884, %v1982
  %v2071 = vadd.f32 %v1885, %v1984
  %v2072 = vadd.f32 %v1886, %v1986
  %v2073 = vadd.f32 %v1887, %v1988
  %v2074 = vadd.f32 %v1888, %v1990
  %v2075 = vadd.f32 %v1889, %v1992
  %v2076 = vadd.f32 %v1890, %v1994
  %v2077 = vadd.f32 %v1891, %v1996
  %v2078 = vadd.f32 %v1892, %v1998
  %v2079 = vadd.f32 %v1893, %v2000
  %v2080 = vadd.f32 %v1894, %v2002
  %v2081 = vadd.f32 %v1895, %v2004
  %v2082 = vadd.f32 %v1896, %v2006
  %v2083 = vadd.f32 %v1897, %v2008
  %v2084 = vadd.f32 %v1898, %v2010
  %v2085 = vadd.f32 %v1899, %v2012
  %v2086 = vadd.f32 %v1900, %v2014
  %v2087 = vadd.f32 %v1901, %v2016
  %v2088 = vadd.f32 %v1902, %v2018
  %v2089 = vadd.f32 %v1903, %v2020
  %v2090 = vadd.f32 %v1904, %v2022
  %v2091 = vadd.f32 %v1905, %v2024
  %v2092 = vadd.f32 %v1906, %v2026
  %v2093 = vadd.f32 %v1907, %v2028
  %v2094 = vadd.f32 %v1908, %v2030
  %v2095 = vadd.f32 %v1909, %v2032
  %v2096 = vadd.f32 %v1910, %v2034
  %v2097 = vadd.f32 %v1911, %v1974
  %v2098 = vadd.f32 %v1912, %v1974
  %v2099 = vld [vmem:[%s1] sm:$0xff]
  %v2100 = vld [vmem:[%s1 + $0x8] sm:$0xff]
  %v2101 = vld [vmem:[%s1 + $0x10] sm:$0xff]
  %v2102 = vld [vmem:[%s1 + $0x18] sm:$0xff]
  %v2103 = vld [vmem:[%s1 + $0x20] sm:$0xff]
  %v2104 = vld [vmem:[%s1 + $0x28] sm:$0xff]
  %v2105 = vld [vmem:[%s1 + $0x30] sm:$0xff]
  %v2106 = vld [vmem:[%s1 + $0x38] sm:$0xff]
  %v2107 = vld [vmem:[%s1 + $0x40] sm:$0xff]
  %v2108 = vld [vmem:[%s1 + $0x48] sm:$0xff]
  %v2109 = vld [vmem:[%s1 + $0x50] sm:$0xff]
  %v2110 = vld [vmem:[%s1 + $0x58] sm:$0xff]
  %v2111 = vld [vmem:[%s1 + $0x60] sm:$0xff]
  %v2112 = vld [vmem:[%s1 + $0x68] sm:$0xff]
  %v2113 = vld [vmem:[%s1 + $0x70] sm:$0xff]
  %v2114 = vld [vmem:[%s1 + $0x78] sm:$0xff]
  %v2115 = vld [vmem:[%s2] sm:$0x1]
  %v2117 = vlaneseq
  %v2118 = vshrl.u32 %v2117, 7
  %v2119 = vsub.s32 0, %v2118
  %v2120 = vrot.slane %v2115, %v2119
  %2122 = vmatprep.subr.mxu0 0.0
  %2123 = vmatpush1.msra.mxu0 %v2114
  %2124 = vmatprep.subr.mxu0 0.0
  %2125 = vmatpush1.msra.mxu0 %v2113
  %2126 = vmatprep.subr.mxu0 0.0
  %2127 = vmatpush1.msra.mxu0 %v2112
  %2128 = vmatprep.subr.mxu0 0.0
  %2129 = vmatpush1.msra.mxu0 %v2111
  %2130 = vmatprep.subr.mxu0 0.0
  %2131 = vmatpush1.msra.mxu0 %v2110
  %2132 = vmatprep.subr.mxu0 0.0
  %2133 = vmatpush1.msra.mxu0 %v2109
  %2134 = vmatprep.subr.mxu0 0.0
  %2135 = vmatpush1.msra.mxu0 %v2108
  %2136 = vmatprep.subr.mxu0 0.0
  %2137 = vmatpush1.msra.mxu0 %v2107
  %2138 = vmatprep.subr.mxu0 0.0
  %2139 = vmatpush1.msra.mxu0 %v2106
  %2140 = vmatprep.subr.mxu0 0.0
  %2141 = vmatpush1.msra.mxu0 %v2105
  %2142 = vmatprep.subr.mxu0 0.0
  %2143 = vmatpush1.msra.mxu0 %v2104
  %2144 = vmatprep.subr.mxu0 0.0
  %2145 = vmatpush1.msra.mxu0 %v2103
  %2146 = vmatprep.subr.mxu0 0.0
  %2147 = vmatpush1.msra.mxu0 %v2102
  %2148 = vmatprep.subr.mxu0 0.0
  %2149 = vmatpush1.msra.mxu0 %v2101
  %2150 = vmatprep.subr.mxu0 0.0
  %2151 = vmatpush1.msra.mxu0 %v2100
  %2152 = vmatprep.subr.mxu0 0.0
  %2153 = vmatpush1.msra.mxu0 %v2099
  %2154 = vmatprep.subr.mxu0 0.0
  %2155 = vmatpush2.msra.mxu0 0.0
  %2156 = vmatprep.subr.mxu0 0.0
  %2157 = vmatpush2.msra.mxu0 0.0
  %2158 = vmatprep.subr.mxu0 0.0
  %2159 = vmatpush2.msra.mxu0 0.0
  %2160 = vmatprep.subr.mxu0 0.0
  %2161 = vmatpush2.msra.mxu0 0.0
  %2162 = vmatprep.subr.mxu0 0.0
  %2163 = vmatpush2.msra.mxu0 0.0
  %2164 = vmatprep.subr.mxu0 0.0
  %2165 = vmatpush2.msra.mxu0 0.0
  %2166 = vmatprep.subr.mxu0 0.0
  %2167 = vmatpush2.msra.mxu0 0.0
  %2168 = vmatprep.subr.mxu0 0.0
  %2169 = vmatpush2.msra.mxu0 0.0
  %2170 = vmatprep.subr.mxu0 0.0
  %2171 = vmatpush2.msra.mxu0 0.0
  %2172 = vmatprep.subr.mxu0 0.0
  %2173 = vmatpush2.msra.mxu0 0.0
  %2174 = vmatprep.subr.mxu0 0.0
  %2175 = vmatpush2.msra.mxu0 0.0
  %2176 = vmatprep.subr.mxu0 0.0
  %2177 = vmatpush2.msra.mxu0 0.0
  %2178 = vmatprep.subr.mxu0 0.0
  %2179 = vmatpush2.msra.mxu0 0.0
  %2180 = vmatprep.subr.mxu0 0.0
  %2181 = vmatpush2.msra.mxu0 0.0
  %2182 = vmatprep.subr.mxu0 0.0
  %2183 = vmatpush2.msra.mxu0 0.0
  %2184 = vmatprep.subr.mxu0 0.0
  %2185 = vmatpush2.msra.mxu0 0.0
  %2186 = vmatprep.mubr.f32.mxu0 0.0
  %2187 = vmatmul.mubr.f32.gmra.mxu0 %v2035
  %v2188 = vpop.f32.mrf.mxu0
  %v2189 = vadd.f32 %v2120, %v2188
  %v2190 = vpop.f32.mrf.mxu0
  %2191 = vmatprep.mubr.f32.mxu0 0.0
  %2192 = vmatmul.mubr.f32.gmra.mxu0 %v2036
  %v2193 = vpop.f32.mrf.mxu0
  %v2194 = vadd.f32 %v2120, %v2193
  %v2195 = vpop.f32.mrf.mxu0
  %2196 = vmatprep.mubr.f32.mxu0 0.0
  %2197 = vmatmul.mubr.f32.gmra.mxu0 %v2037
  %v2198 = vpop.f32.mrf.mxu0
  %v2199 = vadd.f32 %v2120, %v2198
  %v2200 = vpop.f32.mrf.mxu0
  %2201 = vmatprep.mubr.f32.mxu0 0.0
  %2202 = vmatmul.mubr.f32.gmra.mxu0 %v2038
  %v2203 = vpop.f32.mrf.mxu0
  %v2204 = vadd.f32 %v2120, %v2203
  %v2205 = vpop.f32.mrf.mxu0
  %2206 = vmatprep.mubr.f32.mxu0 0.0
  %2207 = vmatmul.mubr.f32.gmra.mxu0 %v2039
  %v2208 = vpop.f32.mrf.mxu0
  %v2209 = vadd.f32 %v2120, %v2208
  %v2210 = vpop.f32.mrf.mxu0
  %2211 = vmatprep.mubr.f32.mxu0 0.0
  %2212 = vmatmul.mubr.f32.gmra.mxu0 %v2040
  %v2213 = vpop.f32.mrf.mxu0
  %v2214 = vadd.f32 %v2120, %v2213
  %v2215 = vpop.f32.mrf.mxu0
  %2216 = vmatprep.mubr.f32.mxu0 0.0
  %2217 = vmatmul.mubr.f32.gmra.mxu0 %v2041
  %v2218 = vpop.f32.mrf.mxu0
  %v2219 = vadd.f32 %v2120, %v2218
  %v2220 = vpop.f32.mrf.mxu0
  %2221 = vmatprep.mubr.f32.mxu0 0.0
  %2222 = vmatmul.mubr.f32.gmra.mxu0 %v2042
  %v2223 = vpop.f32.mrf.mxu0
  %v2224 = vadd.f32 %v2120, %v2223
  %v2225 = vpop.f32.mrf.mxu0
  %2226 = vmatprep.mubr.f32.mxu0 0.0
  %2227 = vmatmul.mubr.f32.gmra.mxu0 %v2043
  %v2228 = vpop.f32.mrf.mxu0
  %v2229 = vadd.f32 %v2120, %v2228
  %v2230 = vpop.f32.mrf.mxu0
  %2231 = vmatprep.mubr.f32.mxu0 0.0
  %2232 = vmatmul.mubr.f32.gmra.mxu0 %v2044
  %v2233 = vpop.f32.mrf.mxu0
  %v2234 = vadd.f32 %v2120, %v2233
  %v2235 = vpop.f32.mrf.mxu0
  %2236 = vmatprep.mubr.f32.mxu0 0.0
  %2237 = vmatmul.mubr.f32.gmra.mxu0 %v2045
  %v2238 = vpop.f32.mrf.mxu0
  %v2239 = vadd.f32 %v2120, %v2238
  %v2240 = vpop.f32.mrf.mxu0
  %2241 = vmatprep.mubr.f32.mxu0 0.0
  %2242 = vmatmul.mubr.f32.gmra.mxu0 %v2046
  %v2243 = vpop.f32.mrf.mxu0
  %v2244 = vadd.f32 %v2120, %v2243
  %v2245 = vpop.f32.mrf.mxu0
  %2246 = vmatprep.mubr.f32.mxu0 0.0
  %2247 = vmatmul.mubr.f32.gmra.mxu0 %v2047
  %v2248 = vpop.f32.mrf.mxu0
  %v2249 = vadd.f32 %v2120, %v2248
  %v2250 = vpop.f32.mrf.mxu0
  %2251 = vmatprep.mubr.f32.mxu0 0.0
  %2252 = vmatmul.mubr.f32.gmra.mxu0 %v2048
  %v2253 = vpop.f32.mrf.mxu0
  %v2254 = vadd.f32 %v2120, %v2253
  %v2255 = vpop.f32.mrf.mxu0
  %2256 = vmatprep.mubr.f32.mxu0 0.0
  %2257 = vmatmul.mubr.f32.gmra.mxu0 %v2049
  %v2258 = vpop.f32.mrf.mxu0
  %v2259 = vadd.f32 %v2120, %v2258
  %v2260 = vpop.f32.mrf.mxu0
  %2261 = vmatprep.mubr.f32.mxu0 0.0
  %2262 = vmatmul.mubr.f32.gmra.mxu0 %v2050
  %v2263 = vpop.f32.mrf.mxu0
  %v2264 = vadd.f32 %v2120, %v2263
  %v2265 = vpop.f32.mrf.mxu0
  %2266 = vmatprep.mubr.f32.mxu0 0.0
  %2267 = vmatmul.mubr.f32.gmra.mxu0 %v2051
  %v2268 = vpop.f32.mrf.mxu0
  %v2269 = vadd.f32 %v2120, %v2268
  %v2270 = vpop.f32.mrf.mxu0
  %2271 = vmatprep.mubr.f32.mxu0 0.0
  %2272 = vmatmul.mubr.f32.gmra.mxu0 %v2052
  %v2273 = vpop.f32.mrf.mxu0
  %v2274 = vadd.f32 %v2120, %v2273
  %v2275 = vpop.f32.mrf.mxu0
  %2276 = vmatprep.mubr.f32.mxu0 0.0
  %2277 = vmatmul.mubr.f32.gmra.mxu0 %v2053
  %v2278 = vpop.f32.mrf.mxu0
  %v2279 = vadd.f32 %v2120, %v2278
  %v2280 = vpop.f32.mrf.mxu0
  %2281 = vmatprep.mubr.f32.mxu0 0.0
  %2282 = vmatmul.mubr.f32.gmra.mxu0 %v2054
  %v2283 = vpop.f32.mrf.mxu0
  %v2284 = vadd.f32 %v2120, %v2283
  %v2285 = vpop.f32.mrf.mxu0
  %2286 = vmatprep.mubr.f32.mxu0 0.0
  %2287 = vmatmul.mubr.f32.gmra.mxu0 %v2055
  %v2288 = vpop.f32.mrf.mxu0
  %v2289 = vadd.f32 %v2120, %v2288
  %v2290 = vpop.f32.mrf.mxu0
  %2291 = vmatprep.mubr.f32.mxu0 0.0
  %2292 = vmatmul.mubr.f32.gmra.mxu0 %v2056
  %v2293 = vpop.f32.mrf.mxu0
  %v2294 = vadd.f32 %v2120, %v2293
  %v2295 = vpop.f32.mrf.mxu0
  %2296 = vmatprep.mubr.f32.mxu0 0.0
  %2297 = vmatmul.mubr.f32.gmra.mxu0 %v2057
  %v2298 = vpop.f32.mrf.mxu0
  %v2299 = vadd.f32 %v2120, %v2298
  %v2300 = vpop.f32.mrf.mxu0
  %2301 = vmatprep.mubr.f32.mxu0 0.0
  %2302 = vmatmul.mubr.f32.gmra.mxu0 %v2058
  %v2303 = vpop.f32.mrf.mxu0
  %v2304 = vadd.f32 %v2120, %v2303
  %v2305 = vpop.f32.mrf.mxu0
  %2306 = vmatprep.mubr.f32.mxu0 0.0
  %2307 = vmatmul.mubr.f32.gmra.mxu0 %v2059
  %v2308 = vpop.f32.mrf.mxu0
  %v2309 = vadd.f32 %v2120, %v2308
  %v2310 = vpop.f32.mrf.mxu0
  %2311 = vmatprep.mubr.f32.mxu0 0.0
  %2312 = vmatmul.mubr.f32.gmra.mxu0 %v2060
  %v2313 = vpop.f32.mrf.mxu0
  %v2314 = vadd.f32 %v2120, %v2313
  %v2315 = vpop.f32.mrf.mxu0
  %2316 = vmatprep.mubr.f32.mxu0 0.0
  %2317 = vmatmul.mubr.f32.gmra.mxu0 %v2061
  %v2318 = vpop.f32.mrf.mxu0
  %v2319 = vadd.f32 %v2120, %v2318
  %v2320 = vpop.f32.mrf.mxu0
  %2321 = vmatprep.mubr.f32.mxu0 0.0
  %2322 = vmatmul.mubr.f32.gmra.mxu0 %v2062
  %v2323 = vpop.f32.mrf.mxu0
  %v2324 = vadd.f32 %v2120, %v2323
  %v2325 = vpop.f32.mrf.mxu0
  %2326 = vmatprep.mubr.f32.mxu0 0.0
  %2327 = vmatmul.mubr.f32.gmra.mxu0 %v2063
  %v2328 = vpop.f32.mrf.mxu0
  %v2329 = vadd.f32 %v2120, %v2328
  %v2330 = vpop.f32.mrf.mxu0
  %2331 = vmatprep.mubr.f32.mxu0 0.0
  %2332 = vmatmul.mubr.f32.gmra.mxu0 %v2064
  %v2333 = vpop.f32.mrf.mxu0
  %v2334 = vadd.f32 %v2120, %v2333
  %v2335 = vpop.f32.mrf.mxu0
  %2336 = vmatprep.mubr.f32.mxu0 0.0
  %2337 = vmatmul.mubr.f32.gmra.mxu0 %v2065
  %v2338 = vpop.f32.mrf.mxu0
  %v2339 = vadd.f32 %v2120, %v2338
  %v2340 = vpop.f32.mrf.mxu0
  %2341 = vmatprep.mubr.f32.mxu0 0.0
  %2342 = vmatmul.mubr.f32.gmra.mxu0 %v2066
  %v2343 = vpop.f32.mrf.mxu0
  %v2344 = vadd.f32 %v2120, %v2343
  %v2345 = vpop.f32.mrf.mxu0
  %2346 = vmatprep.mubr.f32.mxu0 0.0
  %2347 = vmatmul.mubr.f32.gmra.mxu0 %v2067
  %v2348 = vpop.f32.mrf.mxu0
  %v2349 = vadd.f32 %v2120, %v2348
  %v2350 = vpop.f32.mrf.mxu0
  %2351 = vmatprep.mubr.f32.mxu0 0.0
  %2352 = vmatmul.mubr.f32.gmra.mxu0 %v2068
  %v2353 = vpop.f32.mrf.mxu0
  %v2354 = vadd.f32 %v2120, %v2353
  %v2355 = vpop.f32.mrf.mxu0
  %2356 = vmatprep.mubr.f32.mxu0 0.0
  %2357 = vmatmul.mubr.f32.gmra.mxu0 %v2069
  %v2358 = vpop.f32.mrf.mxu0
  %v2359 = vadd.f32 %v2120, %v2358
  %v2360 = vpop.f32.mrf.mxu0
  %2361 = vmatprep.mubr.f32.mxu0 0.0
  %2362 = vmatmul.mubr.f32.gmra.mxu0 %v2070
  %v2363 = vpop.f32.mrf.mxu0
  %v2364 = vadd.f32 %v2120, %v2363
  %v2365 = vpop.f32.mrf.mxu0
  %2366 = vmatprep.mubr.f32.mxu0 0.0
  %2367 = vmatmul.mubr.f32.gmra.mxu0 %v2071
  %v2368 = vpop.f32.mrf.mxu0
  %v2369 = vadd.f32 %v2120, %v2368
  %v2370 = vpop.f32.mrf.mxu0
  %2371 = vmatprep.mubr.f32.mxu0 0.0
  %2372 = vmatmul.mubr.f32.gmra.mxu0 %v2072
  %v2373 = vpop.f32.mrf.mxu0
  %v2374 = vadd.f32 %v2120, %v2373
  %v2375 = vpop.f32.mrf.mxu0
  %2376 = vmatprep.mubr.f32.mxu0 0.0
  %2377 = vmatmul.mubr.f32.gmra.mxu0 %v2073
  %v2378 = vpop.f32.mrf.mxu0
  %v2379 = vadd.f32 %v2120, %v2378
  %v2380 = vpop.f32.mrf.mxu0
  %2381 = vmatprep.mubr.f32.mxu0 0.0
  %2382 = vmatmul.mubr.f32.gmra.mxu0 %v2074
  %v2383 = vpop.f32.mrf.mxu0
  %v2384 = vadd.f32 %v2120, %v2383
  %v2385 = vpop.f32.mrf.mxu0
  %2386 = vmatprep.mubr.f32.mxu0 0.0
  %2387 = vmatmul.mubr.f32.gmra.mxu0 %v2075
  %v2388 = vpop.f32.mrf.mxu0
  %v2389 = vadd.f32 %v2120, %v2388
  %v2390 = vpop.f32.mrf.mxu0
  %2391 = vmatprep.mubr.f32.mxu0 0.0
  %2392 = vmatmul.mubr.f32.gmra.mxu0 %v2076
  %v2393 = vpop.f32.mrf.mxu0
  %v2394 = vadd.f32 %v2120, %v2393
  %v2395 = vpop.f32.mrf.mxu0
  %2396 = vmatprep.mubr.f32.mxu0 0.0
  %2397 = vmatmul.mubr.f32.gmra.mxu0 %v2077
  %v2398 = vpop.f32.mrf.mxu0
  %v2399 = vadd.f32 %v2120, %v2398
  %v2400 = vpop.f32.mrf.mxu0
  %2401 = vmatprep.mubr.f32.mxu0 0.0
  %2402 = vmatmul.mubr.f32.gmra.mxu0 %v2078
  %v2403 = vpop.f32.mrf.mxu0
  %v2404 = vadd.f32 %v2120, %v2403
  %v2405 = vpop.f32.mrf.mxu0
  %2406 = vmatprep.mubr.f32.mxu0 0.0
  %2407 = vmatmul.mubr.f32.gmra.mxu0 %v2079
  %v2408 = vpop.f32.mrf.mxu0
  %v2409 = vadd.f32 %v2120, %v2408
  %v2410 = vpop.f32.mrf.mxu0
  %2411 = vmatprep.mubr.f32.mxu0 0.0
  %2412 = vmatmul.mubr.f32.gmra.mxu0 %v2080
  %v2413 = vpop.f32.mrf.mxu0
  %v2414 = vadd.f32 %v2120, %v2413
  %v2415 = vpop.f32.mrf.mxu0
  %2416 = vmatprep.mubr.f32.mxu0 0.0
  %2417 = vmatmul.mubr.f32.gmra.mxu0 %v2081
  %v2418 = vpop.f32.mrf.mxu0
  %v2419 = vadd.f32 %v2120, %v2418
  %v2420 = vpop.f32.mrf.mxu0
  %2421 = vmatprep.mubr.f32.mxu0 0.0
  %2422 = vmatmul.mubr.f32.gmra.mxu0 %v2082
  %v2423 = vpop.f32.mrf.mxu0
  %v2424 = vadd.f32 %v2120, %v2423
  %v2425 = vpop.f32.mrf.mxu0
  %2426 = vmatprep.mubr.f32.mxu0 0.0
  %2427 = vmatmul.mubr.f32.gmra.mxu0 %v2083
  %v2428 = vpop.f32.mrf.mxu0
  %v2429 = vadd.f32 %v2120, %v2428
  %v2430 = vpop.f32.mrf.mxu0
  %2431 = vmatprep.mubr.f32.mxu0 0.0
  %2432 = vmatmul.mubr.f32.gmra.mxu0 %v2084
  %v2433 = vpop.f32.mrf.mxu0
  %v2434 = vadd.f32 %v2120, %v2433
  %v2435 = vpop.f32.mrf.mxu0
  %2436 = vmatprep.mubr.f32.mxu0 0.0
  %2437 = vmatmul.mubr.f32.gmra.mxu0 %v2085
  %v2438 = vpop.f32.mrf.mxu0
  %v2439 = vadd.f32 %v2120, %v2438
  %v2440 = vpop.f32.mrf.mxu0
  %2441 = vmatprep.mubr.f32.mxu0 0.0
  %2442 = vmatmul.mubr.f32.gmra.mxu0 %v2086
  %v2443 = vpop.f32.mrf.mxu0
  %v2444 = vadd.f32 %v2120, %v2443
  %v2445 = vpop.f32.mrf.mxu0
  %2446 = vmatprep.mubr.f32.mxu0 0.0
  %2447 = vmatmul.mubr.f32.gmra.mxu0 %v2087
  %v2448 = vpop.f32.mrf.mxu0
  %v2449 = vadd.f32 %v2120, %v2448
  %v2450 = vpop.f32.mrf.mxu0
  %2451 = vmatprep.mubr.f32.mxu0 0.0
  %2452 = vmatmul.mubr.f32.gmra.mxu0 %v2088
  %v2453 = vpop.f32.mrf.mxu0
  %v2454 = vadd.f32 %v2120, %v2453
  %v2455 = vpop.f32.mrf.mxu0
  %2456 = vmatprep.mubr.f32.mxu0 0.0
  %2457 = vmatmul.mubr.f32.gmra.mxu0 %v2089
  %v2458 = vpop.f32.mrf.mxu0
  %v2459 = vadd.f32 %v2120, %v2458
  %v2460 = vpop.f32.mrf.mxu0
  %2461 = vmatprep.mubr.f32.mxu0 0.0
  %2462 = vmatmul.mubr.f32.gmra.mxu0 %v2090
  %v2463 = vpop.f32.mrf.mxu0
  %v2464 = vadd.f32 %v2120, %v2463
  %v2465 = vpop.f32.mrf.mxu0
  %2466 = vmatprep.mubr.f32.mxu0 0.0
  %2467 = vmatmul.mubr.f32.gmra.mxu0 %v2091
  %v2468 = vpop.f32.mrf.mxu0
  %v2469 = vadd.f32 %v2120, %v2468
  %v2470 = vpop.f32.mrf.mxu0
  %2471 = vmatprep.mubr.f32.mxu0 0.0
  %2472 = vmatmul.mubr.f32.gmra.mxu0 %v2092
  %v2473 = vpop.f32.mrf.mxu0
  %v2474 = vadd.f32 %v2120, %v2473
  %v2475 = vpop.f32.mrf.mxu0
  %2476 = vmatprep.mubr.f32.mxu0 0.0
  %2477 = vmatmul.mubr.f32.gmra.mxu0 %v2093
  %v2478 = vpop.f32.mrf.mxu0
  %v2479 = vadd.f32 %v2120, %v2478
  %v2480 = vpop.f32.mrf.mxu0
  %2481 = vmatprep.mubr.f32.mxu0 0.0
  %2482 = vmatmul.mubr.f32.gmra.mxu0 %v2094
  %v2483 = vpop.f32.mrf.mxu0
  %v2484 = vadd.f32 %v2120, %v2483
  %v2485 = vpop.f32.mrf.mxu0
  %2486 = vmatprep.mubr.f32.mxu0 0.0
  %2487 = vmatmul.mubr.f32.gmra.mxu0 %v2095
  %v2488 = vpop.f32.mrf.mxu0
  %v2489 = vadd.f32 %v2120, %v2488
  %v2490 = vpop.f32.mrf.mxu0
  %2491 = vmatprep.mubr.f32.mxu0 0.0
  %2492 = vmatmul.mubr.f32.gmra.mxu0 %v2096
  %v2493 = vpop.f32.mrf.mxu0
  %v2494 = vadd.f32 %v2120, %v2493
  %v2495 = vpop.f32.mrf.mxu0
  %2496 = vmatprep.mubr.f32.mxu0 0.0
  %2497 = vmatmul.mubr.f32.gmra.mxu0 %v2097
  %v2498 = vpop.f32.mrf.mxu0
  %v2499 = vadd.f32 %v2120, %v2498
  %v2500 = vpop.f32.mrf.mxu0
  %2501 = vmatprep.mubr.f32.mxu0 0.0
  %2502 = vmatmul.mubr.f32.gmra.mxu0 %v2098
  %v2503 = vpop.f32.mrf.mxu0
  %v2504 = vadd.f32 %v2120, %v2503
  %v2505 = vpop.f32.mrf.mxu0
  %2506 = vdwg.mxu0
  %v2507 = vmax.f32 %v2189, 0.0
  %v2508 = vmax.f32 %v2194, 0.0
  %v2509 = vmax.f32 %v2199, 0.0
  %v2510 = vmax.f32 %v2204, 0.0
  %v2511 = vmax.f32 %v2209, 0.0
  %v2512 = vmax.f32 %v2214, 0.0
  %v2513 = vmax.f32 %v2219, 0.0
  %v2514 = vmax.f32 %v2224, 0.0
  %v2515 = vmax.f32 %v2229, 0.0
  %v2516 = vmax.f32 %v2234, 0.0
  %v2517 = vmax.f32 %v2239, 0.0
  %v2518 = vmax.f32 %v2244, 0.0
  %v2519 = vmax.f32 %v2249, 0.0
  %v2520 = vmax.f32 %v2254, 0.0
  %v2521 = vmax.f32 %v2259, 0.0
  %v2522 = vmax.f32 %v2264, 0.0
  %v2523 = vmax.f32 %v2269, 0.0
  %v2524 = vmax.f32 %v2274, 0.0
  %v2525 = vmax.f32 %v2279, 0.0
  %v2526 = vmax.f32 %v2284, 0.0
  %v2527 = vmax.f32 %v2289, 0.0
  %v2528 = vmax.f32 %v2294, 0.0
  %v2529 = vmax.f32 %v2299, 0.0
  %v2530 = vmax.f32 %v2304, 0.0
  %v2531 = vmax.f32 %v2309, 0.0
  %v2532 = vmax.f32 %v2314, 0.0
  %v2533 = vmax.f32 %v2319, 0.0
  %v2534 = vmax.f32 %v2324, 0.0
  %v2535 = vmax.f32 %v2329, 0.0
  %v2536 = vmax.f32 %v2334, 0.0
  %v2537 = vmax.f32 %v2339, 0.0
  %v2538 = vmax.f32 %v2344, 0.0
  %v2539 = vmax.f32 %v2349, 0.0
  %v2540 = vmax.f32 %v2354, 0.0
  %v2541 = vmax.f32 %v2359, 0.0
  %v2542 = vmax.f32 %v2364, 0.0
  %v2543 = vmax.f32 %v2369, 0.0
  %v2544 = vmax.f32 %v2374, 0.0
  %v2545 = vmax.f32 %v2379, 0.0
  %v2546 = vmax.f32 %v2384, 0.0
  %v2547 = vmax.f32 %v2389, 0.0
  %v2548 = vmax.f32 %v2394, 0.0
  %v2549 = vmax.f32 %v2399, 0.0
  %v2550 = vmax.f32 %v2404, 0.0
  %v2551 = vmax.f32 %v2409, 0.0
  %v2552 = vmax.f32 %v2414, 0.0
  %v2553 = vmax.f32 %v2419, 0.0
  %v2554 = vmax.f32 %v2424, 0.0
  %v2555 = vmax.f32 %v2429, 0.0
  %v2556 = vmax.f32 %v2434, 0.0
  %v2557 = vmax.f32 %v2439, 0.0
  %v2558 = vmax.f32 %v2444, 0.0
  %v2559 = vmax.f32 %v2449, 0.0
  %v2560 = vmax.f32 %v2454, 0.0
  %v2561 = vmax.f32 %v2459, 0.0
  %v2562 = vmax.f32 %v2464, 0.0
  %v2563 = vmax.f32 %v2469, 0.0
  %v2564 = vmax.f32 %v2474, 0.0
  %v2565 = vmax.f32 %v2479, 0.0
  %v2566 = vmax.f32 %v2484, 0.0
  %v2567 = vmax.f32 %v2489, 0.0
  %v2568 = vmax.f32 %v2494, 0.0
  %v2569 = vmax.f32 %v2499, 0.0
  %v2570 = vmax.f32 %v2504, 0.0
  %v2571 = vmax.f32 %v2507, %v2509
  %v2572 = vmax.f32 %v2508, %v2510
  %v2573 = vmax.f32 %v2511, %v2513
  %v2574 = vmax.f32 %v2512, %v2514
  %v2575 = vmax.f32 %v2515, %v2517
  %v2576 = vmax.f32 %v2516, %v2518
  %v2577 = vmax.f32 %v2519, %v2521
  %v2578 = vmax.f32 %v2520, %v2522
  %v2579 = vmax.f32 %v2523, %v2525
  %v2580 = vmax.f32 %v2524, %v2526
  %v2581 = vmax.f32 %v2527, %v2529
  %v2582 = vmax.f32 %v2528, %v2530
  %v2583 = vmax.f32 %v2531, %v2533
  %v2584 = vmax.f32 %v2532, %v2534
  %v2585 = vmax.f32 %v2535, %v2537
  %v2586 = vmax.f32 %v2536, %v2538
  %v2587 = vmax.f32 %v2539, %v2541
  %v2588 = vmax.f32 %v2540, %v2542
  %v2589 = vmax.f32 %v2543, %v2545
  %v2590 = vmax.f32 %v2544, %v2546
  %v2591 = vmax.f32 %v2547, %v2549
  %v2592 = vmax.f32 %v2548, %v2550
  %v2593 = vmax.f32 %v2551, %v2553
  %v2594 = vmax.f32 %v2552, %v2554
  %v2595 = vmax.f32 %v2555, %v2557
  %v2596 = vmax.f32 %v2556, %v2558
  %v2597 = vmax.f32 %v2559, %v2561
  %v2598 = vmax.f32 %v2560, %v2562
  %v2599 = vmax.f32 %v2563, %v2565
  %v2600 = vmax.f32 %v2564, %v2566
  %v2601 = vmax.f32 %v2567, %v2569
  %v2602 = vmax.f32 %v2568, %v2570
  %2603 = vst [vmem:[#allocation2] sm:$0xff] %v2571
  %2604 = vst [vmem:[#allocation2 + $0x8] sm:$0xff] %v2572
  %2605 = vst [vmem:[#allocation2 + $0x10] sm:$0xff] %v2573
  %2606 = vst [vmem:[#allocation2 + $0x18] sm:$0xff] %v2574
  %2607 = vst [vmem:[#allocation2 + $0x20] sm:$0xff] %v2575
  %2608 = vst [vmem:[#allocation2 + $0x28] sm:$0xff] %v2576
  %2609 = vst [vmem:[#allocation2 + $0x30] sm:$0xff] %v2577
  %2610 = vst [vmem:[#allocation2 + $0x38] sm:$0xff] %v2578
  %2611 = vst [vmem:[#allocation2 + $0x40] sm:$0xff] %v2579
  %2612 = vst [vmem:[#allocation2 + $0x48] sm:$0xff] %v2580
  %2613 = vst [vmem:[#allocation2 + $0x50] sm:$0xff] %v2581
  %2614 = vst [vmem:[#allocation2 + $0x58] sm:$0xff] %v2582
  %2615 = vst [vmem:[#allocation2 + $0x60] sm:$0xff] %v2583
  %2616 = vst [vmem:[#allocation2 + $0x68] sm:$0xff] %v2584
  %2617 = vst [vmem:[#allocation2 + $0x70] sm:$0xff] %v2585
  %2618 = vst [vmem:[#allocation2 + $0x78] sm:$0xff] %v2586
  %2619 = vst [vmem:[#allocation2 + $0x80] sm:$0xff] %v2587
  %2620 = vst [vmem:[#allocation2 + $0x88] sm:$0xff] %v2588
  %2621 = vst [vmem:[#allocation2 + $0x90] sm:$0xff] %v2589
  %2622 = vst [vmem:[#allocation2 + $0x98] sm:$0xff] %v2590
  %2623 = vst [vmem:[#allocation2 + $0xa0] sm:$0xff] %v2591
  %2624 = vst [vmem:[#allocation2 + $0xa8] sm:$0xff] %v2592
  %2625 = vst [vmem:[#allocation2 + $0xb0] sm:$0xff] %v2593
  %2626 = vst [vmem:[#allocation2 + $0xb8] sm:$0xff] %v2594
  %2627 = vst [vmem:[#allocation2 + $0xc0] sm:$0xff] %v2595
  %2628 = vst [vmem:[#allocation2 + $0xc8] sm:$0xff] %v2596
  %2629 = vst [vmem:[#allocation2 + $0xd0] sm:$0xff] %v2597
  %2630 = vst [vmem:[#allocation2 + $0xd8] sm:$0xff] %v2598
  %2631 = vst [vmem:[#allocation2 + $0xe0] sm:$0xff] %v2599
  %2632 = vst [vmem:[#allocation2 + $0xe8] sm:$0xff] %v2600
  %2633 = vst [vmem:[#allocation2 + $0xf0] sm:$0xff] %v2601
  %2634 = vst [vmem:[#allocation2 + $0xf8] sm:$0xff] %v2602
  %v2635 = vld [vmem:[#allocation2] ss:$2 sm:$0xff]
  %s2636 = scalar_lea.vmem [#allocation2], 16
  %v2637 = vld [vmem:[%s2636] ss:$2 sm:$0xff]
  %s2638 = scalar_lea.vmem [#allocation2], 32
  %v2639 = vld [vmem:[%s2638] ss:$2 sm:$0xff]
  %s2640 = scalar_lea.vmem [#allocation2], 48
  %v2641 = vld [vmem:[%s2640] ss:$2 sm:$0xff]
  %s2642 = scalar_lea.vmem [#allocation2], 64
  %v2643 = vld [vmem:[%s2642] ss:$2 sm:$0xff]
  %s2644 = scalar_lea.vmem [#allocation2], 80
  %v2645 = vld [vmem:[%s2644] ss:$2 sm:$0xff]
  %s2646 = scalar_lea.vmem [#allocation2], 96
  %v2647 = vld [vmem:[%s2646] ss:$2 sm:$0xff]
  %s2648 = scalar_lea.vmem [#allocation2], 112
  %v2649 = vld [vmem:[%s2648] ss:$2 sm:$0xff]
  %s2650 = scalar_lea.vmem [#allocation2], 128
  %v2651 = vld [vmem:[%s2650] ss:$2 sm:$0xff]
  %s2652 = scalar_lea.vmem [#allocation2], 144
  %v2653 = vld [vmem:[%s2652] ss:$2 sm:$0xff]
  %s2654 = scalar_lea.vmem [#allocation2], 160
  %v2655 = vld [vmem:[%s2654] ss:$2 sm:$0xff]
  %s2656 = scalar_lea.vmem [#allocation2], 176
  %v2657 = vld [vmem:[%s2656] ss:$2 sm:$0xff]
  %s2658 = scalar_lea.vmem [#allocation2], 192
  %v2659 = vld [vmem:[%s2658] ss:$2 sm:$0xff]
  %s2660 = scalar_lea.vmem [#allocation2], 208
  %v2661 = vld [vmem:[%s2660] ss:$2 sm:$0xff]
  %s2662 = scalar_lea.vmem [#allocation2], 224
  %v2663 = vld [vmem:[%s2662] ss:$2 sm:$0xff]
  %s2664 = scalar_lea.vmem [#allocation2], 240
  %v2665 = vld [vmem:[%s2664] ss:$2 sm:$0xff]
  %s2666 = scalar_lea.vmem [#allocation2], 1
  %v2667 = vld [vmem:[%s2666] ss:$2 sm:$0xff]
  %s2668 = scalar_lea.vmem [#allocation2], 17
  %v2669 = vld [vmem:[%s2668] ss:$2 sm:$0xff]
  %s2670 = scalar_lea.vmem [#allocation2], 33
  %v2671 = vld [vmem:[%s2670] ss:$2 sm:$0xff]
  %s2672 = scalar_lea.vmem [#allocation2], 49
  %v2673 = vld [vmem:[%s2672] ss:$2 sm:$0xff]
  %s2674 = scalar_lea.vmem [#allocation2], 65
  %v2675 = vld [vmem:[%s2674] ss:$2 sm:$0xff]
  %s2676 = scalar_lea.vmem [#allocation2], 81
  %v2677 = vld [vmem:[%s2676] ss:$2 sm:$0xff]
  %s2678 = scalar_lea.vmem [#allocation2], 97
  %v2679 = vld [vmem:[%s2678] ss:$2 sm:$0xff]
  %s2680 = scalar_lea.vmem [#allocation2], 113
  %v2681 = vld [vmem:[%s2680] ss:$2 sm:$0xff]
  %s2682 = scalar_lea.vmem [#allocation2], 129
  %v2683 = vld [vmem:[%s2682] ss:$2 sm:$0xff]
  %s2684 = scalar_lea.vmem [#allocation2], 145
  %v2685 = vld [vmem:[%s2684] ss:$2 sm:$0xff]
  %s2686 = scalar_lea.vmem [#allocation2], 161
  %v2687 = vld [vmem:[%s2686] ss:$2 sm:$0xff]
  %s2688 = scalar_lea.vmem [#allocation2], 177
  %v2689 = vld [vmem:[%s2688] ss:$2 sm:$0xff]
  %s2690 = scalar_lea.vmem [#allocation2], 193
  %v2691 = vld [vmem:[%s2690] ss:$2 sm:$0xff]
  %s2692 = scalar_lea.vmem [#allocation2], 209
  %v2693 = vld [vmem:[%s2692] ss:$2 sm:$0xff]
  %s2694 = scalar_lea.vmem [#allocation2], 225
  %v2695 = vld [vmem:[%s2694] ss:$2 sm:$0xff]
  %s2696 = scalar_lea.vmem [#allocation2], 241
  %v2697 = vld [vmem:[%s2696] ss:$2 sm:$0xff]
  %v2698 = vmax.f32 %v2635, %v2667
  %v2699 = vmax.f32 %v2637, %v2669
  %v2700 = vmax.f32 %v2639, %v2671
  %v2701 = vmax.f32 %v2641, %v2673
  %v2702 = vmax.f32 %v2643, %v2675
  %v2703 = vmax.f32 %v2645, %v2677
  %v2704 = vmax.f32 %v2647, %v2679
  %v2705 = vmax.f32 %v2649, %v2681
  %v2706 = vmax.f32 %v2651, %v2683
  %v2707 = vmax.f32 %v2653, %v2685
  %v2708 = vmax.f32 %v2655, %v2687
  %v2709 = vmax.f32 %v2657, %v2689
  %v2710 = vmax.f32 %v2659, %v2691
  %v2711 = vmax.f32 %v2661, %v2693
  %v2712 = vmax.f32 %v2663, %v2695
  %v2713 = vmax.f32 %v2665, %v2697
  %v2730 = vrot.slane %v2698, 7
  %v2731 = vrot.slane %v2699, 7
  %v2732 = vrot.slane %v2700, 7
  %v2733 = vrot.slane %v2701, 7
  %v2734 = vrot.slane %v2702, 7
  %v2735 = vrot.slane %v2703, 7
  %v2736 = vrot.slane %v2704, 7
  %v2737 = vrot.slane %v2705, 7
  %v2738 = vrot.slane %v2706, 7
  %v2739 = vrot.slane %v2707, 7
  %v2740 = vrot.slane %v2708, 7
  %v2741 = vrot.slane %v2709, 7
  %v2742 = vrot.slane %v2710, 7
  %v2743 = vrot.slane %v2711, 7
  %v2744 = vrot.slane %v2712, 7
  %v2745 = vrot.slane %v2713, 7
  %v2762 = vsel %vm213, 0.0, %v2730
  %v2763 = vsel %vm213, 0.0, %v2731
  %v2764 = vsel %vm213, 0.0, %v2732
  %v2765 = vsel %vm213, 0.0, %v2733
  %v2766 = vsel %vm213, 0.0, %v2734
  %v2767 = vsel %vm213, 0.0, %v2735
  %v2768 = vsel %vm213, 0.0, %v2736
  %v2769 = vsel %vm213, 0.0, %v2737
  %v2770 = vsel %vm213, 0.0, %v2738
  %v2771 = vsel %vm213, 0.0, %v2739
  %v2772 = vsel %vm213, 0.0, %v2740
  %v2773 = vsel %vm213, 0.0, %v2741
  %v2774 = vsel %vm213, 0.0, %v2742
  %v2775 = vsel %vm213, 0.0, %v2743
  %v2776 = vsel %vm213, 0.0, %v2744
  %v2777 = vsel %vm213, 0.0, %v2745
  %v2778 = vrot.slane %v2698, 1
  %v2779 = vrot.slane %v2699, 1
  %v2780 = vrot.slane %v2700, 1
  %v2781 = vrot.slane %v2701, 1
  %v2782 = vrot.slane %v2702, 1
  %v2783 = vrot.slane %v2703, 1
  %v2784 = vrot.slane %v2704, 1
  %v2785 = vrot.slane %v2705, 1
  %v2786 = vrot.slane %v2706, 1
  %v2787 = vrot.slane %v2707, 1
  %v2788 = vrot.slane %v2708, 1
  %v2789 = vrot.slane %v2709, 1
  %v2790 = vrot.slane %v2710, 1
  %v2791 = vrot.slane %v2711, 1
  %v2792 = vrot.slane %v2712, 1
  %v2793 = vrot.slane %v2713, 1
  %v2810 = vsel %vm406, %v2778, 0.0
  %v2811 = vsel %vm406, %v2779, 0.0
  %v2812 = vsel %vm406, %v2780, 0.0
  %v2813 = vsel %vm406, %v2781, 0.0
  %v2814 = vsel %vm406, %v2782, 0.0
  %v2815 = vsel %vm406, %v2783, 0.0
  %v2816 = vsel %vm406, %v2784, 0.0
  %v2817 = vsel %vm406, %v2785, 0.0
  %v2818 = vsel %vm406, %v2786, 0.0
  %v2819 = vsel %vm406, %v2787, 0.0
  %v2820 = vsel %vm406, %v2788, 0.0
  %v2821 = vsel %vm406, %v2789, 0.0
  %v2822 = vsel %vm406, %v2790, 0.0
  %v2823 = vsel %vm406, %v2791, 0.0
  %v2824 = vsel %vm406, %v2792, 0.0
  %v2825 = vsel %vm406, %v2793, 0.0
  %2826 = vrot.lane.b32.xlu0 %v2698, 8
  %v2827 = vpop.permute.xlu0 %2826
  %2828 = vrot.lane.b32.xlu0 %v2699, 8
  %v2829 = vpop.permute.xlu0 %2828
  %2830 = vrot.lane.b32.xlu0 %v2700, 8
  %v2831 = vpop.permute.xlu0 %2830
  %2832 = vrot.lane.b32.xlu0 %v2701, 8
  %v2833 = vpop.permute.xlu0 %2832
  %2834 = vrot.lane.b32.xlu0 %v2702, 8
  %v2835 = vpop.permute.xlu0 %2834
  %2836 = vrot.lane.b32.xlu0 %v2703, 8
  %v2837 = vpop.permute.xlu0 %2836
  %2838 = vrot.lane.b32.xlu0 %v2704, 8
  %v2839 = vpop.permute.xlu0 %2838
  %2840 = vrot.lane.b32.xlu0 %v2706, 8
  %v2841 = vpop.permute.xlu0 %2840
  %2842 = vrot.lane.b32.xlu0 %v2707, 8
  %v2843 = vpop.permute.xlu0 %2842
  %2844 = vrot.lane.b32.xlu0 %v2708, 8
  %v2845 = vpop.permute.xlu0 %2844
  %2846 = vrot.lane.b32.xlu0 %v2709, 8
  %v2847 = vpop.permute.xlu0 %2846
  %2848 = vrot.lane.b32.xlu0 %v2710, 8
  %v2849 = vpop.permute.xlu0 %2848
  %2850 = vrot.lane.b32.xlu0 %v2711, 8
  %v2851 = vpop.permute.xlu0 %2850
  %2852 = vrot.lane.b32.xlu0 %v2712, 8
  %v2853 = vpop.permute.xlu0 %2852
  %v2854 = vadd.f32 %v783, 0.0
  %v2855 = vadd.f32 %v2762, %v2827
  %v2856 = vadd.f32 %v2763, %v2829
  %v2857 = vadd.f32 %v2764, %v2831
  %v2858 = vadd.f32 %v2765, %v2833
  %v2859 = vadd.f32 %v2766, %v2835
  %v2860 = vadd.f32 %v2767, %v2837
  %v2861 = vadd.f32 %v2768, %v2839
  %v2862 = vadd.f32 %v2770, %v2841
  %v2863 = vadd.f32 %v2771, %v2843
  %v2864 = vadd.f32 %v2772, %v2845
  %v2865 = vadd.f32 %v2773, %v2847
  %v2866 = vadd.f32 %v2774, %v2849
  %v2867 = vadd.f32 %v2775, %v2851
  %v2868 = vadd.f32 %v2776, %v2853
  %2869 = vrot.lane.b32.xlu0 0.0, 16
  %v2870 = vpop.permute.xlu0 %2869
  %2871 = vrot.lane.b32.xlu0 %v2810, 16
  %v2872 = vpop.permute.xlu0 %2871
  %2873 = vrot.lane.b32.xlu0 %v2811, 16
  %v2874 = vpop.permute.xlu0 %2873
  %2875 = vrot.lane.b32.xlu0 %v2812, 16
  %v2876 = vpop.permute.xlu0 %2875
  %2877 = vrot.lane.b32.xlu0 %v2813, 16
  %v2878 = vpop.permute.xlu0 %2877
  %2879 = vrot.lane.b32.xlu0 %v2814, 16
  %v2880 = vpop.permute.xlu0 %2879
  %2881 = vrot.lane.b32.xlu0 %v2815, 16
  %v2882 = vpop.permute.xlu0 %2881
  %2883 = vrot.lane.b32.xlu0 %v2816, 16
  %v2884 = vpop.permute.xlu0 %2883
  %2885 = vrot.lane.b32.xlu0 %v2818, 16
  %v2886 = vpop.permute.xlu0 %2885
  %2887 = vrot.lane.b32.xlu0 %v2819, 16
  %v2888 = vpop.permute.xlu0 %2887
  %2889 = vrot.lane.b32.xlu0 %v2820, 16
  %v2890 = vpop.permute.xlu0 %2889
  %2891 = vrot.lane.b32.xlu0 %v2821, 16
  %v2892 = vpop.permute.xlu0 %2891
  %2893 = vrot.lane.b32.xlu0 %v2822, 16
  %v2894 = vpop.permute.xlu0 %2893
  %2895 = vrot.lane.b32.xlu0 %v2823, 16
  %v2896 = vpop.permute.xlu0 %2895
  %2897 = vrot.lane.b32.xlu0 %v2824, 16
  %v2898 = vpop.permute.xlu0 %2897
  %v2899 = vadd.f32 %v2854, %v2870
  %v2900 = vadd.f32 %v2855, %v2872
  %v2901 = vadd.f32 %v2856, %v2874
  %v2902 = vadd.f32 %v2857, %v2876
  %v2903 = vadd.f32 %v2858, %v2878
  %v2904 = vadd.f32 %v2859, %v2880
  %v2905 = vadd.f32 %v2860, %v2882
  %v2906 = vadd.f32 %v2861, %v2884
  %v2907 = vadd.f32 %v2862, %v2886
  %v2908 = vadd.f32 %v2863, %v2888
  %v2909 = vadd.f32 %v2864, %v2890
  %v2910 = vadd.f32 %v2865, %v2892
  %v2911 = vadd.f32 %v2866, %v2894
  %v2912 = vadd.f32 %v2867, %v2896
  %v2913 = vadd.f32 %v2868, %v2898
  %2914 = vrot.lane.b32.xlu0 %v2762, 24
  %v2915 = vpop.permute.xlu0 %2914
  %2916 = vrot.lane.b32.xlu0 %v2763, 24
  %v2917 = vpop.permute.xlu0 %2916
  %2918 = vrot.lane.b32.xlu0 %v2764, 24
  %v2919 = vpop.permute.xlu0 %2918
  %2920 = vrot.lane.b32.xlu0 %v2765, 24
  %v2921 = vpop.permute.xlu0 %2920
  %2922 = vrot.lane.b32.xlu0 %v2766, 24
  %v2923 = vpop.permute.xlu0 %2922
  %2924 = vrot.lane.b32.xlu0 %v2767, 24
  %v2925 = vpop.permute.xlu0 %2924
  %2926 = vrot.lane.b32.xlu0 %v2768, 24
  %v2927 = vpop.permute.xlu0 %2926
  %2928 = vrot.lane.b32.xlu0 %v2769, 24
  %v2929 = vpop.permute.xlu0 %2928
  %2930 = vrot.lane.b32.xlu0 %v2770, 24
  %v2931 = vpop.permute.xlu0 %2930
  %2932 = vrot.lane.b32.xlu0 %v2771, 24
  %v2933 = vpop.permute.xlu0 %2932
  %2934 = vrot.lane.b32.xlu0 %v2772, 24
  %v2935 = vpop.permute.xlu0 %2934
  %2936 = vrot.lane.b32.xlu0 %v2773, 24
  %v2937 = vpop.permute.xlu0 %2936
  %2938 = vrot.lane.b32.xlu0 %v2774, 24
  %v2939 = vpop.permute.xlu0 %2938
  %2940 = vrot.lane.b32.xlu0 %v2775, 24
  %v2941 = vpop.permute.xlu0 %2940
  %2942 = vrot.lane.b32.xlu0 %v2776, 24
  %v2943 = vpop.permute.xlu0 %2942
  %2944 = vrot.lane.b32.xlu0 %v2777, 24
  %v2945 = vpop.permute.xlu0 %2944
  %v2946 = vadd.f32 %v2899, %v2915
  %v2947 = vadd.f32 %v2900, %v2917
  %v2948 = vadd.f32 %v2901, %v2919
  %v2949 = vadd.f32 %v2902, %v2921
  %v2950 = vadd.f32 %v2903, %v2923
  %v2951 = vadd.f32 %v2904, %v2925
  %v2952 = vadd.f32 %v2905, %v2927
  %v2953 = vadd.f32 %v2906, %v2929
  %v2954 = vadd.f32 %v2899, %v2931
  %v2955 = vadd.f32 %v2907, %v2933
  %v2956 = vadd.f32 %v2908, %v2935
  %v2957 = vadd.f32 %v2909, %v2937
  %v2958 = vadd.f32 %v2910, %v2939
  %v2959 = vadd.f32 %v2911, %v2941
  %v2960 = vadd.f32 %v2912, %v2943
  %v2961 = vadd.f32 %v2913, %v2945
  %2962 = vrot.lane.b32.xlu0 %v2698, 32
  %v2963 = vpop.permute.xlu0 %2962
  %2964 = vrot.lane.b32.xlu0 %v2699, 32
  %v2965 = vpop.permute.xlu0 %2964
  %2966 = vrot.lane.b32.xlu0 %v2700, 32
  %v2967 = vpop.permute.xlu0 %2966
  %2968 = vrot.lane.b32.xlu0 %v2701, 32
  %v2969 = vpop.permute.xlu0 %2968
  %2970 = vrot.lane.b32.xlu0 %v2702, 32
  %v2971 = vpop.permute.xlu0 %2970
  %2972 = vrot.lane.b32.xlu0 %v2703, 32
  %v2973 = vpop.permute.xlu0 %2972
  %2974 = vrot.lane.b32.xlu0 %v2704, 32
  %v2975 = vpop.permute.xlu0 %2974
  %2976 = vrot.lane.b32.xlu0 %v2705, 32
  %v2977 = vpop.permute.xlu0 %2976
  %2978 = vrot.lane.b32.xlu0 %v2706, 32
  %v2979 = vpop.permute.xlu0 %2978
  %2980 = vrot.lane.b32.xlu0 %v2707, 32
  %v2981 = vpop.permute.xlu0 %2980
  %2982 = vrot.lane.b32.xlu0 %v2708, 32
  %v2983 = vpop.permute.xlu0 %2982
  %2984 = vrot.lane.b32.xlu0 %v2709, 32
  %v2985 = vpop.permute.xlu0 %2984
  %2986 = vrot.lane.b32.xlu0 %v2710, 32
  %v2987 = vpop.permute.xlu0 %2986
  %2988 = vrot.lane.b32.xlu0 %v2711, 32
  %v2989 = vpop.permute.xlu0 %2988
  %2990 = vrot.lane.b32.xlu0 %v2712, 32
  %v2991 = vpop.permute.xlu0 %2990
  %2992 = vrot.lane.b32.xlu0 %v2713, 32
  %v2993 = vpop.permute.xlu0 %2992
  %v2994 = vadd.f32 %v2946, %v2963
  %v2995 = vadd.f32 %v2947, %v2965
  %v2996 = vadd.f32 %v2948, %v2967
  %v2997 = vadd.f32 %v2949, %v2969
  %v2998 = vadd.f32 %v2950, %v2971
  %v2999 = vadd.f32 %v2951, %v2973
  %v3000 = vadd.f32 %v2952, %v2975
  %v3001 = vadd.f32 %v2953, %v2977
  %v3002 = vadd.f32 %v2954, %v2979
  %v3003 = vadd.f32 %v2955, %v2981
  %v3004 = vadd.f32 %v2956, %v2983
  %v3005 = vadd.f32 %v2957, %v2985
  %v3006 = vadd.f32 %v2958, %v2987
  %v3007 = vadd.f32 %v2959, %v2989
  %v3008 = vadd.f32 %v2960, %v2991
  %v3009 = vadd.f32 %v2961, %v2993
  %3010 = vrot.lane.b32.xlu0 %v2810, 40
  %v3011 = vpop.permute.xlu0 %3010
  %3012 = vrot.lane.b32.xlu0 %v2811, 40
  %v3013 = vpop.permute.xlu0 %3012
  %3014 = vrot.lane.b32.xlu0 %v2812, 40
  %v3015 = vpop.permute.xlu0 %3014
  %3016 = vrot.lane.b32.xlu0 %v2813, 40
  %v3017 = vpop.permute.xlu0 %3016
  %3018 = vrot.lane.b32.xlu0 %v2814, 40
  %v3019 = vpop.permute.xlu0 %3018
  %3020 = vrot.lane.b32.xlu0 %v2815, 40
  %v3021 = vpop.permute.xlu0 %3020
  %3022 = vrot.lane.b32.xlu0 %v2816, 40
  %v3023 = vpop.permute.xlu0 %3022
  %3024 = vrot.lane.b32.xlu0 %v2817, 40
  %v3025 = vpop.permute.xlu0 %3024
  %3026 = vrot.lane.b32.xlu0 %v2818, 40
  %v3027 = vpop.permute.xlu0 %3026
  %3028 = vrot.lane.b32.xlu0 %v2819, 40
  %v3029 = vpop.permute.xlu0 %3028
  %3030 = vrot.lane.b32.xlu0 %v2820, 40
  %v3031 = vpop.permute.xlu0 %3030
  %3032 = vrot.lane.b32.xlu0 %v2821, 40
  %v3033 = vpop.permute.xlu0 %3032
  %3034 = vrot.lane.b32.xlu0 %v2822, 40
  %v3035 = vpop.permute.xlu0 %3034
  %3036 = vrot.lane.b32.xlu0 %v2823, 40
  %v3037 = vpop.permute.xlu0 %3036
  %3038 = vrot.lane.b32.xlu0 %v2824, 40
  %v3039 = vpop.permute.xlu0 %3038
  %3040 = vrot.lane.b32.xlu0 %v2825, 40
  %v3041 = vpop.permute.xlu0 %3040
  %v3042 = vadd.f32 %v2994, %v3011
  %v3043 = vadd.f32 %v2995, %v3013
  %v3044 = vadd.f32 %v2996, %v3015
  %v3045 = vadd.f32 %v2997, %v3017
  %v3046 = vadd.f32 %v2998, %v3019
  %v3047 = vadd.f32 %v2999, %v3021
  %v3048 = vadd.f32 %v3000, %v3023
  %v3049 = vadd.f32 %v3001, %v3025
  %v3050 = vadd.f32 %v3002, %v3027
  %v3051 = vadd.f32 %v3003, %v3029
  %v3052 = vadd.f32 %v3004, %v3031
  %v3053 = vadd.f32 %v3005, %v3033
  %v3054 = vadd.f32 %v3006, %v3035
  %v3055 = vadd.f32 %v3007, %v3037
  %v3056 = vadd.f32 %v3008, %v3039
  %v3057 = vadd.f32 %v3009, %v3041
  %3058 = vrot.lane.b32.xlu0 %v2763, 48
  %v3059 = vpop.permute.xlu0 %3058
  %3060 = vrot.lane.b32.xlu0 %v2764, 48
  %v3061 = vpop.permute.xlu0 %3060
  %3062 = vrot.lane.b32.xlu0 %v2765, 48
  %v3063 = vpop.permute.xlu0 %3062
  %3064 = vrot.lane.b32.xlu0 %v2766, 48
  %v3065 = vpop.permute.xlu0 %3064
  %3066 = vrot.lane.b32.xlu0 %v2767, 48
  %v3067 = vpop.permute.xlu0 %3066
  %3068 = vrot.lane.b32.xlu0 %v2768, 48
  %v3069 = vpop.permute.xlu0 %3068
  %3070 = vrot.lane.b32.xlu0 %v2769, 48
  %v3071 = vpop.permute.xlu0 %3070
  %3072 = vrot.lane.b32.xlu0 0.0, 48
  %v3073 = vpop.permute.xlu0 %3072
  %3074 = vrot.lane.b32.xlu0 %v2771, 48
  %v3075 = vpop.permute.xlu0 %3074
  %3076 = vrot.lane.b32.xlu0 %v2772, 48
  %v3077 = vpop.permute.xlu0 %3076
  %3078 = vrot.lane.b32.xlu0 %v2773, 48
  %v3079 = vpop.permute.xlu0 %3078
  %3080 = vrot.lane.b32.xlu0 %v2774, 48
  %v3081 = vpop.permute.xlu0 %3080
  %3082 = vrot.lane.b32.xlu0 %v2775, 48
  %v3083 = vpop.permute.xlu0 %3082
  %3084 = vrot.lane.b32.xlu0 %v2776, 48
  %v3085 = vpop.permute.xlu0 %3084
  %3086 = vrot.lane.b32.xlu0 %v2777, 48
  %v3087 = vpop.permute.xlu0 %3086
  %v3088 = vadd.f32 %v3042, %v3059
  %v3089 = vadd.f32 %v3043, %v3061
  %v3090 = vadd.f32 %v3044, %v3063
  %v3091 = vadd.f32 %v3045, %v3065
  %v3092 = vadd.f32 %v3046, %v3067
  %v3093 = vadd.f32 %v3047, %v3069
  %v3094 = vadd.f32 %v3048, %v3071
  %v3095 = vadd.f32 %v3049, %v3073
  %v3096 = vadd.f32 %v3050, %v3075
  %v3097 = vadd.f32 %v3051, %v3077
  %v3098 = vadd.f32 %v3052, %v3079
  %v3099 = vadd.f32 %v3053, %v3081
  %v3100 = vadd.f32 %v3054, %v3083
  %v3101 = vadd.f32 %v3055, %v3085
  %v3102 = vadd.f32 %v3056, %v3087
  %v3103 = vadd.f32 %v3057, %v3073
  %3104 = vrot.lane.b32.xlu0 %v2699, 56
  %v3105 = vpop.permute.xlu0 %3104
  %3106 = vrot.lane.b32.xlu0 %v2700, 56
  %v3107 = vpop.permute.xlu0 %3106
  %3108 = vrot.lane.b32.xlu0 %v2701, 56
  %v3109 = vpop.permute.xlu0 %3108
  %3110 = vrot.lane.b32.xlu0 %v2702, 56
  %v3111 = vpop.permute.xlu0 %3110
  %3112 = vrot.lane.b32.xlu0 %v2703, 56
  %v3113 = vpop.permute.xlu0 %3112
  %3114 = vrot.lane.b32.xlu0 %v2704, 56
  %v3115 = vpop.permute.xlu0 %3114
  %3116 = vrot.lane.b32.xlu0 %v2705, 56
  %v3117 = vpop.permute.xlu0 %3116
  %3118 = vrot.lane.b32.xlu0 0.0, 56
  %v3119 = vpop.permute.xlu0 %3118
  %3120 = vrot.lane.b32.xlu0 %v2707, 56
  %v3121 = vpop.permute.xlu0 %3120
  %3122 = vrot.lane.b32.xlu0 %v2708, 56
  %v3123 = vpop.permute.xlu0 %3122
  %3124 = vrot.lane.b32.xlu0 %v2709, 56
  %v3125 = vpop.permute.xlu0 %3124
  %3126 = vrot.lane.b32.xlu0 %v2710, 56
  %v3127 = vpop.permute.xlu0 %3126
  %3128 = vrot.lane.b32.xlu0 %v2711, 56
  %v3129 = vpop.permute.xlu0 %3128
  %3130 = vrot.lane.b32.xlu0 %v2712, 56
  %v3131 = vpop.permute.xlu0 %3130
  %3132 = vrot.lane.b32.xlu0 %v2713, 56
  %v3133 = vpop.permute.xlu0 %3132
  %v3134 = vadd.f32 %v3088, %v3105
  %v3135 = vadd.f32 %v3089, %v3107
  %v3136 = vadd.f32 %v3090, %v3109
  %v3137 = vadd.f32 %v3091, %v3111
  %v3138 = vadd.f32 %v3092, %v3113
  %v3139 = vadd.f32 %v3093, %v3115
  %v3140 = vadd.f32 %v3094, %v3117
  %v3141 = vadd.f32 %v3095, %v3119
  %v3142 = vadd.f32 %v3096, %v3121
  %v3143 = vadd.f32 %v3097, %v3123
  %v3144 = vadd.f32 %v3098, %v3125
  %v3145 = vadd.f32 %v3099, %v3127
  %v3146 = vadd.f32 %v3100, %v3129
  %v3147 = vadd.f32 %v3101, %v3131
  %v3148 = vadd.f32 %v3102, %v3133
  %v3149 = vadd.f32 %v3103, %v3119
  %3150 = vrot.lane.b32.xlu0 %v2811, 64
  %v3151 = vpop.permute.xlu0 %3150
  %3152 = vrot.lane.b32.xlu0 %v2812, 64
  %v3153 = vpop.permute.xlu0 %3152
  %3154 = vrot.lane.b32.xlu0 %v2813, 64
  %v3155 = vpop.permute.xlu0 %3154
  %3156 = vrot.lane.b32.xlu0 %v2814, 64
  %v3157 = vpop.permute.xlu0 %3156
  %3158 = vrot.lane.b32.xlu0 %v2815, 64
  %v3159 = vpop.permute.xlu0 %3158
  %3160 = vrot.lane.b32.xlu0 %v2816, 64
  %v3161 = vpop.permute.xlu0 %3160
  %3162 = vrot.lane.b32.xlu0 %v2817, 64
  %v3163 = vpop.permute.xlu0 %3162
  %3164 = vrot.lane.b32.xlu0 0.0, 64
  %v3165 = vpop.permute.xlu0 %3164
  %3166 = vrot.lane.b32.xlu0 %v2819, 64
  %v3167 = vpop.permute.xlu0 %3166
  %3168 = vrot.lane.b32.xlu0 %v2820, 64
  %v3169 = vpop.permute.xlu0 %3168
  %3170 = vrot.lane.b32.xlu0 %v2821, 64
  %v3171 = vpop.permute.xlu0 %3170
  %3172 = vrot.lane.b32.xlu0 %v2822, 64
  %v3173 = vpop.permute.xlu0 %3172
  %3174 = vrot.lane.b32.xlu0 %v2823, 64
  %v3175 = vpop.permute.xlu0 %3174
  %3176 = vrot.lane.b32.xlu0 %v2824, 64
  %v3177 = vpop.permute.xlu0 %3176
  %3178 = vrot.lane.b32.xlu0 %v2825, 64
  %v3179 = vpop.permute.xlu0 %3178
  %v3180 = vadd.f32 %v3134, %v3151
  %v3181 = vadd.f32 %v3135, %v3153
  %v3182 = vadd.f32 %v3136, %v3155
  %v3183 = vadd.f32 %v3137, %v3157
  %v3184 = vadd.f32 %v3138, %v3159
  %v3185 = vadd.f32 %v3139, %v3161
  %v3186 = vadd.f32 %v3140, %v3163
  %v3187 = vadd.f32 %v3141, %v3165
  %v3188 = vadd.f32 %v3142, %v3167
  %v3189 = vadd.f32 %v3143, %v3169
  %v3190 = vadd.f32 %v3144, %v3171
  %v3191 = vadd.f32 %v3145, %v3173
  %v3192 = vadd.f32 %v3146, %v3175
  %v3193 = vadd.f32 %v3147, %v3177
  %v3194 = vadd.f32 %v3148, %v3179
  %v3195 = vadd.f32 %v3149, %v3165
  %v3196 = vld [vmem:[%s3] sm:$0xff]
  %v3197 = vld [vmem:[%s3 + $0x8] sm:$0xff]
  %v3198 = vld [vmem:[%s3 + $0x10] sm:$0xff]
  %v3199 = vld [vmem:[%s3 + $0x18] sm:$0xff]
  %v3200 = vld [vmem:[%s3 + $0x20] sm:$0xff]
  %v3201 = vld [vmem:[%s3 + $0x28] sm:$0xff]
  %v3202 = vld [vmem:[%s3 + $0x30] sm:$0xff]
  %v3203 = vld [vmem:[%s3 + $0x38] sm:$0xff]
  %v3204 = vld [vmem:[%s3 + $0x40] sm:$0xff]
  %v3205 = vld [vmem:[%s3 + $0x48] sm:$0xff]
  %v3206 = vld [vmem:[%s3 + $0x50] sm:$0xff]
  %v3207 = vld [vmem:[%s3 + $0x58] sm:$0xff]
  %v3208 = vld [vmem:[%s3 + $0x60] sm:$0xff]
  %v3209 = vld [vmem:[%s3 + $0x68] sm:$0xff]
  %v3210 = vld [vmem:[%s3 + $0x70] sm:$0xff]
  %v3211 = vld [vmem:[%s3 + $0x78] sm:$0xff]
  %v3212 = vld [vmem:[%s4] sm:$0x1]
  %v3214 = vlaneseq
  %v3215 = vshrl.u32 %v3214, 7
  %v3216 = vsub.s32 0, %v3215
  %v3217 = vrot.slane %v3212, %v3216
  %3219 = vmatprep.subr.mxu0 0.0
  %3220 = vmatpush1.msra.mxu0 %v3211
  %3221 = vmatprep.subr.mxu0 0.0
  %3222 = vmatpush1.msra.mxu0 %v3210
  %3223 = vmatprep.subr.mxu0 0.0
  %3224 = vmatpush1.msra.mxu0 %v3209
  %3225 = vmatprep.subr.mxu0 0.0
  %3226 = vmatpush1.msra.mxu0 %v3208
  %3227 = vmatprep.subr.mxu0 0.0
  %3228 = vmatpush1.msra.mxu0 %v3207
  %3229 = vmatprep.subr.mxu0 0.0
  %3230 = vmatpush1.msra.mxu0 %v3206
  %3231 = vmatprep.subr.mxu0 0.0
  %3232 = vmatpush1.msra.mxu0 %v3205
  %3233 = vmatprep.subr.mxu0 0.0
  %3234 = vmatpush1.msra.mxu0 %v3204
  %3235 = vmatprep.subr.mxu0 0.0
  %3236 = vmatpush1.msra.mxu0 %v3203
  %3237 = vmatprep.subr.mxu0 0.0
  %3238 = vmatpush1.msra.mxu0 %v3202
  %3239 = vmatprep.subr.mxu0 0.0
  %3240 = vmatpush1.msra.mxu0 %v3201
  %3241 = vmatprep.subr.mxu0 0.0
  %3242 = vmatpush1.msra.mxu0 %v3200
  %3243 = vmatprep.subr.mxu0 0.0
  %3244 = vmatpush1.msra.mxu0 %v3199
  %3245 = vmatprep.subr.mxu0 0.0
  %3246 = vmatpush1.msra.mxu0 %v3198
  %3247 = vmatprep.subr.mxu0 0.0
  %3248 = vmatpush1.msra.mxu0 %v3197
  %3249 = vmatprep.subr.mxu0 0.0
  %3250 = vmatpush1.msra.mxu0 %v3196
  %3251 = vmatprep.subr.mxu0 0.0
  %3252 = vmatpush2.msra.mxu0 0.0
  %3253 = vmatprep.subr.mxu0 0.0
  %3254 = vmatpush2.msra.mxu0 0.0
  %3255 = vmatprep.subr.mxu0 0.0
  %3256 = vmatpush2.msra.mxu0 0.0
  %3257 = vmatprep.subr.mxu0 0.0
  %3258 = vmatpush2.msra.mxu0 0.0
  %3259 = vmatprep.subr.mxu0 0.0
  %3260 = vmatpush2.msra.mxu0 0.0
  %3261 = vmatprep.subr.mxu0 0.0
  %3262 = vmatpush2.msra.mxu0 0.0
  %3263 = vmatprep.subr.mxu0 0.0
  %3264 = vmatpush2.msra.mxu0 0.0
  %3265 = vmatprep.subr.mxu0 0.0
  %3266 = vmatpush2.msra.mxu0 0.0
  %3267 = vmatprep.subr.mxu0 0.0
  %3268 = vmatpush2.msra.mxu0 0.0
  %3269 = vmatprep.subr.mxu0 0.0
  %3270 = vmatpush2.msra.mxu0 0.0
  %3271 = vmatprep.subr.mxu0 0.0
  %3272 = vmatpush2.msra.mxu0 0.0
  %3273 = vmatprep.subr.mxu0 0.0
  %3274 = vmatpush2.msra.mxu0 0.0
  %3275 = vmatprep.subr.mxu0 0.0
  %3276 = vmatpush2.msra.mxu0 0.0
  %3277 = vmatprep.subr.mxu0 0.0
  %3278 = vmatpush2.msra.mxu0 0.0
  %3279 = vmatprep.subr.mxu0 0.0
  %3280 = vmatpush2.msra.mxu0 0.0
  %3281 = vmatprep.subr.mxu0 0.0
  %3282 = vmatpush2.msra.mxu0 0.0
  %3283 = vmatprep.mubr.f32.mxu0 0.0
  %3284 = vmatmul.mubr.f32.gmra.mxu0 %v3180
  %v3285 = vpop.f32.mrf.mxu0
  %v3286 = vadd.f32 %v3217, %v3285
  %v3287 = vpop.f32.mrf.mxu0
  %3288 = vmatprep.mubr.f32.mxu0 0.0
  %3289 = vmatmul.mubr.f32.gmra.mxu0 %v3181
  %v3290 = vpop.f32.mrf.mxu0
  %v3291 = vadd.f32 %v3217, %v3290
  %v3292 = vpop.f32.mrf.mxu0
  %3293 = vmatprep.mubr.f32.mxu0 0.0
  %3294 = vmatmul.mubr.f32.gmra.mxu0 %v3182
  %v3295 = vpop.f32.mrf.mxu0
  %v3296 = vadd.f32 %v3217, %v3295
  %v3297 = vpop.f32.mrf.mxu0
  %3298 = vmatprep.mubr.f32.mxu0 0.0
  %3299 = vmatmul.mubr.f32.gmra.mxu0 %v3183
  %v3300 = vpop.f32.mrf.mxu0
  %v3301 = vadd.f32 %v3217, %v3300
  %v3302 = vpop.f32.mrf.mxu0
  %3303 = vmatprep.mubr.f32.mxu0 0.0
  %3304 = vmatmul.mubr.f32.gmra.mxu0 %v3184
  %v3305 = vpop.f32.mrf.mxu0
  %v3306 = vadd.f32 %v3217, %v3305
  %v3307 = vpop.f32.mrf.mxu0
  %3308 = vmatprep.mubr.f32.mxu0 0.0
  %3309 = vmatmul.mubr.f32.gmra.mxu0 %v3185
  %v3310 = vpop.f32.mrf.mxu0
  %v3311 = vadd.f32 %v3217, %v3310
  %v3312 = vpop.f32.mrf.mxu0
  %3313 = vmatprep.mubr.f32.mxu0 0.0
  %3314 = vmatmul.mubr.f32.gmra.mxu0 %v3186
  %v3315 = vpop.f32.mrf.mxu0
  %v3316 = vadd.f32 %v3217, %v3315
  %v3317 = vpop.f32.mrf.mxu0
  %3318 = vmatprep.mubr.f32.mxu0 0.0
  %3319 = vmatmul.mubr.f32.gmra.mxu0 %v3187
  %v3320 = vpop.f32.mrf.mxu0
  %v3321 = vadd.f32 %v3217, %v3320
  %v3322 = vpop.f32.mrf.mxu0
  %3323 = vmatprep.mubr.f32.mxu0 0.0
  %3324 = vmatmul.mubr.f32.gmra.mxu0 %v3188
  %v3325 = vpop.f32.mrf.mxu0
  %v3326 = vadd.f32 %v3217, %v3325
  %v3327 = vpop.f32.mrf.mxu0
  %3328 = vmatprep.mubr.f32.mxu0 0.0
  %3329 = vmatmul.mubr.f32.gmra.mxu0 %v3189
  %v3330 = vpop.f32.mrf.mxu0
  %v3331 = vadd.f32 %v3217, %v3330
  %v3332 = vpop.f32.mrf.mxu0
  %3333 = vmatprep.mubr.f32.mxu0 0.0
  %3334 = vmatmul.mubr.f32.gmra.mxu0 %v3190
  %v3335 = vpop.f32.mrf.mxu0
  %v3336 = vadd.f32 %v3217, %v3335
  %v3337 = vpop.f32.mrf.mxu0
  %3338 = vmatprep.mubr.f32.mxu0 0.0
  %3339 = vmatmul.mubr.f32.gmra.mxu0 %v3191
  %v3340 = vpop.f32.mrf.mxu0
  %v3341 = vadd.f32 %v3217, %v3340
  %v3342 = vpop.f32.mrf.mxu0
  %3343 = vmatprep.mubr.f32.mxu0 0.0
  %3344 = vmatmul.mubr.f32.gmra.mxu0 %v3192
  %v3345 = vpop.f32.mrf.mxu0
  %v3346 = vadd.f32 %v3217, %v3345
  %v3347 = vpop.f32.mrf.mxu0
  %3348 = vmatprep.mubr.f32.mxu0 0.0
  %3349 = vmatmul.mubr.f32.gmra.mxu0 %v3193
  %v3350 = vpop.f32.mrf.mxu0
  %v3351 = vadd.f32 %v3217, %v3350
  %v3352 = vpop.f32.mrf.mxu0
  %3353 = vmatprep.mubr.f32.mxu0 0.0
  %3354 = vmatmul.mubr.f32.gmra.mxu0 %v3194
  %v3355 = vpop.f32.mrf.mxu0
  %v3356 = vadd.f32 %v3217, %v3355
  %v3357 = vpop.f32.mrf.mxu0
  %3358 = vmatprep.mubr.f32.mxu0 0.0
  %3359 = vmatmul.mubr.f32.gmra.mxu0 %v3195
  %v3360 = vpop.f32.mrf.mxu0
  %v3361 = vadd.f32 %v3217, %v3360
  %v3362 = vpop.f32.mrf.mxu0
  %3363 = vdwg.mxu0
  %v3364 = vmax.f32 %v3286, 0.0
  %v3365 = vmax.f32 %v3291, 0.0
  %v3366 = vmax.f32 %v3296, 0.0
  %v3367 = vmax.f32 %v3301, 0.0
  %v3368 = vmax.f32 %v3306, 0.0
  %v3369 = vmax.f32 %v3311, 0.0
  %v3370 = vmax.f32 %v3316, 0.0
  %v3371 = vmax.f32 %v3321, 0.0
  %v3372 = vmax.f32 %v3326, 0.0
  %v3373 = vmax.f32 %v3331, 0.0
  %v3374 = vmax.f32 %v3336, 0.0
  %v3375 = vmax.f32 %v3341, 0.0
  %v3376 = vmax.f32 %v3346, 0.0
  %v3377 = vmax.f32 %v3351, 0.0
  %v3378 = vmax.f32 %v3356, 0.0
  %v3379 = vmax.f32 %v3361, 0.0
  %v3380 = vmax.f32 %v3364, %v3365
  %v3381 = vmax.f32 %v3366, %v3367
  %v3382 = vmax.f32 %v3368, %v3369
  %v3383 = vmax.f32 %v3370, %v3371
  %v3384 = vmax.f32 %v3372, %v3373
  %v3385 = vmax.f32 %v3374, %v3375
  %v3386 = vmax.f32 %v3376, %v3377
  %v3387 = vmax.f32 %v3378, %v3379
  %3388 = vst [vmem:[#allocation2] sm:$0xff] %v3380
  %3389 = vst [vmem:[#allocation2 + $0x8] sm:$0xff] %v3381
  %3390 = vst [vmem:[#allocation2 + $0x10] sm:$0xff] %v3382
  %3391 = vst [vmem:[#allocation2 + $0x18] sm:$0xff] %v3383
  %3392 = vst [vmem:[#allocation2 + $0x20] sm:$0xff] %v3384
  %3393 = vst [vmem:[#allocation2 + $0x28] sm:$0xff] %v3385
  %3394 = vst [vmem:[#allocation2 + $0x30] sm:$0xff] %v3386
  %3395 = vst [vmem:[#allocation2 + $0x38] sm:$0xff] %v3387
  %v3396 = vld [vmem:[#allocation2] ss:$2 sm:$0xff]
  %s3397 = scalar_lea.vmem [#allocation2], 16
  %v3398 = vld [vmem:[%s3397] ss:$2 sm:$0xff]
  %s3399 = scalar_lea.vmem [#allocation2], 32
  %v3400 = vld [vmem:[%s3399] ss:$2 sm:$0xff]
  %s3401 = scalar_lea.vmem [#allocation2], 48
  %v3402 = vld [vmem:[%s3401] ss:$2 sm:$0xff]
  %v3403 = vld [vmem:[%s2666] ss:$2 sm:$0xff]
  %v3404 = vld [vmem:[%s2668] ss:$2 sm:$0xff]
  %v3405 = vld [vmem:[%s2670] ss:$2 sm:$0xff]
  %v3406 = vld [vmem:[%s2672] ss:$2 sm:$0xff]
  %v3407 = vmax.f32 %v3396, %v3403
  %v3408 = vmax.f32 %v3398, %v3404
  %v3409 = vmax.f32 %v3400, %v3405
  %v3410 = vmax.f32 %v3402, %v3406
  %3411 = vadd.xlane.f32.xlu0 %v3407
  %v3412 = vpop.xlane.xlu0 %3411
  %3413 = vadd.xlane.f32.xlu0 %v3408
  %v3414 = vpop.xlane.xlu0 %3413
  %3415 = vadd.xlane.f32.xlu0 %v3409
  %v3416 = vpop.xlane.xlu0 %3415
  %3417 = vadd.xlane.f32.xlu0 %v3410
  %v3418 = vpop.xlane.xlu0 %3417
  %v3423 = vlaneseq
  %v3424 = vand.u32 %v3423, 127
  %v3425 = vlaneseq
  %v3426 = vshrl.u32 %v3425, 7
  %v3427 = vsub.s32 %v3424, %v3426
  %v3428 = vrot.slane %v3412, %v3427
  %v3429 = vadd.s32 %v3424, 4294967288
  %v3430 = vlaneseq
  %v3431 = vshrl.u32 %v3430, 7
  %v3432 = vsub.s32 %v3429, %v3431
  %v3433 = vrot.slane %v3414, %v3432
  %vm3434 = vcmask 130112
  %v3435 = vsel %vm3434, %v3433, %v3428
  %v3436 = vlaneseq
  %v3437 = vshrl.u32 %v3436, 7
  %v3438 = vsub.s32 %v3424, %v3437
  %v3439 = vrot.slane %v3416, %v3438
  %v3440 = vlaneseq
  %v3441 = vshrl.u32 %v3440, 7
  %v3442 = vsub.s32 %v3429, %v3441
  %v3443 = vrot.slane %v3418, %v3442
  %v3444 = vsel %vm3434, %v3443, %v3439
  %vm3445 = vcmask 1041409
  %v3446 = vsel %vm3445, %v3444, %v3435
  %vm3448 = vcmask 123904
  %v3449 = vsel %vm3448, %v3446, 0.0
  %3450 = vadd.xlane.f32.xlu0 %v3449
  %v3451 = vpop.xlane.xlu0 %3450
  %v3452 = vmul.f32 %v3451, 0.00390625
  %v3453 = vtanh.pop %v3452
  %v3454 = vmul.f32 %v3453, 1.5
  %vm3455 = vcmask 1041408
  %v3456 = vsel %vm3455, %v3454, -inf
  %v3457 = vrot.slane %v3456, 4
  %v3458 = vmax.f32 %v3456, %v3457
  %v3459 = vrot.slane %v3458, 2
  %v3460 = vmax.f32 %v3458, %v3459
  %v3461 = vrot.slane %v3460, 1
  %v3462 = vmax.f32 %v3460, %v3461
  %v3463 = vsub.f32 %v3454, %v3462
  %v3464 = vmul.f32 %v3463, 1.442695
  %v3465 = vpow.pop %v3464
  %v3466 = vsel %vm3455, %v3465, 0.0
  %v3467 = vrot.slane %v3466, 4
  %v3468 = vadd.f32 %v3466, %v3467
  %v3469 = vrot.slane %v3468, 2
  %v3470 = vadd.f32 %v3468, %v3469
  %v3471 = vrot.slane %v3470, 1
  %v3472 = vadd.f32 %v3470, %v3471
  %v3473 = vrcp.pop %v3472
  %v3474 = vmul.f32 %v3465, %v3473
  %vm3475 = vcmask 1024
  %3476 = vst.msk [vmem:[%s5] sm:$0x3] %vm3475, %v3474
  // Predicated region
  $region22: #{vgg_forward.1} parent=0 // pred_check
    _
  $region23: #{vgg_forward.1} parent=0 // pred_check_branch
    %3478 = sbr.rel (0) target = $region25
  $region24: #{vgg_forward.1} parent=0 // pred_region
    _
  $region25: #{vgg_forward.1} parent=0 // pred_fallthru
    _
  // Predicated region
  $region26: #{vgg_forward.1} parent=0 // pred_check
    _
  $region27: #{vgg_forward.1} parent=0 // pred_check_branch
    %3480 = sbr.rel (0) target = $region29
  $region28: #{vgg_forward.1} parent=0 // pred_region
    _
  $region29: #{vgg_forward.1} parent=0 // pred_fallthru
    _

</llo_original>
